<compile_context>
chip_gen: v7x
topology: tpu7x:2x2x1
jax: 0.10.0
libtpu: 0.0.40
codegen_flags: <defaults>
</compile_context>

<pallas_src>
import functools

import jax
import jax.numpy as jnp
import numpy as np
from jax.experimental import pallas as pl
from jax.experimental.pallas import tpu as pltpu

DP = 128  # lane-padded feature width (node_in, edge_in, out_size all <= 128 here)


def _vmem_specs(n):
    return [pl.BlockSpec(memory_space=pltpu.MemorySpace.VMEM) for _ in range(n)]


def _pad2(a, rows, cols):
    out = jnp.zeros((rows, cols), jnp.float32)
    return out.at[: a.shape[0], : a.shape[1]].set(a.astype(jnp.float32))


# ------------------------- fused kernel -------------------------

def _masked_layernorm(x, gamma, beta, d_true):
    # Columns >= d_true are exactly zero by construction, so the lane-wide sums are exact;
    # statistics are taken over the true feature width only (matches nn.LayerNorm(d_true)).
    inv_d = 1.0 / float(d_true)
    mask = (jax.lax.broadcasted_iota(jnp.int32, x.shape, 1) < d_true).astype(x.dtype)
    mean = jnp.sum(x, axis=-1, keepdims=True) * inv_d
    cent = x - mean
    var = jnp.sum(cent * cent * mask, axis=-1, keepdims=True) * inv_d
    return cent * jax.lax.rsqrt(var + 1e-5) * gamma + beta


def _fused_kernel(node_ref, edge_ref, srcoh_ref, dstoh_ref, dstoht_ref,
                  projw_ref, enw1_ref, enb1_ref, enw2_ref, enb2_ref,
                  wb1_ref, wb2_ref, aux_ref,
                  atom_ref, bond_ref, *, n_passing, d_true):
    f32 = jnp.float32
    aux = aux_ref[...]
    proj_b, nn_b, lb_b = aux[0:1, :], aux[1:2, :], aux[2:3, :]
    ln_g, ln_b = aux[3:4, :], aux[4:5, :]

    src_oh = srcoh_ref[...].astype(f32)     # (E, V)  gather rows h[src]   (bf16 in HBM)
    dst_oh = dstoh_ref[...].astype(f32)     # (E, V)  gather rows h[dst]
    dst_oh_t = dstoht_ref[...].astype(f32)  # (V, E)  scatter-sum onto dst

    # edge network: Linear -> ReLU -> Linear  (per-edge NNConv weights, computed once)
    eh = jnp.maximum(
        jnp.dot(edge_ref[...], enw1_ref[...], preferred_element_type=f32) + enb1_ref[...],
        0.0)                                                         # (E, hid_pad)
    ew = (jnp.dot(eh, enw2_ref[...], preferred_element_type=f32)
          + enb2_ref[...])                                           # (E, d_true*DP), flat

    # project_node_feats: Linear + ReLU
    h = jnp.maximum(
        jnp.dot(node_ref[...], projw_ref[...], preferred_element_type=f32) + proj_b,
        0.0)                                                         # (V, DP), zero-padded

    # num_step_message_passing x relu(NNConv(aggregator='sum')).
    # h, ew and the one-hots stay VMEM-resident for every step.
    for _ in range(n_passing):
        hs = jnp.dot(src_oh, h, preferred_element_type=f32)          # (E, DP) = h[src]
        # per-edge h_src @ W_e : one 128-aligned lane-block FMA per true input feature k
        # (avoids any in-kernel 3-D reshape of the flat edge-weight tensor).
        msg = hs[:, 0:1] * ew[:, 0:DP]
        for k in range(1, d_true):
            msg = msg + hs[:, k:k + 1] * ew[:, k * DP:(k + 1) * DP]
        agg = jnp.dot(dst_oh_t, msg, preferred_element_type=f32)     # (V, DP) scatter-sum
        h = jnp.maximum(agg + nn_b, 0.0)

    # bond_feats = linearB(cat(h[dst], h[src]))  (pair_atom_feats + linearB fused)
    hd = jnp.dot(dst_oh, h, preferred_element_type=f32)
    hu = jnp.dot(src_oh, h, preferred_element_type=f32)
    bond = (jnp.dot(hd, wb1_ref[...], preferred_element_type=f32)
            + jnp.dot(hu, wb2_ref[...], preferred_element_type=f32) + lb_b)

    # self.norm = LayerNorm(out_size) applied to both outputs (fused here)
    atom_ref[...] = _masked_layernorm(h, ln_g, ln_b, d_true).astype(atom_ref.dtype)
    bond_ref[...] = _masked_layernorm(bond, ln_g, ln_b, d_true).astype(bond_ref.dtype)


# ------------------------- forward (glue + kernel) -------------------------

def local_retro_forward(params, node_feats, edge_feats, src, dst, n_passing):
    """LocalRetro.forward with MPNN_wo_GRU encoder (pool=None, out_layer=None)."""
    v, _ = node_feats.shape
    e, _ = edge_feats.shape
    d = params["proj_w"].shape[1]
    hid = params["en_w1"].shape[1]
    hp = ((hid + 7) // 8) * 8            # sublane-pad hidden width only (not to 128)
    assert d <= DP and hid <= hp

    # one-hot gather/scatter matrices (bf16 is exact for 0/1 values -> half the DMA bytes)
    src_oh = jax.nn.one_hot(src, v, dtype=jnp.bfloat16)    # (E, V)
    dst_oh = jax.nn.one_hot(dst, v, dtype=jnp.bfloat16)    # (E, V)
    dst_oh_t = dst_oh.T                                    # (V, E)

    # zero-pad feature (lane) axes to 128 where they feed lane-dense matmuls / stores
    node_p = _pad2(node_feats, v, DP)
    edge_p = _pad2(edge_feats, e, DP)
    proj_w = _pad2(params["proj_w"], DP, DP)
    en_w1 = _pad2(params["en_w1"], DP, hp)                       # (DP, hid_pad)
    en_b1 = _pad2(params["en_b1"].reshape(1, -1), 1, hp)         # (1, hid_pad)
    # second edge-net layer: contraction axis kept at the (sublane-padded) hidden width,
    # each of the d output blocks lane-padded to 128 -> flat (hid_pad, d*DP) weight.
    en_w2 = (jnp.zeros((hp, d, DP), jnp.float32)
             .at[:hid, :, :d].set(params["en_w2"].astype(jnp.float32).reshape(hid, d, d))
             .reshape(hp, d * DP))
    en_b2 = (jnp.zeros((d, DP), jnp.float32)
             .at[:, :d].set(params["en_b2"].astype(jnp.float32).reshape(d, d))
             .reshape(1, d * DP))
    wb1 = _pad2(params["linB_w"][:d], DP, DP)   # multiplies h[dst]
    wb2 = _pad2(params["linB_w"][d:], DP, DP)   # multiplies h[src]

    # pack all small per-feature vectors into one (8, DP) slab -> a single DMA
    aux = jnp.zeros((8, DP), jnp.float32)
    aux = aux.at[0, :d].set(params["proj_b"])
    aux = aux.at[1, :d].set(params["nn_bias"])
    aux = aux.at[2, :d].set(params["linB_b"])
    aux = aux.at[3, :d].set(params["ln_g"])
    aux = aux.at[4, :d].set(params["ln_b"])

    atom_p, bond_p = pl.pallas_call(
        functools.partial(_fused_kernel, n_passing=n_passing, d_true=d),
        out_shape=(jax.ShapeDtypeStruct((v, DP), jnp.float32),
                   jax.ShapeDtypeStruct((e, DP), jnp.float32)),
        in_specs=_vmem_specs(13),
        out_specs=(pl.BlockSpec(memory_space=pltpu.MemorySpace.VMEM),
                   pl.BlockSpec(memory_space=pltpu.MemorySpace.VMEM)),
    )(node_p, edge_p, src_oh, dst_oh, dst_oh_t,
      proj_w, en_w1, en_b1, en_w2, en_b2, wb1, wb2, aux)

    return atom_p[:, :d], bond_p[:, :d]


# ------------------------- pure-JAX reference -------------------------

def reference_forward(params, node_feats, edge_feats, src, dst, n_passing):
    d = params["proj_w"].shape[1]
    h = jax.nn.relu(node_feats @ params["proj_w"] + params["proj_b"])
    eh = jax.nn.relu(edge_feats @ params["en_w1"] + params["en_b1"])
    ew = (eh @ params["en_w2"] + params["en_b2"]).reshape(-1, d, d)
    for _ in range(n_passing):
        msg = jnp.einsum("ed,edo->eo", h[src], ew)
        agg = jnp.zeros_like(h).at[dst].add(msg)
        h = jax.nn.relu(agg + params["nn_bias"])
    atom = h
    bond = jnp.concatenate([h[dst], h[src]], axis=1) @ params["linB_w"] + params["linB_b"]

    def ln(x):
        mu = jnp.mean(x, axis=-1, keepdims=True)
        var = jnp.mean((x - mu) ** 2, axis=-1, keepdims=True)
        return (x - mu) * jax.lax.rsqrt(var + 1e-5) * params["ln_g"] + params["ln_b"]

    return ln(atom), ln(bond)


# ------------------------- main -------------------------

if __name__ == "__main__":
    # Small, module-consistent shapes.
    V, E = 8, 16                 # nodes / directed edges
    NODE_IN, EDGE_IN = 16, 8     # atom / bond featurizer sizes
    D, HID = 32, 32              # args.out_size, args.hidden_size
    N_PASSING = 3                # args.n_passing

    key = jax.random.PRNGKey(0)
    ks = jax.random.split(key, 12)

    # Deterministic synthetic parameters (shapes from the module __init__).
    params = {
        "proj_w":  jax.random.normal(ks[0], (NODE_IN, D), jnp.float32) * 0.1,
        "proj_b":  jax.random.normal(ks[1], (D,), jnp.float32) * 0.01,
        "en_w1":   jax.random.normal(ks[2], (EDGE_IN, HID), jnp.float32) * 0.1,
        "en_b1":   jax.random.normal(ks[3], (HID,), jnp.float32) * 0.01,
        "en_w2":   jax.random.normal(ks[4], (HID, D * D), jnp.float32) * 0.1,
        "en_b2":   jax.random.normal(ks[5], (D * D,), jnp.float32) * 0.01,
        "nn_bias": jax.random.normal(ks[6], (D,), jnp.float32) * 0.01,   # NNConv bias
        "linB_w":  jax.random.normal(ks[7], (2 * D, D), jnp.float32) * 0.1,
        "linB_b":  jax.random.normal(ks[8], (D,), jnp.float32) * 0.01,
        "ln_g":    jnp.ones((D,), jnp.float32),
        "ln_b":    jnp.zeros((D,), jnp.float32),
    }

    # Graph: directed edges with no self-loops (pair_atom_feats removes self-loops).
    src = jnp.asarray(np.arange(E) % V, dtype=jnp.int32)
    dst = jnp.asarray((np.arange(E) % V + 1 + np.arange(E) // V) % V, dtype=jnp.int32)

    node_feats = jax.random.normal(ks[9], (V, NODE_IN), jnp.float32)
    edge_feats = jax.random.normal(ks[10], (E, EDGE_IN), jnp.float32)

    atom_feats, bond_feats = local_retro_forward(
        params, node_feats, edge_feats, src, dst, N_PASSING)
    jax.block_until_ready((atom_feats, bond_feats))

    atom_ref, bond_ref = reference_forward(
        params, node_feats, edge_feats, src, dst, N_PASSING)

    np.testing.assert_allclose(np.asarray(atom_feats), np.asarray(atom_ref), rtol=1e-4, atol=1e-4)
    np.testing.assert_allclose(np.asarray(bond_feats), np.asarray(bond_ref), rtol=1e-4, atol=1e-4)
    assert atom_feats.shape == (V, D) and bond_feats.shape == (E, D)

    # TODO(synk): MaxPooling / dgl.readout_edges and the 'Baseline' out_layer branch are
    # inactive in this configuration (pool=False, encoder_type='MPNN_wo_GRU') and not implemented.
    print("KERNEL_OK")
</pallas_src>

<mosaic_0001>
module attributes {stable_mosaic.version = 11 : i64} {
  func.func @_fused_kernel(%arg0: memref<8x128xf32, #tpu.memory_space<vmem>>, %arg1: memref<16x128xf32, #tpu.memory_space<vmem>>, %arg2: memref<16x8xbf16, #tpu.memory_space<vmem>>, %arg3: memref<16x8xbf16, #tpu.memory_space<vmem>>, %arg4: memref<8x16xbf16, #tpu.memory_space<vmem>>, %arg5: memref<128x128xf32, #tpu.memory_space<vmem>>, %arg6: memref<128x32xf32, #tpu.memory_space<vmem>>, %arg7: memref<1x32xf32, #tpu.memory_space<vmem>>, %arg8: memref<32x4096xf32, #tpu.memory_space<vmem>>, %arg9: memref<1x4096xf32, #tpu.memory_space<vmem>>, %arg10: memref<128x128xf32, #tpu.memory_space<vmem>>, %arg11: memref<128x128xf32, #tpu.memory_space<vmem>>, %arg12: memref<8x128xf32, #tpu.memory_space<vmem>>, %arg13: memref<8x128xf32, #tpu.memory_space<vmem>>, %arg14: memref<16x128xf32, #tpu.memory_space<vmem>>) attributes {dimension_semantics = [], scalar_prefetch = 0 : i64, scratch_operands = 0 : i64, tpu.core_type = #tpu.core_type<tc>} {
    %c0 = arith.constant 0 : index
    %c0_0 = arith.constant 0 : index
    %0 = vector.load %arg12[%c0, %c0_0] : memref<8x128xf32, #tpu.memory_space<vmem>>, vector<8x128xf32>
    %1 = vector.extract_strided_slice %0 {offsets = [0, 0], sizes = [1, 128], strides = [1, 1]} : vector<8x128xf32> to vector<1x128xf32>
    %2 = vector.extract_strided_slice %0 {offsets = [1, 0], sizes = [1, 128], strides = [1, 1]} : vector<8x128xf32> to vector<1x128xf32>
    %3 = vector.extract_strided_slice %0 {offsets = [2, 0], sizes = [1, 128], strides = [1, 1]} : vector<8x128xf32> to vector<1x128xf32>
    %4 = vector.extract_strided_slice %0 {offsets = [3, 0], sizes = [1, 128], strides = [1, 1]} : vector<8x128xf32> to vector<1x128xf32>
    %5 = vector.extract_strided_slice %0 {offsets = [4, 0], sizes = [1, 128], strides = [1, 1]} : vector<8x128xf32> to vector<1x128xf32>
    %c0_1 = arith.constant 0 : index
    %c0_2 = arith.constant 0 : index
    %6 = vector.load %arg2[%c0_1, %c0_2] : memref<16x8xbf16, #tpu.memory_space<vmem>>, vector<16x8xbf16>
    %7 = arith.extf %6 : vector<16x8xbf16> to vector<16x8xf32>
    %c0_3 = arith.constant 0 : index
    %c0_4 = arith.constant 0 : index
    %8 = vector.load %arg3[%c0_3, %c0_4] : memref<16x8xbf16, #tpu.memory_space<vmem>>, vector<16x8xbf16>
    %9 = arith.extf %8 : vector<16x8xbf16> to vector<16x8xf32>
    %c0_5 = arith.constant 0 : index
    %c0_6 = arith.constant 0 : index
    %10 = vector.load %arg4[%c0_5, %c0_6] : memref<8x16xbf16, #tpu.memory_space<vmem>>, vector<8x16xbf16>
    %11 = arith.extf %10 : vector<8x16xbf16> to vector<8x16xf32>
    %c0_7 = arith.constant 0 : index
    %c0_8 = arith.constant 0 : index
    %12 = vector.load %arg1[%c0_7, %c0_8] : memref<16x128xf32, #tpu.memory_space<vmem>>, vector<16x128xf32>
    %c0_9 = arith.constant 0 : index
    %c0_10 = arith.constant 0 : index
    %13 = vector.load %arg6[%c0_9, %c0_10] : memref<128x32xf32, #tpu.memory_space<vmem>>, vector<128x32xf32>
    %cst = arith.constant dense<0.000000e+00> : vector<16x32xf32>
    %14 = tpu.matmul %12, %13, %cst {dimension_numbers = #tpu.dot_dimension_numbers<[1], [0], [0], [1], [0, 0, 1, 1], [], []>} : vector<16x128xf32>, vector<128x32xf32>, vector<16x32xf32> -> vector<16x32xf32>
    %c0_11 = arith.constant 0 : index
    %c0_12 = arith.constant 0 : index
    %15 = vector.load %arg7[%c0_11, %c0_12] : memref<1x32xf32, #tpu.memory_space<vmem>>, vector<1x32xf32>
    %16 = vector.broadcast %15 : vector<1x32xf32> to vector<16x32xf32>
    %17 = arith.addf %14, %16 : vector<16x32xf32>
    %cst_13 = arith.constant 0.000000e+00 : f32
    %18 = vector.broadcast %cst_13 : f32 to vector<16x32xf32>
    %19 = arith.maximumf %17, %18 : vector<16x32xf32>
    %c0_14 = arith.constant 0 : index
    %c0_15 = arith.constant 0 : index
    %20 = vector.load %arg8[%c0_14, %c0_15] : memref<32x4096xf32, #tpu.memory_space<vmem>>, vector<32x4096xf32>
    %cst_16 = arith.constant dense<0.000000e+00> : vector<16x4096xf32>
    %21 = tpu.matmul %19, %20, %cst_16 {dimension_numbers = #tpu.dot_dimension_numbers<[1], [0], [0], [1], [0, 0, 1, 1], [], []>} : vector<16x32xf32>, vector<32x4096xf32>, vector<16x4096xf32> -> vector<16x4096xf32>
    %c0_17 = arith.constant 0 : index
    %c0_18 = arith.constant 0 : index
    %22 = vector.load %arg9[%c0_17, %c0_18] : memref<1x4096xf32, #tpu.memory_space<vmem>>, vector<1x4096xf32>
    %23 = vector.broadcast %22 : vector<1x4096xf32> to vector<16x4096xf32>
    %24 = arith.addf %21, %23 : vector<16x4096xf32>
    %c0_19 = arith.constant 0 : index
    %c0_20 = arith.constant 0 : index
    %25 = vector.load %arg0[%c0_19, %c0_20] : memref<8x128xf32, #tpu.memory_space<vmem>>, vector<8x128xf32>
    %c0_21 = arith.constant 0 : index
    %c0_22 = arith.constant 0 : index
    %26 = vector.load %arg5[%c0_21, %c0_22] : memref<128x128xf32, #tpu.memory_space<vmem>>, vector<128x128xf32>
    %cst_23 = arith.constant dense<0.000000e+00> : vector<8x128xf32>
    %27 = tpu.matmul %25, %26, %cst_23 {dimension_numbers = #tpu.dot_dimension_numbers<[1], [0], [0], [1], [0, 0, 1, 1], [], []>} : vector<8x128xf32>, vector<128x128xf32>, vector<8x128xf32> -> vector<8x128xf32>
    %28 = vector.broadcast %1 : vector<1x128xf32> to vector<8x128xf32>
    %29 = arith.addf %27, %28 : vector<8x128xf32>
    %cst_24 = arith.constant 0.000000e+00 : f32
    %30 = vector.broadcast %cst_24 : f32 to vector<8x128xf32>
    %31 = arith.maximumf %29, %30 : vector<8x128xf32>
    %cst_25 = arith.constant dense<0.000000e+00> : vector<16x128xf32>
    %32 = tpu.matmul %7, %31, %cst_25 {dimension_numbers = #tpu.dot_dimension_numbers<[1], [0], [0], [1], [0, 0, 1, 1], [], []>} : vector<16x8xf32>, vector<8x128xf32>, vector<16x128xf32> -> vector<16x128xf32>
    %33 = vector.extract_strided_slice %32 {offsets = [0, 0], sizes = [16, 1], strides = [1, 1]} : vector<16x128xf32> to vector<16x1xf32>
    %34 = vector.extract_strided_slice %24 {offsets = [0, 0], sizes = [16, 128], strides = [1, 1]} : vector<16x4096xf32> to vector<16x128xf32>
    %35 = vector.broadcast %33 : vector<16x1xf32> to vector<16x128xf32>
    %36 = arith.mulf %35, %34 : vector<16x128xf32>
    %37 = vector.extract_strided_slice %32 {offsets = [0, 1], sizes = [16, 1], strides = [1, 1]} : vector<16x128xf32> to vector<16x1xf32>
    %38 = vector.extract_strided_slice %24 {offsets = [0, 128], sizes = [16, 128], strides = [1, 1]} : vector<16x4096xf32> to vector<16x128xf32>
    %39 = vector.broadcast %37 : vector<16x1xf32> to vector<16x128xf32>
    %40 = arith.mulf %39, %38 : vector<16x128xf32>
    %41 = arith.addf %36, %40 : vector<16x128xf32>
    %42 = vector.extract_strided_slice %32 {offsets = [0, 2], sizes = [16, 1], strides = [1, 1]} : vector<16x128xf32> to vector<16x1xf32>
    %43 = vector.extract_strided_slice %24 {offsets = [0, 256], sizes = [16, 128], strides = [1, 1]} : vector<16x4096xf32> to vector<16x128xf32>
    %44 = vector.broadcast %42 : vector<16x1xf32> to vector<16x128xf32>
    %45 = arith.mulf %44, %43 : vector<16x128xf32>
    %46 = arith.addf %41, %45 : vector<16x128xf32>
    %47 = vector.extract_strided_slice %32 {offsets = [0, 3], sizes = [16, 1], strides = [1, 1]} : vector<16x128xf32> to vector<16x1xf32>
    %48 = vector.extract_strided_slice %24 {offsets = [0, 384], sizes = [16, 128], strides = [1, 1]} : vector<16x4096xf32> to vector<16x128xf32>
    %49 = vector.broadcast %47 : vector<16x1xf32> to vector<16x128xf32>
    %50 = arith.mulf %49, %48 : vector<16x128xf32>
    %51 = arith.addf %46, %50 : vector<16x128xf32>
    %52 = vector.extract_strided_slice %32 {offsets = [0, 4], sizes = [16, 1], strides = [1, 1]} : vector<16x128xf32> to vector<16x1xf32>
    %53 = vector.extract_strided_slice %24 {offsets = [0, 512], sizes = [16, 128], strides = [1, 1]} : vector<16x4096xf32> to vector<16x128xf32>
    %54 = vector.broadcast %52 : vector<16x1xf32> to vector<16x128xf32>
    %55 = arith.mulf %54, %53 : vector<16x128xf32>
    %56 = arith.addf %51, %55 : vector<16x128xf32>
    %57 = vector.extract_strided_slice %32 {offsets = [0, 5], sizes = [16, 1], strides = [1, 1]} : vector<16x128xf32> to vector<16x1xf32>
    %58 = vector.extract_strided_slice %24 {offsets = [0, 640], sizes = [16, 128], strides = [1, 1]} : vector<16x4096xf32> to vector<16x128xf32>
    %59 = vector.broadcast %57 : vector<16x1xf32> to vector<16x128xf32>
    %60 = arith.mulf %59, %58 : vector<16x128xf32>
    %61 = arith.addf %56, %60 : vector<16x128xf32>
    %62 = vector.extract_strided_slice %32 {offsets = [0, 6], sizes = [16, 1], strides = [1, 1]} : vector<16x128xf32> to vector<16x1xf32>
    %63 = vector.extract_strided_slice %24 {offsets = [0, 768], sizes = [16, 128], strides = [1, 1]} : vector<16x4096xf32> to vector<16x128xf32>
    %64 = vector.broadcast %62 : vector<16x1xf32> to vector<16x128xf32>
    %65 = arith.mulf %64, %63 : vector<16x128xf32>
    %66 = arith.addf %61, %65 : vector<16x128xf32>
    %67 = vector.extract_strided_slice %32 {offsets = [0, 7], sizes = [16, 1], strides = [1, 1]} : vector<16x128xf32> to vector<16x1xf32>
    %68 = vector.extract_strided_slice %24 {offsets = [0, 896], sizes = [16, 128], strides = [1, 1]} : vector<16x4096xf32> to vector<16x128xf32>
    %69 = vector.broadcast %67 : vector<16x1xf32> to vector<16x128xf32>
    %70 = arith.mulf %69, %68 : vector<16x128xf32>
    %71 = arith.addf %66, %70 : vector<16x128xf32>
    %72 = vector.extract_strided_slice %32 {offsets = [0, 8], sizes = [16, 1], strides = [1, 1]} : vector<16x128xf32> to vector<16x1xf32>
    %73 = vector.extract_strided_slice %24 {offsets = [0, 1024], sizes = [16, 128], strides = [1, 1]} : vector<16x4096xf32> to vector<16x128xf32>
    %74 = vector.broadcast %72 : vector<16x1xf32> to vector<16x128xf32>
    %75 = arith.mulf %74, %73 : vector<16x128xf32>
    %76 = arith.addf %71, %75 : vector<16x128xf32>
    %77 = vector.extract_strided_slice %32 {offsets = [0, 9], sizes = [16, 1], strides = [1, 1]} : vector<16x128xf32> to vector<16x1xf32>
    %78 = vector.extract_strided_slice %24 {offsets = [0, 1152], sizes = [16, 128], strides = [1, 1]} : vector<16x4096xf32> to vector<16x128xf32>
    %79 = vector.broadcast %77 : vector<16x1xf32> to vector<16x128xf32>
    %80 = arith.mulf %79, %78 : vector<16x128xf32>
    %81 = arith.addf %76, %80 : vector<16x128xf32>
    %82 = vector.extract_strided_slice %32 {offsets = [0, 10], sizes = [16, 1], strides = [1, 1]} : vector<16x128xf32> to vector<16x1xf32>
    %83 = vector.extract_strided_slice %24 {offsets = [0, 1280], sizes = [16, 128], strides = [1, 1]} : vector<16x4096xf32> to vector<16x128xf32>
    %84 = vector.broadcast %82 : vector<16x1xf32> to vector<16x128xf32>
    %85 = arith.mulf %84, %83 : vector<16x128xf32>
    %86 = arith.addf %81, %85 : vector<16x128xf32>
    %87 = vector.extract_strided_slice %32 {offsets = [0, 11], sizes = [16, 1], strides = [1, 1]} : vector<16x128xf32> to vector<16x1xf32>
    %88 = vector.extract_strided_slice %24 {offsets = [0, 1408], sizes = [16, 128], strides = [1, 1]} : vector<16x4096xf32> to vector<16x128xf32>
    %89 = vector.broadcast %87 : vector<16x1xf32> to vector<16x128xf32>
    %90 = arith.mulf %89, %88 : vector<16x128xf32>
    %91 = arith.addf %86, %90 : vector<16x128xf32>
    %92 = vector.extract_strided_slice %32 {offsets = [0, 12], sizes = [16, 1], strides = [1, 1]} : vector<16x128xf32> to vector<16x1xf32>
    %93 = vector.extract_strided_slice %24 {offsets = [0, 1536], sizes = [16, 128], strides = [1, 1]} : vector<16x4096xf32> to vector<16x128xf32>
    %94 = vector.broadcast %92 : vector<16x1xf32> to vector<16x128xf32>
    %95 = arith.mulf %94, %93 : vector<16x128xf32>
    %96 = arith.addf %91, %95 : vector<16x128xf32>
    %97 = vector.extract_strided_slice %32 {offsets = [0, 13], sizes = [16, 1], strides = [1, 1]} : vector<16x128xf32> to vector<16x1xf32>
    %98 = vector.extract_strided_slice %24 {offsets = [0, 1664], sizes = [16, 128], strides = [1, 1]} : vector<16x4096xf32> to vector<16x128xf32>
    %99 = vector.broadcast %97 : vector<16x1xf32> to vector<16x128xf32>
    %100 = arith.mulf %99, %98 : vector<16x128xf32>
    %101 = arith.addf %96, %100 : vector<16x128xf32>
    %102 = vector.extract_strided_slice %32 {offsets = [0, 14], sizes = [16, 1], strides = [1, 1]} : vector<16x128xf32> to vector<16x1xf32>
    %103 = vector.extract_strided_slice %24 {offsets = [0, 1792], sizes = [16, 128], strides = [1, 1]} : vector<16x4096xf32> to vector<16x128xf32>
    %104 = vector.broadcast %102 : vector<16x1xf32> to vector<16x128xf32>
    %105 = arith.mulf %104, %103 : vector<16x128xf32>
    %106 = arith.addf %101, %105 : vector<16x128xf32>
    %107 = vector.extract_strided_slice %32 {offsets = [0, 15], sizes = [16, 1], strides = [1, 1]} : vector<16x128xf32> to vector<16x1xf32>
    %108 = vector.extract_strided_slice %24 {offsets = [0, 1920], sizes = [16, 128], strides = [1, 1]} : vector<16x4096xf32> to vector<16x128xf32>
    %109 = vector.broadcast %107 : vector<16x1xf32> to vector<16x128xf32>
    %110 = arith.mulf %109, %108 : vector<16x128xf32>
    %111 = arith.addf %106, %110 : vector<16x128xf32>
    %112 = vector.extract_strided_slice %32 {offsets = [0, 16], sizes = [16, 1], strides = [1, 1]} : vector<16x128xf32> to vector<16x1xf32>
    %113 = vector.extract_strided_slice %24 {offsets = [0, 2048], sizes = [16, 128], strides = [1, 1]} : vector<16x4096xf32> to vector<16x128xf32>
    %114 = vector.broadcast %112 : vector<16x1xf32> to vector<16x128xf32>
    %115 = arith.mulf %114, %113 : vector<16x128xf32>
    %116 = arith.addf %111, %115 : vector<16x128xf32>
    %117 = vector.extract_strided_slice %32 {offsets = [0, 17], sizes = [16, 1], strides = [1, 1]} : vector<16x128xf32> to vector<16x1xf32>
    %118 = vector.extract_strided_slice %24 {offsets = [0, 2176], sizes = [16, 128], strides = [1, 1]} : vector<16x4096xf32> to vector<16x128xf32>
    %119 = vector.broadcast %117 : vector<16x1xf32> to vector<16x128xf32>
    %120 = arith.mulf %119, %118 : vector<16x128xf32>
    %121 = arith.addf %116, %120 : vector<16x128xf32>
    %122 = vector.extract_strided_slice %32 {offsets = [0, 18], sizes = [16, 1], strides = [1, 1]} : vector<16x128xf32> to vector<16x1xf32>
    %123 = vector.extract_strided_slice %24 {offsets = [0, 2304], sizes = [16, 128], strides = [1, 1]} : vector<16x4096xf32> to vector<16x128xf32>
    %124 = vector.broadcast %122 : vector<16x1xf32> to vector<16x128xf32>
    %125 = arith.mulf %124, %123 : vector<16x128xf32>
    %126 = arith.addf %121, %125 : vector<16x128xf32>
    %127 = vector.extract_strided_slice %32 {offsets = [0, 19], sizes = [16, 1], strides = [1, 1]} : vector<16x128xf32> to vector<16x1xf32>
    %128 = vector.extract_strided_slice %24 {offsets = [0, 2432], sizes = [16, 128], strides = [1, 1]} : vector<16x4096xf32> to vector<16x128xf32>
    %129 = vector.broadcast %127 : vector<16x1xf32> to vector<16x128xf32>
    %130 = arith.mulf %129, %128 : vector<16x128xf32>
    %131 = arith.addf %126, %130 : vector<16x128xf32>
    %132 = vector.extract_strided_slice %32 {offsets = [0, 20], sizes = [16, 1], strides = [1, 1]} : vector<16x128xf32> to vector<16x1xf32>
    %133 = vector.extract_strided_slice %24 {offsets = [0, 2560], sizes = [16, 128], strides = [1, 1]} : vector<16x4096xf32> to vector<16x128xf32>
    %134 = vector.broadcast %132 : vector<16x1xf32> to vector<16x128xf32>
    %135 = arith.mulf %134, %133 : vector<16x128xf32>
    %136 = arith.addf %131, %135 : vector<16x128xf32>
    %137 = vector.extract_strided_slice %32 {offsets = [0, 21], sizes = [16, 1], strides = [1, 1]} : vector<16x128xf32> to vector<16x1xf32>
    %138 = vector.extract_strided_slice %24 {offsets = [0, 2688], sizes = [16, 128], strides = [1, 1]} : vector<16x4096xf32> to vector<16x128xf32>
    %139 = vector.broadcast %137 : vector<16x1xf32> to vector<16x128xf32>
    %140 = arith.mulf %139, %138 : vector<16x128xf32>
    %141 = arith.addf %136, %140 : vector<16x128xf32>
    %142 = vector.extract_strided_slice %32 {offsets = [0, 22], sizes = [16, 1], strides = [1, 1]} : vector<16x128xf32> to vector<16x1xf32>
    %143 = vector.extract_strided_slice %24 {offsets = [0, 2816], sizes = [16, 128], strides = [1, 1]} : vector<16x4096xf32> to vector<16x128xf32>
    %144 = vector.broadcast %142 : vector<16x1xf32> to vector<16x128xf32>
    %145 = arith.mulf %144, %143 : vector<16x128xf32>
    %146 = arith.addf %141, %145 : vector<16x128xf32>
    %147 = vector.extract_strided_slice %32 {offsets = [0, 23], sizes = [16, 1], strides = [1, 1]} : vector<16x128xf32> to vector<16x1xf32>
    %148 = vector.extract_strided_slice %24 {offsets = [0, 2944], sizes = [16, 128], strides = [1, 1]} : vector<16x4096xf32> to vector<16x128xf32>
    %149 = vector.broadcast %147 : vector<16x1xf32> to vector<16x128xf32>
    %150 = arith.mulf %149, %148 : vector<16x128xf32>
    %151 = arith.addf %146, %150 : vector<16x128xf32>
    %152 = vector.extract_strided_slice %32 {offsets = [0, 24], sizes = [16, 1], strides = [1, 1]} : vector<16x128xf32> to vector<16x1xf32>
    %153 = vector.extract_strided_slice %24 {offsets = [0, 3072], sizes = [16, 128], strides = [1, 1]} : vector<16x4096xf32> to vector<16x128xf32>
    %154 = vector.broadcast %152 : vector<16x1xf32> to vector<16x128xf32>
    %155 = arith.mulf %154, %153 : vector<16x128xf32>
    %156 = arith.addf %151, %155 : vector<16x128xf32>
    %157 = vector.extract_strided_slice %32 {offsets = [0, 25], sizes = [16, 1], strides = [1, 1]} : vector<16x128xf32> to vector<16x1xf32>
    %158 = vector.extract_strided_slice %24 {offsets = [0, 3200], sizes = [16, 128], strides = [1, 1]} : vector<16x4096xf32> to vector<16x128xf32>
    %159 = vector.broadcast %157 : vector<16x1xf32> to vector<16x128xf32>
    %160 = arith.mulf %159, %158 : vector<16x128xf32>
    %161 = arith.addf %156, %160 : vector<16x128xf32>
    %162 = vector.extract_strided_slice %32 {offsets = [0, 26], sizes = [16, 1], strides = [1, 1]} : vector<16x128xf32> to vector<16x1xf32>
    %163 = vector.extract_strided_slice %24 {offsets = [0, 3328], sizes = [16, 128], strides = [1, 1]} : vector<16x4096xf32> to vector<16x128xf32>
    %164 = vector.broadcast %162 : vector<16x1xf32> to vector<16x128xf32>
    %165 = arith.mulf %164, %163 : vector<16x128xf32>
    %166 = arith.addf %161, %165 : vector<16x128xf32>
    %167 = vector.extract_strided_slice %32 {offsets = [0, 27], sizes = [16, 1], strides = [1, 1]} : vector<16x128xf32> to vector<16x1xf32>
    %168 = vector.extract_strided_slice %24 {offsets = [0, 3456], sizes = [16, 128], strides = [1, 1]} : vector<16x4096xf32> to vector<16x128xf32>
    %169 = vector.broadcast %167 : vector<16x1xf32> to vector<16x128xf32>
    %170 = arith.mulf %169, %168 : vector<16x128xf32>
    %171 = arith.addf %166, %170 : vector<16x128xf32>
    %172 = vector.extract_strided_slice %32 {offsets = [0, 28], sizes = [16, 1], strides = [1, 1]} : vector<16x128xf32> to vector<16x1xf32>
    %173 = vector.extract_strided_slice %24 {offsets = [0, 3584], sizes = [16, 128], strides = [1, 1]} : vector<16x4096xf32> to vector<16x128xf32>
    %174 = vector.broadcast %172 : vector<16x1xf32> to vector<16x128xf32>
    %175 = arith.mulf %174, %173 : vector<16x128xf32>
    %176 = arith.addf %171, %175 : vector<16x128xf32>
    %177 = vector.extract_strided_slice %32 {offsets = [0, 29], sizes = [16, 1], strides = [1, 1]} : vector<16x128xf32> to vector<16x1xf32>
    %178 = vector.extract_strided_slice %24 {offsets = [0, 3712], sizes = [16, 128], strides = [1, 1]} : vector<16x4096xf32> to vector<16x128xf32>
    %179 = vector.broadcast %177 : vector<16x1xf32> to vector<16x128xf32>
    %180 = arith.mulf %179, %178 : vector<16x128xf32>
    %181 = arith.addf %176, %180 : vector<16x128xf32>
    %182 = vector.extract_strided_slice %32 {offsets = [0, 30], sizes = [16, 1], strides = [1, 1]} : vector<16x128xf32> to vector<16x1xf32>
    %183 = vector.extract_strided_slice %24 {offsets = [0, 3840], sizes = [16, 128], strides = [1, 1]} : vector<16x4096xf32> to vector<16x128xf32>
    %184 = vector.broadcast %182 : vector<16x1xf32> to vector<16x128xf32>
    %185 = arith.mulf %184, %183 : vector<16x128xf32>
    %186 = arith.addf %181, %185 : vector<16x128xf32>
    %187 = vector.extract_strided_slice %32 {offsets = [0, 31], sizes = [16, 1], strides = [1, 1]} : vector<16x128xf32> to vector<16x1xf32>
    %188 = vector.extract_strided_slice %24 {offsets = [0, 3968], sizes = [16, 128], strides = [1, 1]} : vector<16x4096xf32> to vector<16x128xf32>
    %189 = vector.broadcast %187 : vector<16x1xf32> to vector<16x128xf32>
    %190 = arith.mulf %189, %188 : vector<16x128xf32>
    %191 = arith.addf %186, %190 : vector<16x128xf32>
    %cst_26 = arith.constant dense<0.000000e+00> : vector<8x128xf32>
    %192 = tpu.matmul %11, %191, %cst_26 {dimension_numbers = #tpu.dot_dimension_numbers<[1], [0], [0], [1], [0, 0, 1, 1], [], []>} : vector<8x16xf32>, vector<16x128xf32>, vector<8x128xf32> -> vector<8x128xf32>
    %193 = vector.broadcast %2 : vector<1x128xf32> to vector<8x128xf32>
    %194 = arith.addf %192, %193 : vector<8x128xf32>
    %cst_27 = arith.constant 0.000000e+00 : f32
    %195 = vector.broadcast %cst_27 : f32 to vector<8x128xf32>
    %196 = arith.maximumf %194, %195 : vector<8x128xf32>
    %cst_28 = arith.constant dense<0.000000e+00> : vector<16x128xf32>
    %197 = tpu.matmul %7, %196, %cst_28 {dimension_numbers = #tpu.dot_dimension_numbers<[1], [0], [0], [1], [0, 0, 1, 1], [], []>} : vector<16x8xf32>, vector<8x128xf32>, vector<16x128xf32> -> vector<16x128xf32>
    %198 = vector.extract_strided_slice %197 {offsets = [0, 0], sizes = [16, 1], strides = [1, 1]} : vector<16x128xf32> to vector<16x1xf32>
    %199 = vector.extract_strided_slice %24 {offsets = [0, 0], sizes = [16, 128], strides = [1, 1]} : vector<16x4096xf32> to vector<16x128xf32>
    %200 = vector.broadcast %198 : vector<16x1xf32> to vector<16x128xf32>
    %201 = arith.mulf %200, %199 : vector<16x128xf32>
    %202 = vector.extract_strided_slice %197 {offsets = [0, 1], sizes = [16, 1], strides = [1, 1]} : vector<16x128xf32> to vector<16x1xf32>
    %203 = vector.extract_strided_slice %24 {offsets = [0, 128], sizes = [16, 128], strides = [1, 1]} : vector<16x4096xf32> to vector<16x128xf32>
    %204 = vector.broadcast %202 : vector<16x1xf32> to vector<16x128xf32>
    %205 = arith.mulf %204, %203 : vector<16x128xf32>
    %206 = arith.addf %201, %205 : vector<16x128xf32>
    %207 = vector.extract_strided_slice %197 {offsets = [0, 2], sizes = [16, 1], strides = [1, 1]} : vector<16x128xf32> to vector<16x1xf32>
    %208 = vector.extract_strided_slice %24 {offsets = [0, 256], sizes = [16, 128], strides = [1, 1]} : vector<16x4096xf32> to vector<16x128xf32>
    %209 = vector.broadcast %207 : vector<16x1xf32> to vector<16x128xf32>
    %210 = arith.mulf %209, %208 : vector<16x128xf32>
    %211 = arith.addf %206, %210 : vector<16x128xf32>
    %212 = vector.extract_strided_slice %197 {offsets = [0, 3], sizes = [16, 1], strides = [1, 1]} : vector<16x128xf32> to vector<16x1xf32>
    %213 = vector.extract_strided_slice %24 {offsets = [0, 384], sizes = [16, 128], strides = [1, 1]} : vector<16x4096xf32> to vector<16x128xf32>
    %214 = vector.broadcast %212 : vector<16x1xf32> to vector<16x128xf32>
    %215 = arith.mulf %214, %213 : vector<16x128xf32>
    %216 = arith.addf %211, %215 : vector<16x128xf32>
    %217 = vector.extract_strided_slice %197 {offsets = [0, 4], sizes = [16, 1], strides = [1, 1]} : vector<16x128xf32> to vector<16x1xf32>
    %218 = vector.extract_strided_slice %24 {offsets = [0, 512], sizes = [16, 128], strides = [1, 1]} : vector<16x4096xf32> to vector<16x128xf32>
    %219 = vector.broadcast %217 : vector<16x1xf32> to vector<16x128xf32>
    %220 = arith.mulf %219, %218 : vector<16x128xf32>
    %221 = arith.addf %216, %220 : vector<16x128xf32>
    %222 = vector.extract_strided_slice %197 {offsets = [0, 5], sizes = [16, 1], strides = [1, 1]} : vector<16x128xf32> to vector<16x1xf32>
    %223 = vector.extract_strided_slice %24 {offsets = [0, 640], sizes = [16, 128], strides = [1, 1]} : vector<16x4096xf32> to vector<16x128xf32>
    %224 = vector.broadcast %222 : vector<16x1xf32> to vector<16x128xf32>
    %225 = arith.mulf %224, %223 : vector<16x128xf32>
    %226 = arith.addf %221, %225 : vector<16x128xf32>
    %227 = vector.extract_strided_slice %197 {offsets = [0, 6], sizes = [16, 1], strides = [1, 1]} : vector<16x128xf32> to vector<16x1xf32>
    %228 = vector.extract_strided_slice %24 {offsets = [0, 768], sizes = [16, 128], strides = [1, 1]} : vector<16x4096xf32> to vector<16x128xf32>
    %229 = vector.broadcast %227 : vector<16x1xf32> to vector<16x128xf32>
    %230 = arith.mulf %229, %228 : vector<16x128xf32>
    %231 = arith.addf %226, %230 : vector<16x128xf32>
    %232 = vector.extract_strided_slice %197 {offsets = [0, 7], sizes = [16, 1], strides = [1, 1]} : vector<16x128xf32> to vector<16x1xf32>
    %233 = vector.extract_strided_slice %24 {offsets = [0, 896], sizes = [16, 128], strides = [1, 1]} : vector<16x4096xf32> to vector<16x128xf32>
    %234 = vector.broadcast %232 : vector<16x1xf32> to vector<16x128xf32>
    %235 = arith.mulf %234, %233 : vector<16x128xf32>
    %236 = arith.addf %231, %235 : vector<16x128xf32>
    %237 = vector.extract_strided_slice %197 {offsets = [0, 8], sizes = [16, 1], strides = [1, 1]} : vector<16x128xf32> to vector<16x1xf32>
    %238 = vector.extract_strided_slice %24 {offsets = [0, 1024], sizes = [16, 128], strides = [1, 1]} : vector<16x4096xf32> to vector<16x128xf32>
    %239 = vector.broadcast %237 : vector<16x1xf32> to vector<16x128xf32>
    %240 = arith.mulf %239, %238 : vector<16x128xf32>
    %241 = arith.addf %236, %240 : vector<16x128xf32>
    %242 = vector.extract_strided_slice %197 {offsets = [0, 9], sizes = [16, 1], strides = [1, 1]} : vector<16x128xf32> to vector<16x1xf32>
    %243 = vector.extract_strided_slice %24 {offsets = [0, 1152], sizes = [16, 128], strides = [1, 1]} : vector<16x4096xf32> to vector<16x128xf32>
    %244 = vector.broadcast %242 : vector<16x1xf32> to vector<16x128xf32>
    %245 = arith.mulf %244, %243 : vector<16x128xf32>
    %246 = arith.addf %241, %245 : vector<16x128xf32>
    %247 = vector.extract_strided_slice %197 {offsets = [0, 10], sizes = [16, 1], strides = [1, 1]} : vector<16x128xf32> to vector<16x1xf32>
    %248 = vector.extract_strided_slice %24 {offsets = [0, 1280], sizes = [16, 128], strides = [1, 1]} : vector<16x4096xf32> to vector<16x128xf32>
    %249 = vector.broadcast %247 : vector<16x1xf32> to vector<16x128xf32>
    %250 = arith.mulf %249, %248 : vector<16x128xf32>
    %251 = arith.addf %246, %250 : vector<16x128xf32>
    %252 = vector.extract_strided_slice %197 {offsets = [0, 11], sizes = [16, 1], strides = [1, 1]} : vector<16x128xf32> to vector<16x1xf32>
    %253 = vector.extract_strided_slice %24 {offsets = [0, 1408], sizes = [16, 128], strides = [1, 1]} : vector<16x4096xf32> to vector<16x128xf32>
    %254 = vector.broadcast %252 : vector<16x1xf32> to vector<16x128xf32>
    %255 = arith.mulf %254, %253 : vector<16x128xf32>
    %256 = arith.addf %251, %255 : vector<16x128xf32>
    %257 = vector.extract_strided_slice %197 {offsets = [0, 12], sizes = [16, 1], strides = [1, 1]} : vector<16x128xf32> to vector<16x1xf32>
    %258 = vector.extract_strided_slice %24 {offsets = [0, 1536], sizes = [16, 128], strides = [1, 1]} : vector<16x4096xf32> to vector<16x128xf32>
    %259 = vector.broadcast %257 : vector<16x1xf32> to vector<16x128xf32>
    %260 = arith.mulf %259, %258 : vector<16x128xf32>
    %261 = arith.addf %256, %260 : vector<16x128xf32>
    %262 = vector.extract_strided_slice %197 {offsets = [0, 13], sizes = [16, 1], strides = [1, 1]} : vector<16x128xf32> to vector<16x1xf32>
    %263 = vector.extract_strided_slice %24 {offsets = [0, 1664], sizes = [16, 128], strides = [1, 1]} : vector<16x4096xf32> to vector<16x128xf32>
    %264 = vector.broadcast %262 : vector<16x1xf32> to vector<16x128xf32>
    %265 = arith.mulf %264, %263 : vector<16x128xf32>
    %266 = arith.addf %261, %265 : vector<16x128xf32>
    %267 = vector.extract_strided_slice %197 {offsets = [0, 14], sizes = [16, 1], strides = [1, 1]} : vector<16x128xf32> to vector<16x1xf32>
    %268 = vector.extract_strided_slice %24 {offsets = [0, 1792], sizes = [16, 128], strides = [1, 1]} : vector<16x4096xf32> to vector<16x128xf32>
    %269 = vector.broadcast %267 : vector<16x1xf32> to vector<16x128xf32>
    %270 = arith.mulf %269, %268 : vector<16x128xf32>
    %271 = arith.addf %266, %270 : vector<16x128xf32>
    %272 = vector.extract_strided_slice %197 {offsets = [0, 15], sizes = [16, 1], strides = [1, 1]} : vector<16x128xf32> to vector<16x1xf32>
    %273 = vector.extract_strided_slice %24 {offsets = [0, 1920], sizes = [16, 128], strides = [1, 1]} : vector<16x4096xf32> to vector<16x128xf32>
    %274 = vector.broadcast %272 : vector<16x1xf32> to vector<16x128xf32>
    %275 = arith.mulf %274, %273 : vector<16x128xf32>
    %276 = arith.addf %271, %275 : vector<16x128xf32>
    %277 = vector.extract_strided_slice %197 {offsets = [0, 16], sizes = [16, 1], strides = [1, 1]} : vector<16x128xf32> to vector<16x1xf32>
    %278 = vector.extract_strided_slice %24 {offsets = [0, 2048], sizes = [16, 128], strides = [1, 1]} : vector<16x4096xf32> to vector<16x128xf32>
    %279 = vector.broadcast %277 : vector<16x1xf32> to vector<16x128xf32>
    %280 = arith.mulf %279, %278 : vector<16x128xf32>
    %281 = arith.addf %276, %280 : vector<16x128xf32>
    %282 = vector.extract_strided_slice %197 {offsets = [0, 17], sizes = [16, 1], strides = [1, 1]} : vector<16x128xf32> to vector<16x1xf32>
    %283 = vector.extract_strided_slice %24 {offsets = [0, 2176], sizes = [16, 128], strides = [1, 1]} : vector<16x4096xf32> to vector<16x128xf32>
    %284 = vector.broadcast %282 : vector<16x1xf32> to vector<16x128xf32>
    %285 = arith.mulf %284, %283 : vector<16x128xf32>
    %286 = arith.addf %281, %285 : vector<16x128xf32>
    %287 = vector.extract_strided_slice %197 {offsets = [0, 18], sizes = [16, 1], strides = [1, 1]} : vector<16x128xf32> to vector<16x1xf32>
    %288 = vector.extract_strided_slice %24 {offsets = [0, 2304], sizes = [16, 128], strides = [1, 1]} : vector<16x4096xf32> to vector<16x128xf32>
    %289 = vector.broadcast %287 : vector<16x1xf32> to vector<16x128xf32>
    %290 = arith.mulf %289, %288 : vector<16x128xf32>
    %291 = arith.addf %286, %290 : vector<16x128xf32>
    %292 = vector.extract_strided_slice %197 {offsets = [0, 19], sizes = [16, 1], strides = [1, 1]} : vector<16x128xf32> to vector<16x1xf32>
    %293 = vector.extract_strided_slice %24 {offsets = [0, 2432], sizes = [16, 128], strides = [1, 1]} : vector<16x4096xf32> to vector<16x128xf32>
    %294 = vector.broadcast %292 : vector<16x1xf32> to vector<16x128xf32>
    %295 = arith.mulf %294, %293 : vector<16x128xf32>
    %296 = arith.addf %291, %295 : vector<16x128xf32>
    %297 = vector.extract_strided_slice %197 {offsets = [0, 20], sizes = [16, 1], strides = [1, 1]} : vector<16x128xf32> to vector<16x1xf32>
    %298 = vector.extract_strided_slice %24 {offsets = [0, 2560], sizes = [16, 128], strides = [1, 1]} : vector<16x4096xf32> to vector<16x128xf32>
    %299 = vector.broadcast %297 : vector<16x1xf32> to vector<16x128xf32>
    %300 = arith.mulf %299, %298 : vector<16x128xf32>
    %301 = arith.addf %296, %300 : vector<16x128xf32>
    %302 = vector.extract_strided_slice %197 {offsets = [0, 21], sizes = [16, 1], strides = [1, 1]} : vector<16x128xf32> to vector<16x1xf32>
    %303 = vector.extract_strided_slice %24 {offsets = [0, 2688], sizes = [16, 128], strides = [1, 1]} : vector<16x4096xf32> to vector<16x128xf32>
    %304 = vector.broadcast %302 : vector<16x1xf32> to vector<16x128xf32>
    %305 = arith.mulf %304, %303 : vector<16x128xf32>
    %306 = arith.addf %301, %305 : vector<16x128xf32>
    %307 = vector.extract_strided_slice %197 {offsets = [0, 22], sizes = [16, 1], strides = [1, 1]} : vector<16x128xf32> to vector<16x1xf32>
    %308 = vector.extract_strided_slice %24 {offsets = [0, 2816], sizes = [16, 128], strides = [1, 1]} : vector<16x4096xf32> to vector<16x128xf32>
    %309 = vector.broadcast %307 : vector<16x1xf32> to vector<16x128xf32>
    %310 = arith.mulf %309, %308 : vector<16x128xf32>
    %311 = arith.addf %306, %310 : vector<16x128xf32>
    %312 = vector.extract_strided_slice %197 {offsets = [0, 23], sizes = [16, 1], strides = [1, 1]} : vector<16x128xf32> to vector<16x1xf32>
    %313 = vector.extract_strided_slice %24 {offsets = [0, 2944], sizes = [16, 128], strides = [1, 1]} : vector<16x4096xf32> to vector<16x128xf32>
    %314 = vector.broadcast %312 : vector<16x1xf32> to vector<16x128xf32>
    %315 = arith.mulf %314, %313 : vector<16x128xf32>
    %316 = arith.addf %311, %315 : vector<16x128xf32>
    %317 = vector.extract_strided_slice %197 {offsets = [0, 24], sizes = [16, 1], strides = [1, 1]} : vector<16x128xf32> to vector<16x1xf32>
    %318 = vector.extract_strided_slice %24 {offsets = [0, 3072], sizes = [16, 128], strides = [1, 1]} : vector<16x4096xf32> to vector<16x128xf32>
    %319 = vector.broadcast %317 : vector<16x1xf32> to vector<16x128xf32>
    %320 = arith.mulf %319, %318 : vector<16x128xf32>
    %321 = arith.addf %316, %320 : vector<16x128xf32>
    %322 = vector.extract_strided_slice %197 {offsets = [0, 25], sizes = [16, 1], strides = [1, 1]} : vector<16x128xf32> to vector<16x1xf32>
    %323 = vector.extract_strided_slice %24 {offsets = [0, 3200], sizes = [16, 128], strides = [1, 1]} : vector<16x4096xf32> to vector<16x128xf32>
    %324 = vector.broadcast %322 : vector<16x1xf32> to vector<16x128xf32>
    %325 = arith.mulf %324, %323 : vector<16x128xf32>
    %326 = arith.addf %321, %325 : vector<16x128xf32>
    %327 = vector.extract_strided_slice %197 {offsets = [0, 26], sizes = [16, 1], strides = [1, 1]} : vector<16x128xf32> to vector<16x1xf32>
    %328 = vector.extract_strided_slice %24 {offsets = [0, 3328], sizes = [16, 128], strides = [1, 1]} : vector<16x4096xf32> to vector<16x128xf32>
    %329 = vector.broadcast %327 : vector<16x1xf32> to vector<16x128xf32>
    %330 = arith.mulf %329, %328 : vector<16x128xf32>
    %331 = arith.addf %326, %330 : vector<16x128xf32>
    %332 = vector.extract_strided_slice %197 {offsets = [0, 27], sizes = [16, 1], strides = [1, 1]} : vector<16x128xf32> to vector<16x1xf32>
    %333 = vector.extract_strided_slice %24 {offsets = [0, 3456], sizes = [16, 128], strides = [1, 1]} : vector<16x4096xf32> to vector<16x128xf32>
    %334 = vector.broadcast %332 : vector<16x1xf32> to vector<16x128xf32>
    %335 = arith.mulf %334, %333 : vector<16x128xf32>
    %336 = arith.addf %331, %335 : vector<16x128xf32>
    %337 = vector.extract_strided_slice %197 {offsets = [0, 28], sizes = [16, 1], strides = [1, 1]} : vector<16x128xf32> to vector<16x1xf32>
    %338 = vector.extract_strided_slice %24 {offsets = [0, 3584], sizes = [16, 128], strides = [1, 1]} : vector<16x4096xf32> to vector<16x128xf32>
    %339 = vector.broadcast %337 : vector<16x1xf32> to vector<16x128xf32>
    %340 = arith.mulf %339, %338 : vector<16x128xf32>
    %341 = arith.addf %336, %340 : vector<16x128xf32>
    %342 = vector.extract_strided_slice %197 {offsets = [0, 29], sizes = [16, 1], strides = [1, 1]} : vector<16x128xf32> to vector<16x1xf32>
    %343 = vector.extract_strided_slice %24 {offsets = [0, 3712], sizes = [16, 128], strides = [1, 1]} : vector<16x4096xf32> to vector<16x128xf32>
    %344 = vector.broadcast %342 : vector<16x1xf32> to vector<16x128xf32>
    %345 = arith.mulf %344, %343 : vector<16x128xf32>
    %346 = arith.addf %341, %345 : vector<16x128xf32>
    %347 = vector.extract_strided_slice %197 {offsets = [0, 30], sizes = [16, 1], strides = [1, 1]} : vector<16x128xf32> to vector<16x1xf32>
    %348 = vector.extract_strided_slice %24 {offsets = [0, 3840], sizes = [16, 128], strides = [1, 1]} : vector<16x4096xf32> to vector<16x128xf32>
    %349 = vector.broadcast %347 : vector<16x1xf32> to vector<16x128xf32>
    %350 = arith.mulf %349, %348 : vector<16x128xf32>
    %351 = arith.addf %346, %350 : vector<16x128xf32>
    %352 = vector.extract_strided_slice %197 {offsets = [0, 31], sizes = [16, 1], strides = [1, 1]} : vector<16x128xf32> to vector<16x1xf32>
    %353 = vector.extract_strided_slice %24 {offsets = [0, 3968], sizes = [16, 128], strides = [1, 1]} : vector<16x4096xf32> to vector<16x128xf32>
    %354 = vector.broadcast %352 : vector<16x1xf32> to vector<16x128xf32>
    %355 = arith.mulf %354, %353 : vector<16x128xf32>
    %356 = arith.addf %351, %355 : vector<16x128xf32>
    %cst_29 = arith.constant dense<0.000000e+00> : vector<8x128xf32>
    %357 = tpu.matmul %11, %356, %cst_29 {dimension_numbers = #tpu.dot_dimension_numbers<[1], [0], [0], [1], [0, 0, 1, 1], [], []>} : vector<8x16xf32>, vector<16x128xf32>, vector<8x128xf32> -> vector<8x128xf32>
    %358 = vector.broadcast %2 : vector<1x128xf32> to vector<8x128xf32>
    %359 = arith.addf %357, %358 : vector<8x128xf32>
    %cst_30 = arith.constant 0.000000e+00 : f32
    %360 = vector.broadcast %cst_30 : f32 to vector<8x128xf32>
    %361 = arith.maximumf %359, %360 : vector<8x128xf32>
    %cst_31 = arith.constant dense<0.000000e+00> : vector<16x128xf32>
    %362 = tpu.matmul %7, %361, %cst_31 {dimension_numbers = #tpu.dot_dimension_numbers<[1], [0], [0], [1], [0, 0, 1, 1], [], []>} : vector<16x8xf32>, vector<8x128xf32>, vector<16x128xf32> -> vector<16x128xf32>
    %363 = vector.extract_strided_slice %362 {offsets = [0, 0], sizes = [16, 1], strides = [1, 1]} : vector<16x128xf32> to vector<16x1xf32>
    %364 = vector.extract_strided_slice %24 {offsets = [0, 0], sizes = [16, 128], strides = [1, 1]} : vector<16x4096xf32> to vector<16x128xf32>
    %365 = vector.broadcast %363 : vector<16x1xf32> to vector<16x128xf32>
    %366 = arith.mulf %365, %364 : vector<16x128xf32>
    %367 = vector.extract_strided_slice %362 {offsets = [0, 1], sizes = [16, 1], strides = [1, 1]} : vector<16x128xf32> to vector<16x1xf32>
    %368 = vector.extract_strided_slice %24 {offsets = [0, 128], sizes = [16, 128], strides = [1, 1]} : vector<16x4096xf32> to vector<16x128xf32>
    %369 = vector.broadcast %367 : vector<16x1xf32> to vector<16x128xf32>
    %370 = arith.mulf %369, %368 : vector<16x128xf32>
    %371 = arith.addf %366, %370 : vector<16x128xf32>
    %372 = vector.extract_strided_slice %362 {offsets = [0, 2], sizes = [16, 1], strides = [1, 1]} : vector<16x128xf32> to vector<16x1xf32>
    %373 = vector.extract_strided_slice %24 {offsets = [0, 256], sizes = [16, 128], strides = [1, 1]} : vector<16x4096xf32> to vector<16x128xf32>
    %374 = vector.broadcast %372 : vector<16x1xf32> to vector<16x128xf32>
    %375 = arith.mulf %374, %373 : vector<16x128xf32>
    %376 = arith.addf %371, %375 : vector<16x128xf32>
    %377 = vector.extract_strided_slice %362 {offsets = [0, 3], sizes = [16, 1], strides = [1, 1]} : vector<16x128xf32> to vector<16x1xf32>
    %378 = vector.extract_strided_slice %24 {offsets = [0, 384], sizes = [16, 128], strides = [1, 1]} : vector<16x4096xf32> to vector<16x128xf32>
    %379 = vector.broadcast %377 : vector<16x1xf32> to vector<16x128xf32>
    %380 = arith.mulf %379, %378 : vector<16x128xf32>
    %381 = arith.addf %376, %380 : vector<16x128xf32>
    %382 = vector.extract_strided_slice %362 {offsets = [0, 4], sizes = [16, 1], strides = [1, 1]} : vector<16x128xf32> to vector<16x1xf32>
    %383 = vector.extract_strided_slice %24 {offsets = [0, 512], sizes = [16, 128], strides = [1, 1]} : vector<16x4096xf32> to vector<16x128xf32>
    %384 = vector.broadcast %382 : vector<16x1xf32> to vector<16x128xf32>
    %385 = arith.mulf %384, %383 : vector<16x128xf32>
    %386 = arith.addf %381, %385 : vector<16x128xf32>
    %387 = vector.extract_strided_slice %362 {offsets = [0, 5], sizes = [16, 1], strides = [1, 1]} : vector<16x128xf32> to vector<16x1xf32>
    %388 = vector.extract_strided_slice %24 {offsets = [0, 640], sizes = [16, 128], strides = [1, 1]} : vector<16x4096xf32> to vector<16x128xf32>
    %389 = vector.broadcast %387 : vector<16x1xf32> to vector<16x128xf32>
    %390 = arith.mulf %389, %388 : vector<16x128xf32>
    %391 = arith.addf %386, %390 : vector<16x128xf32>
    %392 = vector.extract_strided_slice %362 {offsets = [0, 6], sizes = [16, 1], strides = [1, 1]} : vector<16x128xf32> to vector<16x1xf32>
    %393 = vector.extract_strided_slice %24 {offsets = [0, 768], sizes = [16, 128], strides = [1, 1]} : vector<16x4096xf32> to vector<16x128xf32>
    %394 = vector.broadcast %392 : vector<16x1xf32> to vector<16x128xf32>
    %395 = arith.mulf %394, %393 : vector<16x128xf32>
    %396 = arith.addf %391, %395 : vector<16x128xf32>
    %397 = vector.extract_strided_slice %362 {offsets = [0, 7], sizes = [16, 1], strides = [1, 1]} : vector<16x128xf32> to vector<16x1xf32>
    %398 = vector.extract_strided_slice %24 {offsets = [0, 896], sizes = [16, 128], strides = [1, 1]} : vector<16x4096xf32> to vector<16x128xf32>
    %399 = vector.broadcast %397 : vector<16x1xf32> to vector<16x128xf32>
    %400 = arith.mulf %399, %398 : vector<16x128xf32>
    %401 = arith.addf %396, %400 : vector<16x128xf32>
    %402 = vector.extract_strided_slice %362 {offsets = [0, 8], sizes = [16, 1], strides = [1, 1]} : vector<16x128xf32> to vector<16x1xf32>
    %403 = vector.extract_strided_slice %24 {offsets = [0, 1024], sizes = [16, 128], strides = [1, 1]} : vector<16x4096xf32> to vector<16x128xf32>
    %404 = vector.broadcast %402 : vector<16x1xf32> to vector<16x128xf32>
    %405 = arith.mulf %404, %403 : vector<16x128xf32>
    %406 = arith.addf %401, %405 : vector<16x128xf32>
    %407 = vector.extract_strided_slice %362 {offsets = [0, 9], sizes = [16, 1], strides = [1, 1]} : vector<16x128xf32> to vector<16x1xf32>
    %408 = vector.extract_strided_slice %24 {offsets = [0, 1152], sizes = [16, 128], strides = [1, 1]} : vector<16x4096xf32> to vector<16x128xf32>
    %409 = vector.broadcast %407 : vector<16x1xf32> to vector<16x128xf32>
    %410 = arith.mulf %409, %408 : vector<16x128xf32>
    %411 = arith.addf %406, %410 : vector<16x128xf32>
    %412 = vector.extract_strided_slice %362 {offsets = [0, 10], sizes = [16, 1], strides = [1, 1]} : vector<16x128xf32> to vector<16x1xf32>
    %413 = vector.extract_strided_slice %24 {offsets = [0, 1280], sizes = [16, 128], strides = [1, 1]} : vector<16x4096xf32> to vector<16x128xf32>
    %414 = vector.broadcast %412 : vector<16x1xf32> to vector<16x128xf32>
    %415 = arith.mulf %414, %413 : vector<16x128xf32>
    %416 = arith.addf %411, %415 : vector<16x128xf32>
    %417 = vector.extract_strided_slice %362 {offsets = [0, 11], sizes = [16, 1], strides = [1, 1]} : vector<16x128xf32> to vector<16x1xf32>
    %418 = vector.extract_strided_slice %24 {offsets = [0, 1408], sizes = [16, 128], strides = [1, 1]} : vector<16x4096xf32> to vector<16x128xf32>
    %419 = vector.broadcast %417 : vector<16x1xf32> to vector<16x128xf32>
    %420 = arith.mulf %419, %418 : vector<16x128xf32>
    %421 = arith.addf %416, %420 : vector<16x128xf32>
    %422 = vector.extract_strided_slice %362 {offsets = [0, 12], sizes = [16, 1], strides = [1, 1]} : vector<16x128xf32> to vector<16x1xf32>
    %423 = vector.extract_strided_slice %24 {offsets = [0, 1536], sizes = [16, 128], strides = [1, 1]} : vector<16x4096xf32> to vector<16x128xf32>
    %424 = vector.broadcast %422 : vector<16x1xf32> to vector<16x128xf32>
    %425 = arith.mulf %424, %423 : vector<16x128xf32>
    %426 = arith.addf %421, %425 : vector<16x128xf32>
    %427 = vector.extract_strided_slice %362 {offsets = [0, 13], sizes = [16, 1], strides = [1, 1]} : vector<16x128xf32> to vector<16x1xf32>
    %428 = vector.extract_strided_slice %24 {offsets = [0, 1664], sizes = [16, 128], strides = [1, 1]} : vector<16x4096xf32> to vector<16x128xf32>
    %429 = vector.broadcast %427 : vector<16x1xf32> to vector<16x128xf32>
    %430 = arith.mulf %429, %428 : vector<16x128xf32>
    %431 = arith.addf %426, %430 : vector<16x128xf32>
    %432 = vector.extract_strided_slice %362 {offsets = [0, 14], sizes = [16, 1], strides = [1, 1]} : vector<16x128xf32> to vector<16x1xf32>
    %433 = vector.extract_strided_slice %24 {offsets = [0, 1792], sizes = [16, 128], strides = [1, 1]} : vector<16x4096xf32> to vector<16x128xf32>
    %434 = vector.broadcast %432 : vector<16x1xf32> to vector<16x128xf32>
    %435 = arith.mulf %434, %433 : vector<16x128xf32>
    %436 = arith.addf %431, %435 : vector<16x128xf32>
    %437 = vector.extract_strided_slice %362 {offsets = [0, 15], sizes = [16, 1], strides = [1, 1]} : vector<16x128xf32> to vector<16x1xf32>
    %438 = vector.extract_strided_slice %24 {offsets = [0, 1920], sizes = [16, 128], strides = [1, 1]} : vector<16x4096xf32> to vector<16x128xf32>
    %439 = vector.broadcast %437 : vector<16x1xf32> to vector<16x128xf32>
    %440 = arith.mulf %439, %438 : vector<16x128xf32>
    %441 = arith.addf %436, %440 : vector<16x128xf32>
    %442 = vector.extract_strided_slice %362 {offsets = [0, 16], sizes = [16, 1], strides = [1, 1]} : vector<16x128xf32> to vector<16x1xf32>
    %443 = vector.extract_strided_slice %24 {offsets = [0, 2048], sizes = [16, 128], strides = [1, 1]} : vector<16x4096xf32> to vector<16x128xf32>
    %444 = vector.broadcast %442 : vector<16x1xf32> to vector<16x128xf32>
    %445 = arith.mulf %444, %443 : vector<16x128xf32>
    %446 = arith.addf %441, %445 : vector<16x128xf32>
    %447 = vector.extract_strided_slice %362 {offsets = [0, 17], sizes = [16, 1], strides = [1, 1]} : vector<16x128xf32> to vector<16x1xf32>
    %448 = vector.extract_strided_slice %24 {offsets = [0, 2176], sizes = [16, 128], strides = [1, 1]} : vector<16x4096xf32> to vector<16x128xf32>
    %449 = vector.broadcast %447 : vector<16x1xf32> to vector<16x128xf32>
    %450 = arith.mulf %449, %448 : vector<16x128xf32>
    %451 = arith.addf %446, %450 : vector<16x128xf32>
    %452 = vector.extract_strided_slice %362 {offsets = [0, 18], sizes = [16, 1], strides = [1, 1]} : vector<16x128xf32> to vector<16x1xf32>
    %453 = vector.extract_strided_slice %24 {offsets = [0, 2304], sizes = [16, 128], strides = [1, 1]} : vector<16x4096xf32> to vector<16x128xf32>
    %454 = vector.broadcast %452 : vector<16x1xf32> to vector<16x128xf32>
    %455 = arith.mulf %454, %453 : vector<16x128xf32>
    %456 = arith.addf %451, %455 : vector<16x128xf32>
    %457 = vector.extract_strided_slice %362 {offsets = [0, 19], sizes = [16, 1], strides = [1, 1]} : vector<16x128xf32> to vector<16x1xf32>
    %458 = vector.extract_strided_slice %24 {offsets = [0, 2432], sizes = [16, 128], strides = [1, 1]} : vector<16x4096xf32> to vector<16x128xf32>
    %459 = vector.broadcast %457 : vector<16x1xf32> to vector<16x128xf32>
    %460 = arith.mulf %459, %458 : vector<16x128xf32>
    %461 = arith.addf %456, %460 : vector<16x128xf32>
    %462 = vector.extract_strided_slice %362 {offsets = [0, 20], sizes = [16, 1], strides = [1, 1]} : vector<16x128xf32> to vector<16x1xf32>
    %463 = vector.extract_strided_slice %24 {offsets = [0, 2560], sizes = [16, 128], strides = [1, 1]} : vector<16x4096xf32> to vector<16x128xf32>
    %464 = vector.broadcast %462 : vector<16x1xf32> to vector<16x128xf32>
    %465 = arith.mulf %464, %463 : vector<16x128xf32>
    %466 = arith.addf %461, %465 : vector<16x128xf32>
    %467 = vector.extract_strided_slice %362 {offsets = [0, 21], sizes = [16, 1], strides = [1, 1]} : vector<16x128xf32> to vector<16x1xf32>
    %468 = vector.extract_strided_slice %24 {offsets = [0, 2688], sizes = [16, 128], strides = [1, 1]} : vector<16x4096xf32> to vector<16x128xf32>
    %469 = vector.broadcast %467 : vector<16x1xf32> to vector<16x128xf32>
    %470 = arith.mulf %469, %468 : vector<16x128xf32>
    %471 = arith.addf %466, %470 : vector<16x128xf32>
    %472 = vector.extract_strided_slice %362 {offsets = [0, 22], sizes = [16, 1], strides = [1, 1]} : vector<16x128xf32> to vector<16x1xf32>
    %473 = vector.extract_strided_slice %24 {offsets = [0, 2816], sizes = [16, 128], strides = [1, 1]} : vector<16x4096xf32> to vector<16x128xf32>
    %474 = vector.broadcast %472 : vector<16x1xf32> to vector<16x128xf32>
    %475 = arith.mulf %474, %473 : vector<16x128xf32>
    %476 = arith.addf %471, %475 : vector<16x128xf32>
    %477 = vector.extract_strided_slice %362 {offsets = [0, 23], sizes = [16, 1], strides = [1, 1]} : vector<16x128xf32> to vector<16x1xf32>
    %478 = vector.extract_strided_slice %24 {offsets = [0, 2944], sizes = [16, 128], strides = [1, 1]} : vector<16x4096xf32> to vector<16x128xf32>
    %479 = vector.broadcast %477 : vector<16x1xf32> to vector<16x128xf32>
    %480 = arith.mulf %479, %478 : vector<16x128xf32>
    %481 = arith.addf %476, %480 : vector<16x128xf32>
    %482 = vector.extract_strided_slice %362 {offsets = [0, 24], sizes = [16, 1], strides = [1, 1]} : vector<16x128xf32> to vector<16x1xf32>
    %483 = vector.extract_strided_slice %24 {offsets = [0, 3072], sizes = [16, 128], strides = [1, 1]} : vector<16x4096xf32> to vector<16x128xf32>
    %484 = vector.broadcast %482 : vector<16x1xf32> to vector<16x128xf32>
    %485 = arith.mulf %484, %483 : vector<16x128xf32>
    %486 = arith.addf %481, %485 : vector<16x128xf32>
    %487 = vector.extract_strided_slice %362 {offsets = [0, 25], sizes = [16, 1], strides = [1, 1]} : vector<16x128xf32> to vector<16x1xf32>
    %488 = vector.extract_strided_slice %24 {offsets = [0, 3200], sizes = [16, 128], strides = [1, 1]} : vector<16x4096xf32> to vector<16x128xf32>
    %489 = vector.broadcast %487 : vector<16x1xf32> to vector<16x128xf32>
    %490 = arith.mulf %489, %488 : vector<16x128xf32>
    %491 = arith.addf %486, %490 : vector<16x128xf32>
    %492 = vector.extract_strided_slice %362 {offsets = [0, 26], sizes = [16, 1], strides = [1, 1]} : vector<16x128xf32> to vector<16x1xf32>
    %493 = vector.extract_strided_slice %24 {offsets = [0, 3328], sizes = [16, 128], strides = [1, 1]} : vector<16x4096xf32> to vector<16x128xf32>
    %494 = vector.broadcast %492 : vector<16x1xf32> to vector<16x128xf32>
    %495 = arith.mulf %494, %493 : vector<16x128xf32>
    %496 = arith.addf %491, %495 : vector<16x128xf32>
    %497 = vector.extract_strided_slice %362 {offsets = [0, 27], sizes = [16, 1], strides = [1, 1]} : vector<16x128xf32> to vector<16x1xf32>
    %498 = vector.extract_strided_slice %24 {offsets = [0, 3456], sizes = [16, 128], strides = [1, 1]} : vector<16x4096xf32> to vector<16x128xf32>
    %499 = vector.broadcast %497 : vector<16x1xf32> to vector<16x128xf32>
    %500 = arith.mulf %499, %498 : vector<16x128xf32>
    %501 = arith.addf %496, %500 : vector<16x128xf32>
    %502 = vector.extract_strided_slice %362 {offsets = [0, 28], sizes = [16, 1], strides = [1, 1]} : vector<16x128xf32> to vector<16x1xf32>
    %503 = vector.extract_strided_slice %24 {offsets = [0, 3584], sizes = [16, 128], strides = [1, 1]} : vector<16x4096xf32> to vector<16x128xf32>
    %504 = vector.broadcast %502 : vector<16x1xf32> to vector<16x128xf32>
    %505 = arith.mulf %504, %503 : vector<16x128xf32>
    %506 = arith.addf %501, %505 : vector<16x128xf32>
    %507 = vector.extract_strided_slice %362 {offsets = [0, 29], sizes = [16, 1], strides = [1, 1]} : vector<16x128xf32> to vector<16x1xf32>
    %508 = vector.extract_strided_slice %24 {offsets = [0, 3712], sizes = [16, 128], strides = [1, 1]} : vector<16x4096xf32> to vector<16x128xf32>
    %509 = vector.broadcast %507 : vector<16x1xf32> to vector<16x128xf32>
    %510 = arith.mulf %509, %508 : vector<16x128xf32>
    %511 = arith.addf %506, %510 : vector<16x128xf32>
    %512 = vector.extract_strided_slice %362 {offsets = [0, 30], sizes = [16, 1], strides = [1, 1]} : vector<16x128xf32> to vector<16x1xf32>
    %513 = vector.extract_strided_slice %24 {offsets = [0, 3840], sizes = [16, 128], strides = [1, 1]} : vector<16x4096xf32> to vector<16x128xf32>
    %514 = vector.broadcast %512 : vector<16x1xf32> to vector<16x128xf32>
    %515 = arith.mulf %514, %513 : vector<16x128xf32>
    %516 = arith.addf %511, %515 : vector<16x128xf32>
    %517 = vector.extract_strided_slice %362 {offsets = [0, 31], sizes = [16, 1], strides = [1, 1]} : vector<16x128xf32> to vector<16x1xf32>
    %518 = vector.extract_strided_slice %24 {offsets = [0, 3968], sizes = [16, 128], strides = [1, 1]} : vector<16x4096xf32> to vector<16x128xf32>
    %519 = vector.broadcast %517 : vector<16x1xf32> to vector<16x128xf32>
    %520 = arith.mulf %519, %518 : vector<16x128xf32>
    %521 = arith.addf %516, %520 : vector<16x128xf32>
    %cst_32 = arith.constant dense<0.000000e+00> : vector<8x128xf32>
    %522 = tpu.matmul %11, %521, %cst_32 {dimension_numbers = #tpu.dot_dimension_numbers<[1], [0], [0], [1], [0, 0, 1, 1], [], []>} : vector<8x16xf32>, vector<16x128xf32>, vector<8x128xf32> -> vector<8x128xf32>
    %523 = vector.broadcast %2 : vector<1x128xf32> to vector<8x128xf32>
    %524 = arith.addf %522, %523 : vector<8x128xf32>
    %cst_33 = arith.constant 0.000000e+00 : f32
    %525 = vector.broadcast %cst_33 : f32 to vector<8x128xf32>
    %526 = arith.maximumf %524, %525 : vector<8x128xf32>
    %cst_34 = arith.constant dense<0.000000e+00> : vector<16x128xf32>
    %527 = tpu.matmul %9, %526, %cst_34 {dimension_numbers = #tpu.dot_dimension_numbers<[1], [0], [0], [1], [0, 0, 1, 1], [], []>} : vector<16x8xf32>, vector<8x128xf32>, vector<16x128xf32> -> vector<16x128xf32>
    %cst_35 = arith.constant dense<0.000000e+00> : vector<16x128xf32>
    %528 = tpu.matmul %7, %526, %cst_35 {dimension_numbers = #tpu.dot_dimension_numbers<[1], [0], [0], [1], [0, 0, 1, 1], [], []>} : vector<16x8xf32>, vector<8x128xf32>, vector<16x128xf32> -> vector<16x128xf32>
    %c0_36 = arith.constant 0 : index
    %c0_37 = arith.constant 0 : index
    %529 = vector.load %arg10[%c0_36, %c0_37] : memref<128x128xf32, #tpu.memory_space<vmem>>, vector<128x128xf32>
    %cst_38 = arith.constant dense<0.000000e+00> : vector<16x128xf32>
    %530 = tpu.matmul %527, %529, %cst_38 {dimension_numbers = #tpu.dot_dimension_numbers<[1], [0], [0], [1], [0, 0, 1, 1], [], []>} : vector<16x128xf32>, vector<128x128xf32>, vector<16x128xf32> -> vector<16x128xf32>
    %c0_39 = arith.constant 0 : index
    %c0_40 = arith.constant 0 : index
    %531 = vector.load %arg11[%c0_39, %c0_40] : memref<128x128xf32, #tpu.memory_space<vmem>>, vector<128x128xf32>
    %cst_41 = arith.constant dense<0.000000e+00> : vector<16x128xf32>
    %532 = tpu.matmul %528, %531, %cst_41 {dimension_numbers = #tpu.dot_dimension_numbers<[1], [0], [0], [1], [0, 0, 1, 1], [], []>} : vector<16x128xf32>, vector<128x128xf32>, vector<16x128xf32> -> vector<16x128xf32>
    %533 = arith.addf %530, %532 : vector<16x128xf32>
    %534 = vector.broadcast %3 : vector<1x128xf32> to vector<16x128xf32>
    %535 = arith.addf %533, %534 : vector<16x128xf32>
    %536 = tpu.iota {dimensions = array<i32: 1>} : vector<8x128xi32>
    %c32_i32 = arith.constant 32 : i32
    %537 = vector.broadcast %c32_i32 : i32 to vector<8x128xi32>
    %538 = arith.cmpi slt, %536, %537 : vector<8x128xi32>
    %539 = arith.extui %538 : vector<8x128xi1> to vector<8x128xi32>
    %540 = arith.sitofp %539 : vector<8x128xi32> to vector<8x128xf32>
    %cst_42 = arith.constant dense<0.000000e+00> : vector<8xf32>
    %541 = vector.multi_reduction <add>, %526, %cst_42 [1] : vector<8x128xf32> to vector<8xf32>
    %542 = vector.shape_cast %541 : vector<8xf32> to vector<8x1xf32>
    %cst_43 = arith.constant 3.125000e-02 : f32
    %543 = vector.broadcast %cst_43 : f32 to vector<8x1xf32>
    %544 = arith.mulf %542, %543 : vector<8x1xf32>
    %545 = vector.broadcast %544 : vector<8x1xf32> to vector<8x128xf32>
    %546 = arith.subf %526, %545 : vector<8x128xf32>
    %547 = arith.mulf %546, %546 : vector<8x128xf32>
    %548 = arith.mulf %547, %540 : vector<8x128xf32>
    %cst_44 = arith.constant dense<0.000000e+00> : vector<8xf32>
    %549 = vector.multi_reduction <add>, %548, %cst_44 [1] : vector<8x128xf32> to vector<8xf32>
    %550 = vector.shape_cast %549 : vector<8xf32> to vector<8x1xf32>
    %cst_45 = arith.constant 3.125000e-02 : f32
    %551 = vector.broadcast %cst_45 : f32 to vector<8x1xf32>
    %552 = arith.mulf %550, %551 : vector<8x1xf32>
    %cst_46 = arith.constant 9.99999974E-6 : f32
    %553 = vector.broadcast %cst_46 : f32 to vector<8x1xf32>
    %554 = arith.addf %552, %553 : vector<8x1xf32>
    %555 = math.rsqrt %554 : vector<8x1xf32>
    %556 = vector.broadcast %555 : vector<8x1xf32> to vector<8x128xf32>
    %557 = arith.mulf %546, %556 : vector<8x128xf32>
    %558 = vector.broadcast %4 : vector<1x128xf32> to vector<8x128xf32>
    %559 = arith.mulf %557, %558 : vector<8x128xf32>
    %560 = vector.broadcast %5 : vector<1x128xf32> to vector<8x128xf32>
    %561 = arith.addf %559, %560 : vector<8x128xf32>
    %c0_47 = arith.constant 0 : index
    %c0_48 = arith.constant 0 : index
    %562 = vector.load %arg13[%c0_47, %c0_48] : memref<8x128xf32, #tpu.memory_space<vmem>>, vector<8x128xf32>
    tpu.vector_store %arg13[%c0_47, %c0_48], %561 {strides = array<i32>} : memref<8x128xf32, #tpu.memory_space<vmem>>, vector<8x128xf32>,
    %563 = tpu.iota {dimensions = array<i32: 1>} : vector<16x128xi32>
    %c32_i32_49 = arith.constant 32 : i32
    %564 = vector.broadcast %c32_i32_49 : i32 to vector<16x128xi32>
    %565 = arith.cmpi slt, %563, %564 : vector<16x128xi32>
    %566 = arith.extui %565 : vector<16x128xi1> to vector<16x128xi32>
    %567 = arith.sitofp %566 : vector<16x128xi32> to vector<16x128xf32>
    %cst_50 = arith.constant dense<0.000000e+00> : vector<16xf32>
    %568 = vector.multi_reduction <add>, %535, %cst_50 [1] : vector<16x128xf32> to vector<16xf32>
    %569 = vector.shape_cast %568 : vector<16xf32> to vector<16x1xf32>
    %cst_51 = arith.constant 3.125000e-02 : f32
    %570 = vector.broadcast %cst_51 : f32 to vector<16x1xf32>
    %571 = arith.mulf %569, %570 : vector<16x1xf32>
    %572 = vector.broadcast %571 : vector<16x1xf32> to vector<16x128xf32>
    %573 = arith.subf %535, %572 : vector<16x128xf32>
    %574 = arith.mulf %573, %573 : vector<16x128xf32>
    %575 = arith.mulf %574, %567 : vector<16x128xf32>
    %cst_52 = arith.constant dense<0.000000e+00> : vector<16xf32>
    %576 = vector.multi_reduction <add>, %575, %cst_52 [1] : vector<16x128xf32> to vector<16xf32>
    %577 = vector.shape_cast %576 : vector<16xf32> to vector<16x1xf32>
    %cst_53 = arith.constant 3.125000e-02 : f32
    %578 = vector.broadcast %cst_53 : f32 to vector<16x1xf32>
    %579 = arith.mulf %577, %578 : vector<16x1xf32>
    %cst_54 = arith.constant 9.99999974E-6 : f32
    %580 = vector.broadcast %cst_54 : f32 to vector<16x1xf32>
    %581 = arith.addf %579, %580 : vector<16x1xf32>
    %582 = math.rsqrt %581 : vector<16x1xf32>
    %583 = vector.broadcast %582 : vector<16x1xf32> to vector<16x128xf32>
    %584 = arith.mulf %573, %583 : vector<16x128xf32>
    %585 = vector.broadcast %4 : vector<1x128xf32> to vector<16x128xf32>
    %586 = arith.mulf %584, %585 : vector<16x128xf32>
    %587 = vector.broadcast %5 : vector<1x128xf32> to vector<16x128xf32>
    %588 = arith.addf %586, %587 : vector<16x128xf32>
    %c0_55 = arith.constant 0 : index
    %c0_56 = arith.constant 0 : index
    %589 = vector.load %arg14[%c0_55, %c0_56] : memref<16x128xf32, #tpu.memory_space<vmem>>, vector<16x128xf32>
    tpu.vector_store %arg14[%c0_55, %c0_56], %588 {strides = array<i32>} : memref<16x128xf32, #tpu.memory_space<vmem>>, vector<16x128xf32>,
    return
  }
}

</mosaic_0001>

<llo_original>
// kernel: tpu_custom_call.1
$region0: #{tpu_custom_call.1}
  #allocation0 [shape = 'u32[]', space=smem, size = 0x4, offset = 0x4, fixed_abs, tag = 'smem constant byte address 0x4 - core index']
  #allocation1 [shape = 'u32[144,128]{1,0:T(1,128)}', space=vmem, size = 0x12000, scoped, tag = 'internal scratch']
  %s0 = inlined_call_operand.vmem [shape: f32[8,128], index: 0, kind: input, shape index: {}]
  %s1 = inlined_call_operand.hbm [shape: f32[16,128], index: 1, kind: input, shape index: {}]
  %s2 = inlined_call_operand.vmem [shape: bf16[16,8], index: 2, kind: input, shape index: {}]
  %s3 = inlined_call_operand.vmem [shape: bf16[16,8], index: 3, kind: input, shape index: {}]
  %s4 = inlined_call_operand.hbm [shape: bf16[8,16], index: 4, kind: input, shape index: {}]
  %s5 = inlined_call_operand.vmem [shape: f32[128,128], index: 5, kind: input, shape index: {}]
  %s6 = inlined_call_operand.vmem [shape: f32[128,32], index: 6, kind: input, shape index: {}]
  %s7 = inlined_call_operand.vmem [shape: f32[1,32], index: 7, kind: input, shape index: {}]
  %s8 = inlined_call_operand.hbm [shape: f32[32,4096], index: 8, kind: input, shape index: {}]
  %s9 = inlined_call_operand.vmem [shape: f32[1,4096], index: 9, kind: input, shape index: {}]
  %s10 = inlined_call_operand.hbm [shape: f32[128,128], index: 10, kind: input, shape index: {}]
  %s11 = inlined_call_operand.hbm [shape: f32[128,128], index: 11, kind: input, shape index: {}]
  %s12 = inlined_call_operand.vmem [shape: f32[8,128], index: 12, kind: input, shape index: {}]
  %s13 = inlined_call_operand.hbm [shape: f32[8,128], index: 13, kind: output, shape index: {0}]
  %s14 = inlined_call_operand.hbm [shape: f32[16,128], index: 14, kind: output, shape index: {1}]
  %15 = xla_tuple %s13, %s14
  %s16 = sld [smem:[#allocation0]]
  $region90: #{tpu_custom_call.1} parent=0
    _
  %s18 = ssub.s32 1, %s16
  %s19 = scalar_select 0, %s18, %s16
  $region1: #{tpu_custom_call.1} parent=0
    #allocation2 [shape = 'u8[8192]{0}', space=vmem, size = 0x2000, scoped, tag = 'input window, operand 1, single buffered']
    #allocation3 [shape = 's32[1]{0}', space=sflag, size = 0x4, scoped, tag = 'scoped memory for tpu_custom_call.1']
    #allocation4 [shape = 's32[1]{0}', space=sflag, size = 0x4, scoped, tag = 'scoped memory for tpu_custom_call.1']
    #allocation5 [shape = 'u8[2048]{0}', space=vmem, size = 0x800, scoped, tag = 'input window, operand 4, single buffered']
    #allocation6 [shape = 's32[1]{0}', space=sflag, size = 0x4, scoped, tag = 'scoped memory for tpu_custom_call.1']
    #allocation7 [shape = 'u8[524288]{0}', space=vmem, size = 0x80000, scoped, tag = 'input window, operand 8, single buffered']
    #allocation8 [shape = 'u8[65536]{0}', space=vmem, size = 0x10000, scoped, tag = 'input window, operand 10, single buffered']
    #allocation9 [shape = 's32[1]{0}', space=sflag, size = 0x4, scoped, tag = 'scoped memory for tpu_custom_call.1']
    #allocation10 [shape = 'u8[65536]{0}', space=vmem, size = 0x10000, scoped, tag = 'input window, operand 11, single buffered']
    #allocation11 [shape = 'u8[4096]{0}', space=vmem, size = 0x1000, scoped, tag = 'output window, operand 0, single buffered']
    #allocation12 [shape = 'u8[8192]{0}', space=vmem, size = 0x2000, scoped, tag = 'output window, operand 1, single buffered']
    #allocation13 [shape = 's32[1]{0}', space=sflag, size = 0x4, scoped, tag = 'scoped memory for tpu_custom_call.1']
    %20 = vsyncpa [#allocation3], 0
    %21 = vsyncpa [#allocation6], 0
    %22 = vsyncpa [#allocation9], 0
    %23 = vsyncpa [#allocation4], 0
    %24 = vsyncpa [#allocation13], 0
    // Predicated region
    $region2: #{tpu_custom_call.1} parent=1 // pred_check
      _
    $region3: #{tpu_custom_call.1} parent=1 // pred_check_branch
      %26 = sbr.rel (0) target = $region5
    $region4: #{tpu_custom_call.1} parent=1 // pred_region
      _
    $region5: #{tpu_custom_call.1} parent=1 // pred_fallthru
      _
    // Predicated region
    $region6: #{tpu_custom_call.1} parent=1 // pred_check
      _
    $region7: #{tpu_custom_call.1} parent=1 // pred_check_branch
      %28 = sbr.rel (0) target = $region9
    $region8: #{tpu_custom_call.1} parent=1 // pred_region
      %s30 = ssub.s32 256, 256
      %31 = vsyncadd [#allocation3], %s30
      %s32 = sshll.u32 [#allocation2], 4
      %s33 = int_to_ptr.vmem [resolvable:$true] %s32
      %38 = dma.hbm_to_vmem [thread:$0]  %s1, 256, %s33, [#allocation3], 128, 128, 8
    $region9: #{tpu_custom_call.1} parent=1 // pred_fallthru
      _
    // Predicated region
    $region10: #{tpu_custom_call.1} parent=1 // pred_check
      _
    $region11: #{tpu_custom_call.1} parent=1 // pred_check_branch
      %40 = sbr.rel (0) target = $region13
    $region12: #{tpu_custom_call.1} parent=1 // pred_region
      _
    $region13: #{tpu_custom_call.1} parent=1 // pred_fallthru
      _
    // Predicated region
    $region14: #{tpu_custom_call.1} parent=1 // pred_check
      _
    $region15: #{tpu_custom_call.1} parent=1 // pred_check_branch
      %42 = sbr.rel (0) target = $region17
    $region16: #{tpu_custom_call.1} parent=1 // pred_region
      _
    $region17: #{tpu_custom_call.1} parent=1 // pred_fallthru
      _
    // Predicated region
    $region18: #{tpu_custom_call.1} parent=1 // pred_check
      _
    $region19: #{tpu_custom_call.1} parent=1 // pred_check_branch
      %44 = sbr.rel (0) target = $region21
    $region20: #{tpu_custom_call.1} parent=1 // pred_region
      %s46 = ssub.s32 64, 64
      %47 = vsyncadd [#allocation6], %s46
      %s49 = sshll.u32 [#allocation5], 4
      %s50 = int_to_ptr.vmem [resolvable:$true] %s49
      %52 = dma.hbm_to_vmem [thread:$0]  %s4, 64, %s50, [#allocation6]
    $region21: #{tpu_custom_call.1} parent=1 // pred_fallthru
      _
    // Predicated region
    $region22: #{tpu_custom_call.1} parent=1 // pred_check
      _
    $region23: #{tpu_custom_call.1} parent=1 // pred_check_branch
      %54 = sbr.rel (0) target = $region25
    $region24: #{tpu_custom_call.1} parent=1 // pred_region
      _
    $region25: #{tpu_custom_call.1} parent=1 // pred_fallthru
      _
    // Predicated region
    $region26: #{tpu_custom_call.1} parent=1 // pred_check
      _
    $region27: #{tpu_custom_call.1} parent=1 // pred_check_branch
      %56 = sbr.rel (0) target = $region29
    $region28: #{tpu_custom_call.1} parent=1 // pred_region
      _
    $region29: #{tpu_custom_call.1} parent=1 // pred_fallthru
      _
    // Predicated region
    $region30: #{tpu_custom_call.1} parent=1 // pred_check
      _
    $region31: #{tpu_custom_call.1} parent=1 // pred_check_branch
      %58 = sbr.rel (0) target = $region33
    $region32: #{tpu_custom_call.1} parent=1 // pred_region
      _
    $region33: #{tpu_custom_call.1} parent=1 // pred_fallthru
      _
    // Predicated region
    $region34: #{tpu_custom_call.1} parent=1 // pred_check
      _
    $region35: #{tpu_custom_call.1} parent=1 // pred_check_branch
      %60 = sbr.rel (0) target = $region37
    $region36: #{tpu_custom_call.1} parent=1 // pred_region
      %s62 = ssub.s32 16384, 16384
      %63 = vsyncadd [#allocation6], %s62
      %s64 = sshll.u32 [#allocation7], 4
      %s65 = int_to_ptr.vmem [resolvable:$true] %s64
      %70 = dma.hbm_to_vmem [thread:$0]  %s8, 16384, %s65, [#allocation6], 4096, 4096, 256
    $region37: #{tpu_custom_call.1} parent=1 // pred_fallthru
      _
    // Predicated region
    $region38: #{tpu_custom_call.1} parent=1 // pred_check
      _
    $region39: #{tpu_custom_call.1} parent=1 // pred_check_branch
      %72 = sbr.rel (0) target = $region41
    $region40: #{tpu_custom_call.1} parent=1 // pred_region
      _
    $region41: #{tpu_custom_call.1} parent=1 // pred_fallthru
      _
    // Predicated region
    $region42: #{tpu_custom_call.1} parent=1 // pred_check
      _
    $region43: #{tpu_custom_call.1} parent=1 // pred_check_branch
      %74 = sbr.rel (0) target = $region45
    $region44: #{tpu_custom_call.1} parent=1 // pred_region
      %s76 = ssub.s32 2048, 2048
      %77 = vsyncadd [#allocation9], %s76
      %s78 = sshll.u32 [#allocation8], 4
      %s79 = int_to_ptr.vmem [resolvable:$true] %s78
      %84 = dma.hbm_to_vmem [thread:$0]  %s10, 2048, %s79, [#allocation9], 128, 128, 8
    $region45: #{tpu_custom_call.1} parent=1 // pred_fallthru
      _
    // Predicated region
    $region46: #{tpu_custom_call.1} parent=1 // pred_check
      _
    $region47: #{tpu_custom_call.1} parent=1 // pred_check_branch
      %86 = sbr.rel (0) target = $region49
    $region48: #{tpu_custom_call.1} parent=1 // pred_region
      %s88 = ssub.s32 2048, 2048
      %89 = vsyncadd [#allocation9], %s88
      %s90 = sshll.u32 [#allocation10], 4
      %s91 = int_to_ptr.vmem [resolvable:$true] %s90
      %96 = dma.hbm_to_vmem [thread:$0]  %s11, 2048, %s91, [#allocation9], 128, 128, 8
    $region49: #{tpu_custom_call.1} parent=1 // pred_fallthru
      _
    // Predicated region
    $region50: #{tpu_custom_call.1} parent=1 // pred_check
      _
    $region51: #{tpu_custom_call.1} parent=1 // pred_check_branch
      %98 = sbr.rel (0) target = $region53
    $region52: #{tpu_custom_call.1} parent=1 // pred_region
      _
    $region53: #{tpu_custom_call.1} parent=1 // pred_fallthru
      _
    // Predicated region
    $region54: #{tpu_custom_call.1} parent=1 // pred_check
      _
    $region55: #{tpu_custom_call.1} parent=1 // pred_check_branch
      %100 = sbr.rel (0) target = $region57
    $region56: #{tpu_custom_call.1} parent=1 // pred_region
      %101 = dma.done [#allocation3], 256
    $region57: #{tpu_custom_call.1} parent=1 // pred_fallthru
      _
    // Predicated region
    $region58: #{tpu_custom_call.1} parent=1 // pred_check
      _
    $region59: #{tpu_custom_call.1} parent=1 // pred_check_branch
      %103 = sbr.rel (0) target = $region61
    $region60: #{tpu_custom_call.1} parent=1 // pred_region
      %104 = dma.done [#allocation6], 64
    $region61: #{tpu_custom_call.1} parent=1 // pred_fallthru
      _
    // Predicated region
    $region62: #{tpu_custom_call.1} parent=1 // pred_check
      _
    $region63: #{tpu_custom_call.1} parent=1 // pred_check_branch
      %106 = sbr.rel (0) target = $region65
    $region64: #{tpu_custom_call.1} parent=1 // pred_region
      %107 = dma.done [#allocation6], 16384
    $region65: #{tpu_custom_call.1} parent=1 // pred_fallthru
      _
    // Predicated region
    $region66: #{tpu_custom_call.1} parent=1 // pred_check
      _
    $region67: #{tpu_custom_call.1} parent=1 // pred_check_branch
      %109 = sbr.rel (0) target = $region69
    $region68: #{tpu_custom_call.1} parent=1 // pred_region
      %110 = dma.done [#allocation9], 2048
    $region69: #{tpu_custom_call.1} parent=1 // pred_fallthru
      _
    // Predicated region
    $region70: #{tpu_custom_call.1} parent=1 // pred_check
      _
    $region71: #{tpu_custom_call.1} parent=1 // pred_check_branch
      %112 = sbr.rel (0) target = $region73
    $region72: #{tpu_custom_call.1} parent=1 // pred_region
      %113 = dma.done [#allocation9], 2048
    $region73: #{tpu_custom_call.1} parent=1 // pred_fallthru
      _
    %v114 = vld [vmem:[%s12] sm:$0xff]
    %v115 = vld [vmem:[%s2] sm:$0xf]
    %v116 = vld [vmem:[%s2 + $0x4] sm:$0xf]
    %v117 = vunpack.c.l.bf16 %v115
    %v118 = vunpack.c.l.bf16 %v116
    %v119 = vld [vmem:[%s3] sm:$0xf]
    %v120 = vld [vmem:[%s3 + $0x4] sm:$0xf]
    %v121 = vunpack.c.l.bf16 %v119
    %v122 = vunpack.c.l.bf16 %v120
    %v123 = vld [vmem:[#allocation5] sm:$0xf]
    %v124 = vunpack.c.l.bf16 %v123
    %v125 = vld [vmem:[#allocation2] sm:$0xff]
    %v126 = vld [vmem:[#allocation2 + $0x8] sm:$0xff]
    %v127 = vld [vmem:[%s6] sm:$0xff]
    %v128 = vld [vmem:[%s6 + $0x8] sm:$0xff]
    %v129 = vld [vmem:[%s6 + $0x10] sm:$0xff]
    %v130 = vld [vmem:[%s6 + $0x18] sm:$0xff]
    %v131 = vld [vmem:[%s6 + $0x20] sm:$0xff]
    %v132 = vld [vmem:[%s6 + $0x28] sm:$0xff]
    %v133 = vld [vmem:[%s6 + $0x30] sm:$0xff]
    %v134 = vld [vmem:[%s6 + $0x38] sm:$0xff]
    %v135 = vld [vmem:[%s6 + $0x40] sm:$0xff]
    %v136 = vld [vmem:[%s6 + $0x48] sm:$0xff]
    %v137 = vld [vmem:[%s6 + $0x50] sm:$0xff]
    %v138 = vld [vmem:[%s6 + $0x58] sm:$0xff]
    %v139 = vld [vmem:[%s6 + $0x60] sm:$0xff]
    %v140 = vld [vmem:[%s6 + $0x68] sm:$0xff]
    %v141 = vld [vmem:[%s6 + $0x70] sm:$0xff]
    %v142 = vld [vmem:[%s6 + $0x78] sm:$0xff]
    %v143 = vld [vmem:[%s7] sm:$0x1]
    %v145 = vlaneseq
    %v146 = vshrl.u32 %v145, 7
    %v147 = vsub.s32 0, %v146
    %v148 = vrot.slane %v143, %v147
    %150 = vmatprep.subr.mxu0 0.0
    %151 = vmatpush1.msra.mxu0 %v127
    %152 = vmatprep.subr.mxu0 0.0
    %153 = vmatpush1.msra.mxu0 %v128
    %154 = vmatprep.subr.mxu0 0.0
    %155 = vmatpush1.msra.mxu0 %v129
    %156 = vmatprep.subr.mxu0 0.0
    %157 = vmatpush1.msra.mxu0 %v130
    %158 = vmatprep.subr.mxu0 0.0
    %159 = vmatpush1.msra.mxu0 %v131
    %160 = vmatprep.subr.mxu0 0.0
    %161 = vmatpush1.msra.mxu0 %v132
    %162 = vmatprep.subr.mxu0 0.0
    %163 = vmatpush1.msra.mxu0 %v133
    %164 = vmatprep.subr.mxu0 0.0
    %165 = vmatpush1.msra.mxu0 %v134
    %166 = vmatprep.subr.mxu0 0.0
    %167 = vmatpush1.msra.mxu0 %v135
    %168 = vmatprep.subr.mxu0 0.0
    %169 = vmatpush1.msra.mxu0 %v136
    %170 = vmatprep.subr.mxu0 0.0
    %171 = vmatpush1.msra.mxu0 %v137
    %172 = vmatprep.subr.mxu0 0.0
    %173 = vmatpush1.msra.mxu0 %v138
    %174 = vmatprep.subr.mxu0 0.0
    %175 = vmatpush1.msra.mxu0 %v139
    %176 = vmatprep.subr.mxu0 0.0
    %177 = vmatpush1.msra.mxu0 %v140
    %178 = vmatprep.subr.mxu0 0.0
    %179 = vmatpush1.msra.mxu0 %v141
    %180 = vmatprep.subr.mxu0 0.0
    %181 = vmatpush1.msra.mxu0 %v142
    %182 = vmatprep.subr.mxu0 0.0
    %183 = vmatpush1.msra.mxu0 0.0
    %184 = vmatprep.subr.mxu0 0.0
    %185 = vmatpush1.msra.mxu0 0.0
    %186 = vmatprep.subr.mxu0 0.0
    %187 = vmatpush1.msra.mxu0 0.0
    %188 = vmatprep.subr.mxu0 0.0
    %189 = vmatpush1.msra.mxu0 0.0
    %190 = vmatprep.subr.mxu0 0.0
    %191 = vmatpush1.msra.mxu0 0.0
    %192 = vmatprep.subr.mxu0 0.0
    %193 = vmatpush1.msra.mxu0 0.0
    %194 = vmatprep.subr.mxu0 0.0
    %195 = vmatpush1.msra.mxu0 0.0
    %196 = vmatprep.subr.mxu0 0.0
    %197 = vmatpush1.msra.mxu0 0.0
    %198 = vmatprep.subr.mxu0 0.0
    %199 = vmatpush1.msra.mxu0 0.0
    %200 = vmatprep.subr.mxu0 0.0
    %201 = vmatpush1.msra.mxu0 0.0
    %202 = vmatprep.subr.mxu0 0.0
    %203 = vmatpush1.msra.mxu0 0.0
    %204 = vmatprep.subr.mxu0 0.0
    %205 = vmatpush1.msra.mxu0 0.0
    %206 = vmatprep.subr.mxu0 0.0
    %207 = vmatpush1.msra.mxu0 0.0
    %208 = vmatprep.subr.mxu0 0.0
    %209 = vmatpush1.msra.mxu0 0.0
    %210 = vmatprep.subr.mxu0 0.0
    %211 = vmatpush1.msra.mxu0 0.0
    %212 = vmatprep.subr.mxu0 0.0
    %213 = vmatpush1.msra.mxu0 0.0
    %214 = vmatprep.mubr.f32.mxu0 0.0
    %215 = vmatmul.mubr.f32.gmra.mrb[0].mxu0 %v125
    %v216 = vpop.f32.mrb[0].mxu0
    %v217 = vadd.f32 %v148, %v216
    %v218 = vpop.f32.mrb[0].mxu0
    %219 = vmatprep.mubr.f32.mxu0 0.0
    %220 = vmatmul.mubr.f32.gmra.mrb[0].mxu0 %v126
    %v221 = vpop.f32.mrb[0].mxu0
    %v222 = vadd.f32 %v148, %v221
    %v223 = vpop.f32.mrb[0].mxu0
    %224 = vdwg.mxu0
    %v225 = vmax.f32 %v217, 0.0
    %v226 = vmax.f32 %v222, 0.0
    %v227 = vld [vmem:[#allocation7] sm:$0xff]
    %v228 = vld [vmem:[#allocation7 + $0x8] sm:$0xff]
    %v229 = vld [vmem:[#allocation7 + $0x10] sm:$0xff]
    %v230 = vld [vmem:[#allocation7 + $0x18] sm:$0xff]
    %v231 = vld [vmem:[#allocation7 + $0x20] sm:$0xff]
    %v232 = vld [vmem:[#allocation7 + $0x28] sm:$0xff]
    %v233 = vld [vmem:[#allocation7 + $0x30] sm:$0xff]
    %v234 = vld [vmem:[#allocation7 + $0x38] sm:$0xff]
    %v235 = vld [vmem:[#allocation7 + $0x40] sm:$0xff]
    %v236 = vld [vmem:[#allocation7 + $0x48] sm:$0xff]
    %v237 = vld [vmem:[#allocation7 + $0x50] sm:$0xff]
    %v238 = vld [vmem:[#allocation7 + $0x58] sm:$0xff]
    %v239 = vld [vmem:[#allocation7 + $0x60] sm:$0xff]
    %v240 = vld [vmem:[#allocation7 + $0x68] sm:$0xff]
    %v241 = vld [vmem:[#allocation7 + $0x70] sm:$0xff]
    %v242 = vld [vmem:[#allocation7 + $0x78] sm:$0xff]
    %v243 = vld [vmem:[#allocation7 + $0x80] sm:$0xff]
    %v244 = vld [vmem:[#allocation7 + $0x88] sm:$0xff]
    %v245 = vld [vmem:[#allocation7 + $0x90] sm:$0xff]
    %v246 = vld [vmem:[#allocation7 + $0x98] sm:$0xff]
    %v247 = vld [vmem:[#allocation7 + $0xa0] sm:$0xff]
    %v248 = vld [vmem:[#allocation7 + $0xa8] sm:$0xff]
    %v249 = vld [vmem:[#allocation7 + $0xb0] sm:$0xff]
    %v250 = vld [vmem:[#allocation7 + $0xb8] sm:$0xff]
    %v251 = vld [vmem:[#allocation7 + $0xc0] sm:$0xff]
    %v252 = vld [vmem:[#allocation7 + $0xc8] sm:$0xff]
    %v253 = vld [vmem:[#allocation7 + $0xd0] sm:$0xff]
    %v254 = vld [vmem:[#allocation7 + $0xd8] sm:$0xff]
    %v255 = vld [vmem:[#allocation7 + $0xe0] sm:$0xff]
    %v256 = vld [vmem:[#allocation7 + $0xe8] sm:$0xff]
    %v257 = vld [vmem:[#allocation7 + $0xf0] sm:$0xff]
    %v258 = vld [vmem:[#allocation7 + $0xf8] sm:$0xff]
    %v259 = vld [vmem:[#allocation7 + $0x100] sm:$0xff]
    %v260 = vld [vmem:[#allocation7 + $0x108] sm:$0xff]
    %v261 = vld [vmem:[#allocation7 + $0x110] sm:$0xff]
    %v262 = vld [vmem:[#allocation7 + $0x118] sm:$0xff]
    %v263 = vld [vmem:[#allocation7 + $0x120] sm:$0xff]
    %v264 = vld [vmem:[#allocation7 + $0x128] sm:$0xff]
    %v265 = vld [vmem:[#allocation7 + $0x130] sm:$0xff]
    %v266 = vld [vmem:[#allocation7 + $0x138] sm:$0xff]
    %v267 = vld [vmem:[#allocation7 + $0x140] sm:$0xff]
    %v268 = vld [vmem:[#allocation7 + $0x148] sm:$0xff]
    %v269 = vld [vmem:[#allocation7 + $0x150] sm:$0xff]
    %v270 = vld [vmem:[#allocation7 + $0x158] sm:$0xff]
    %v271 = vld [vmem:[#allocation7 + $0x160] sm:$0xff]
    %v272 = vld [vmem:[#allocation7 + $0x168] sm:$0xff]
    %v273 = vld [vmem:[#allocation7 + $0x170] sm:$0xff]
    %v274 = vld [vmem:[#allocation7 + $0x178] sm:$0xff]
    %v275 = vld [vmem:[#allocation7 + $0x180] sm:$0xff]
    %v276 = vld [vmem:[#allocation7 + $0x188] sm:$0xff]
    %v277 = vld [vmem:[#allocation7 + $0x190] sm:$0xff]
    %v278 = vld [vmem:[#allocation7 + $0x198] sm:$0xff]
    %v279 = vld [vmem:[#allocation7 + $0x1a0] sm:$0xff]
    %v280 = vld [vmem:[#allocation7 + $0x1a8] sm:$0xff]
    %v281 = vld [vmem:[#allocation7 + $0x1b0] sm:$0xff]
    %v282 = vld [vmem:[#allocation7 + $0x1b8] sm:$0xff]
    %v283 = vld [vmem:[#allocation7 + $0x1c0] sm:$0xff]
    %v284 = vld [vmem:[#allocation7 + $0x1c8] sm:$0xff]
    %v285 = vld [vmem:[#allocation7 + $0x1d0] sm:$0xff]
    %v286 = vld [vmem:[#allocation7 + $0x1d8] sm:$0xff]
    %v287 = vld [vmem:[#allocation7 + $0x1e0] sm:$0xff]
    %v288 = vld [vmem:[#allocation7 + $0x1e8] sm:$0xff]
    %v289 = vld [vmem:[#allocation7 + $0x1f0] sm:$0xff]
    %v290 = vld [vmem:[#allocation7 + $0x1f8] sm:$0xff]
    %v291 = vld [vmem:[#allocation7 + $0x200] sm:$0xff]
    %v292 = vld [vmem:[#allocation7 + $0x208] sm:$0xff]
    %v293 = vld [vmem:[#allocation7 + $0x210] sm:$0xff]
    %v294 = vld [vmem:[#allocation7 + $0x218] sm:$0xff]
    %v295 = vld [vmem:[#allocation7 + $0x220] sm:$0xff]
    %v296 = vld [vmem:[#allocation7 + $0x228] sm:$0xff]
    %v297 = vld [vmem:[#allocation7 + $0x230] sm:$0xff]
    %v298 = vld [vmem:[#allocation7 + $0x238] sm:$0xff]
    %v299 = vld [vmem:[#allocation7 + $0x240] sm:$0xff]
    %v300 = vld [vmem:[#allocation7 + $0x248] sm:$0xff]
    %v301 = vld [vmem:[#allocation7 + $0x250] sm:$0xff]
    %v302 = vld [vmem:[#allocation7 + $0x258] sm:$0xff]
    %v303 = vld [vmem:[#allocation7 + $0x260] sm:$0xff]
    %v304 = vld [vmem:[#allocation7 + $0x268] sm:$0xff]
    %v305 = vld [vmem:[#allocation7 + $0x270] sm:$0xff]
    %v306 = vld [vmem:[#allocation7 + $0x278] sm:$0xff]
    %v307 = vld [vmem:[#allocation7 + $0x280] sm:$0xff]
    %v308 = vld [vmem:[#allocation7 + $0x288] sm:$0xff]
    %v309 = vld [vmem:[#allocation7 + $0x290] sm:$0xff]
    %v310 = vld [vmem:[#allocation7 + $0x298] sm:$0xff]
    %v311 = vld [vmem:[#allocation7 + $0x2a0] sm:$0xff]
    %v312 = vld [vmem:[#allocation7 + $0x2a8] sm:$0xff]
    %v313 = vld [vmem:[#allocation7 + $0x2b0] sm:$0xff]
    %v314 = vld [vmem:[#allocation7 + $0x2b8] sm:$0xff]
    %v315 = vld [vmem:[#allocation7 + $0x2c0] sm:$0xff]
    %v316 = vld [vmem:[#allocation7 + $0x2c8] sm:$0xff]
    %v317 = vld [vmem:[#allocation7 + $0x2d0] sm:$0xff]
    %v318 = vld [vmem:[#allocation7 + $0x2d8] sm:$0xff]
    %v319 = vld [vmem:[#allocation7 + $0x2e0] sm:$0xff]
    %v320 = vld [vmem:[#allocation7 + $0x2e8] sm:$0xff]
    %v321 = vld [vmem:[#allocation7 + $0x2f0] sm:$0xff]
    %v322 = vld [vmem:[#allocation7 + $0x2f8] sm:$0xff]
    %v323 = vld [vmem:[#allocation7 + $0x300] sm:$0xff]
    %v324 = vld [vmem:[#allocation7 + $0x308] sm:$0xff]
    %v325 = vld [vmem:[#allocation7 + $0x310] sm:$0xff]
    %v326 = vld [vmem:[#allocation7 + $0x318] sm:$0xff]
    %v327 = vld [vmem:[#allocation7 + $0x320] sm:$0xff]
    %v328 = vld [vmem:[#allocation7 + $0x328] sm:$0xff]
    %v329 = vld [vmem:[#allocation7 + $0x330] sm:$0xff]
    %v330 = vld [vmem:[#allocation7 + $0x338] sm:$0xff]
    %v331 = vld [vmem:[#allocation7 + $0x340] sm:$0xff]
    %v332 = vld [vmem:[#allocation7 + $0x348] sm:$0xff]
    %v333 = vld [vmem:[#allocation7 + $0x350] sm:$0xff]
    %v334 = vld [vmem:[#allocation7 + $0x358] sm:$0xff]
    %v335 = vld [vmem:[#allocation7 + $0x360] sm:$0xff]
    %v336 = vld [vmem:[#allocation7 + $0x368] sm:$0xff]
    %v337 = vld [vmem:[#allocation7 + $0x370] sm:$0xff]
    %v338 = vld [vmem:[#allocation7 + $0x378] sm:$0xff]
    %v339 = vld [vmem:[#allocation7 + $0x380] sm:$0xff]
    %v340 = vld [vmem:[#allocation7 + $0x388] sm:$0xff]
    %v341 = vld [vmem:[#allocation7 + $0x390] sm:$0xff]
    %v342 = vld [vmem:[#allocation7 + $0x398] sm:$0xff]
    %v343 = vld [vmem:[#allocation7 + $0x3a0] sm:$0xff]
    %v344 = vld [vmem:[#allocation7 + $0x3a8] sm:$0xff]
    %v345 = vld [vmem:[#allocation7 + $0x3b0] sm:$0xff]
    %v346 = vld [vmem:[#allocation7 + $0x3b8] sm:$0xff]
    %v347 = vld [vmem:[#allocation7 + $0x3c0] sm:$0xff]
    %v348 = vld [vmem:[#allocation7 + $0x3c8] sm:$0xff]
    %v349 = vld [vmem:[#allocation7 + $0x3d0] sm:$0xff]
    %v350 = vld [vmem:[#allocation7 + $0x3d8] sm:$0xff]
    %v351 = vld [vmem:[#allocation7 + $0x3e0] sm:$0xff]
    %v352 = vld [vmem:[#allocation7 + $0x3e8] sm:$0xff]
    %v353 = vld [vmem:[#allocation7 + $0x3f0] sm:$0xff]
    %v354 = vld [vmem:[#allocation7 + $0x3f8] sm:$0xff]
    %v355 = vld [vmem:[%s9] sm:$0xff]
    %v356 = vld [vmem:[%s9 + $0x8] sm:$0xff]
    %v357 = vld [vmem:[%s9 + $0x10] sm:$0xff]
    %v358 = vld [vmem:[%s9 + $0x18] sm:$0xff]
    %v363 = vlaneseq
    %v364 = vshrl.u32 %v363, 7
    %v365 = vsub.s32 0, %v364
    %v366 = vrot.slane %v355, %v365
    %v367 = vlaneseq
    %v368 = vshrl.u32 %v367, 7
    %v369 = vsub.s32 1, %v368
    %v370 = vrot.slane %v355, %v369
    %v371 = vlaneseq
    %v372 = vshrl.u32 %v371, 7
    %v373 = vsub.s32 2, %v372
    %v374 = vrot.slane %v355, %v373
    %v375 = vlaneseq
    %v376 = vshrl.u32 %v375, 7
    %v377 = vsub.s32 3, %v376
    %v378 = vrot.slane %v355, %v377
    %v379 = vlaneseq
    %v380 = vshrl.u32 %v379, 7
    %v381 = vsub.s32 4, %v380
    %v382 = vrot.slane %v355, %v381
    %v383 = vlaneseq
    %v384 = vshrl.u32 %v383, 7
    %v385 = vsub.s32 5, %v384
    %v386 = vrot.slane %v355, %v385
    %v387 = vlaneseq
    %v388 = vshrl.u32 %v387, 7
    %v389 = vsub.s32 6, %v388
    %v390 = vrot.slane %v355, %v389
    %v391 = vlaneseq
    %v392 = vshrl.u32 %v391, 7
    %v393 = vsub.s32 7, %v392
    %v394 = vrot.slane %v355, %v393
    %v395 = vlaneseq
    %v396 = vshrl.u32 %v395, 7
    %v397 = vsub.s32 0, %v396
    %v398 = vrot.slane %v356, %v397
    %v399 = vlaneseq
    %v400 = vshrl.u32 %v399, 7
    %v401 = vsub.s32 1, %v400
    %v402 = vrot.slane %v356, %v401
    %v403 = vlaneseq
    %v404 = vshrl.u32 %v403, 7
    %v405 = vsub.s32 2, %v404
    %v406 = vrot.slane %v356, %v405
    %v407 = vlaneseq
    %v408 = vshrl.u32 %v407, 7
    %v409 = vsub.s32 3, %v408
    %v410 = vrot.slane %v356, %v409
    %v411 = vlaneseq
    %v412 = vshrl.u32 %v411, 7
    %v413 = vsub.s32 4, %v412
    %v414 = vrot.slane %v356, %v413
    %v415 = vlaneseq
    %v416 = vshrl.u32 %v415, 7
    %v417 = vsub.s32 5, %v416
    %v418 = vrot.slane %v356, %v417
    %v419 = vlaneseq
    %v420 = vshrl.u32 %v419, 7
    %v421 = vsub.s32 6, %v420
    %v422 = vrot.slane %v356, %v421
    %v423 = vlaneseq
    %v424 = vshrl.u32 %v423, 7
    %v425 = vsub.s32 7, %v424
    %v426 = vrot.slane %v356, %v425
    %v427 = vlaneseq
    %v428 = vshrl.u32 %v427, 7
    %v429 = vsub.s32 0, %v428
    %v430 = vrot.slane %v357, %v429
    %v431 = vlaneseq
    %v432 = vshrl.u32 %v431, 7
    %v433 = vsub.s32 1, %v432
    %v434 = vrot.slane %v357, %v433
    %v435 = vlaneseq
    %v436 = vshrl.u32 %v435, 7
    %v437 = vsub.s32 2, %v436
    %v438 = vrot.slane %v357, %v437
    %v439 = vlaneseq
    %v440 = vshrl.u32 %v439, 7
    %v441 = vsub.s32 3, %v440
    %v442 = vrot.slane %v357, %v441
    %v443 = vlaneseq
    %v444 = vshrl.u32 %v443, 7
    %v445 = vsub.s32 4, %v444
    %v446 = vrot.slane %v357, %v445
    %v447 = vlaneseq
    %v448 = vshrl.u32 %v447, 7
    %v449 = vsub.s32 5, %v448
    %v450 = vrot.slane %v357, %v449
    %v451 = vlaneseq
    %v452 = vshrl.u32 %v451, 7
    %v453 = vsub.s32 6, %v452
    %v454 = vrot.slane %v357, %v453
    %v455 = vlaneseq
    %v456 = vshrl.u32 %v455, 7
    %v457 = vsub.s32 7, %v456
    %v458 = vrot.slane %v357, %v457
    %v459 = vlaneseq
    %v460 = vshrl.u32 %v459, 7
    %v461 = vsub.s32 0, %v460
    %v462 = vrot.slane %v358, %v461
    %v463 = vlaneseq
    %v464 = vshrl.u32 %v463, 7
    %v465 = vsub.s32 1, %v464
    %v466 = vrot.slane %v358, %v465
    %v467 = vlaneseq
    %v468 = vshrl.u32 %v467, 7
    %v469 = vsub.s32 2, %v468
    %v470 = vrot.slane %v358, %v469
    %v471 = vlaneseq
    %v472 = vshrl.u32 %v471, 7
    %v473 = vsub.s32 3, %v472
    %v474 = vrot.slane %v358, %v473
    %v475 = vlaneseq
    %v476 = vshrl.u32 %v475, 7
    %v477 = vsub.s32 4, %v476
    %v478 = vrot.slane %v358, %v477
    %v479 = vlaneseq
    %v480 = vshrl.u32 %v479, 7
    %v481 = vsub.s32 5, %v480
    %v482 = vrot.slane %v358, %v481
    %v483 = vlaneseq
    %v484 = vshrl.u32 %v483, 7
    %v485 = vsub.s32 6, %v484
    %v486 = vrot.slane %v358, %v485
    %v487 = vlaneseq
    %v488 = vshrl.u32 %v487, 7
    %v489 = vsub.s32 7, %v488
    %v490 = vrot.slane %v358, %v489
    %vm523 = vcmask 261120
    %v525 = vsel %vm523, %v225, 0
    %v528 = vsel %vm523, %v226, 0
    %530 = vmatprep.subr.mxu0 %v228
    %531 = vmatpush1.msra.mxu0 %v227
    %532 = vmatprep.subr.mxu0 %v260
    %533 = vmatpush1.msra.mxu0 %v259
    %534 = vmatprep.subr.mxu0 %v292
    %535 = vmatpush1.msra.mxu0 %v291
    %536 = vmatprep.subr.mxu0 %v324
    %537 = vmatpush1.msra.mxu0 %v323
    %538 = vmatprep.subr.mxu0 0.0
    %539 = vmatpush1.msra.mxu0 0.0
    %540 = vmatprep.subr.mxu0 0.0
    %541 = vmatpush1.msra.mxu0 0.0
    %542 = vmatprep.subr.mxu0 0.0
    %543 = vmatpush1.msra.mxu0 0.0
    %544 = vmatprep.subr.mxu0 0.0
    %545 = vmatpush1.msra.mxu0 0.0
    %546 = vmatprep.subr.mxu0 0.0
    %547 = vmatpush1.msra.mxu0 0.0
    %548 = vmatprep.subr.mxu0 0.0
    %549 = vmatpush1.msra.mxu0 0.0
    %550 = vmatprep.subr.mxu0 0.0
    %551 = vmatpush1.msra.mxu0 0.0
    %552 = vmatprep.subr.mxu0 0.0
    %553 = vmatpush1.msra.mxu0 0.0
    %554 = vmatprep.subr.mxu0 0.0
    %555 = vmatpush1.msra.mxu0 0.0
    %556 = vmatprep.subr.mxu0 0.0
    %557 = vmatpush1.msra.mxu0 0.0
    %558 = vmatprep.subr.mxu0 0.0
    %559 = vmatpush1.msra.mxu0 0.0
    %560 = vmatprep.subr.mxu0 0.0
    %561 = vmatpush1.msra.mxu0 0.0
    %562 = vmatprep.subr.mxu0 0.0
    %563 = vmatpush1.msra.mxu0 0.0
    %564 = vmatprep.subr.mxu0 0.0
    %565 = vmatpush1.msra.mxu0 0.0
    %566 = vmatprep.subr.mxu0 0.0
    %567 = vmatpush1.msra.mxu0 0.0
    %568 = vmatprep.subr.mxu0 0.0
    %569 = vmatpush1.msra.mxu0 0.0
    %570 = vmatprep.subr.mxu0 0.0
    %571 = vmatpush1.msra.mxu0 0.0
    %572 = vmatprep.subr.mxu0 0.0
    %573 = vmatpush1.msra.mxu0 0.0
    %574 = vmatprep.subr.mxu0 0.0
    %575 = vmatpush1.msra.mxu0 0.0
    %576 = vmatprep.subr.mxu0 0.0
    %577 = vmatpush1.msra.mxu0 0.0
    %578 = vmatprep.subr.mxu0 0.0
    %579 = vmatpush1.msra.mxu0 0.0
    %580 = vmatprep.subr.mxu0 0.0
    %581 = vmatpush1.msra.mxu0 0.0
    %582 = vmatprep.subr.mxu0 0.0
    %583 = vmatpush1.msra.mxu0 0.0
    %584 = vmatprep.subr.mxu0 0.0
    %585 = vmatpush1.msra.mxu0 0.0
    %586 = vmatprep.subr.mxu0 0.0
    %587 = vmatpush1.msra.mxu0 0.0
    %588 = vmatprep.subr.mxu0 0.0
    %589 = vmatpush1.msra.mxu0 0.0
    %590 = vmatprep.subr.mxu0 0.0
    %591 = vmatpush1.msra.mxu0 0.0
    %592 = vmatprep.subr.mxu0 0.0
    %593 = vmatpush1.msra.mxu0 0.0
    %594 = vmatprep.mubr.f32.mxu0 0.0
    %595 = vmatmul.mubr.f32.gmra.mrb[0].mxu0 %v525
    %v596 = vpop.f32.mrb[0].mxu0
    %v597 = vadd.f32 %v366, %v596
    %v598 = vpop.f32.mrb[0].mxu0
    %v599 = vadd.f32 %v370, %v598
    %600 = vmatprep.mubr.f32.mxu0 0.0
    %601 = vmatmul.mubr.f32.gmra.mrb[0].mxu0 %v528
    %v602 = vpop.f32.mrb[0].mxu0
    %v603 = vadd.f32 %v366, %v602
    %v604 = vpop.f32.mrb[0].mxu0
    %v605 = vadd.f32 %v370, %v604
    %606 = vdwg.mxu0
    %607 = vmatprep.subr.mxu0 %v230
    %608 = vmatpush1.msra.mxu0 %v229
    %609 = vmatprep.subr.mxu0 %v262
    %610 = vmatpush1.msra.mxu0 %v261
    %611 = vmatprep.subr.mxu0 %v294
    %612 = vmatpush1.msra.mxu0 %v293
    %613 = vmatprep.subr.mxu0 %v326
    %614 = vmatpush1.msra.mxu0 %v325
    %615 = vmatprep.subr.mxu0 0.0
    %616 = vmatpush1.msra.mxu0 0.0
    %617 = vmatprep.subr.mxu0 0.0
    %618 = vmatpush1.msra.mxu0 0.0
    %619 = vmatprep.subr.mxu0 0.0
    %620 = vmatpush1.msra.mxu0 0.0
    %621 = vmatprep.subr.mxu0 0.0
    %622 = vmatpush1.msra.mxu0 0.0
    %623 = vmatprep.subr.mxu0 0.0
    %624 = vmatpush1.msra.mxu0 0.0
    %625 = vmatprep.subr.mxu0 0.0
    %626 = vmatpush1.msra.mxu0 0.0
    %627 = vmatprep.subr.mxu0 0.0
    %628 = vmatpush1.msra.mxu0 0.0
    %629 = vmatprep.subr.mxu0 0.0
    %630 = vmatpush1.msra.mxu0 0.0
    %631 = vmatprep.subr.mxu0 0.0
    %632 = vmatpush1.msra.mxu0 0.0
    %633 = vmatprep.subr.mxu0 0.0
    %634 = vmatpush1.msra.mxu0 0.0
    %635 = vmatprep.subr.mxu0 0.0
    %636 = vmatpush1.msra.mxu0 0.0
    %637 = vmatprep.subr.mxu0 0.0
    %638 = vmatpush1.msra.mxu0 0.0
    %639 = vmatprep.subr.mxu0 0.0
    %640 = vmatpush1.msra.mxu0 0.0
    %641 = vmatprep.subr.mxu0 0.0
    %642 = vmatpush1.msra.mxu0 0.0
    %643 = vmatprep.subr.mxu0 0.0
    %644 = vmatpush1.msra.mxu0 0.0
    %645 = vmatprep.subr.mxu0 0.0
    %646 = vmatpush1.msra.mxu0 0.0
    %647 = vmatprep.subr.mxu0 0.0
    %648 = vmatpush1.msra.mxu0 0.0
    %649 = vmatprep.subr.mxu0 0.0
    %650 = vmatpush1.msra.mxu0 0.0
    %651 = vmatprep.subr.mxu0 0.0
    %652 = vmatpush1.msra.mxu0 0.0
    %653 = vmatprep.subr.mxu0 0.0
    %654 = vmatpush1.msra.mxu0 0.0
    %655 = vmatprep.subr.mxu0 0.0
    %656 = vmatpush1.msra.mxu0 0.0
    %657 = vmatprep.subr.mxu0 0.0
    %658 = vmatpush1.msra.mxu0 0.0
    %659 = vmatprep.subr.mxu0 0.0
    %660 = vmatpush1.msra.mxu0 0.0
    %661 = vmatprep.subr.mxu0 0.0
    %662 = vmatpush1.msra.mxu0 0.0
    %663 = vmatprep.subr.mxu0 0.0
    %664 = vmatpush1.msra.mxu0 0.0
    %665 = vmatprep.subr.mxu0 0.0
    %666 = vmatpush1.msra.mxu0 0.0
    %667 = vmatprep.subr.mxu0 0.0
    %668 = vmatpush1.msra.mxu0 0.0
    %669 = vmatprep.subr.mxu0 0.0
    %670 = vmatpush1.msra.mxu0 0.0
    %671 = vmatprep.mubr.f32.mxu0 0.0
    %672 = vmatmul.mubr.f32.gmra.mrb[0].mxu0 %v525
    %v673 = vpop.f32.mrb[0].mxu0
    %v674 = vadd.f32 %v374, %v673
    %v675 = vpop.f32.mrb[0].mxu0
    %v676 = vadd.f32 %v378, %v675
    %677 = vmatprep.mubr.f32.mxu0 0.0
    %678 = vmatmul.mubr.f32.gmra.mrb[0].mxu0 %v528
    %v679 = vpop.f32.mrb[0].mxu0
    %v680 = vadd.f32 %v374, %v679
    %v681 = vpop.f32.mrb[0].mxu0
    %v682 = vadd.f32 %v378, %v681
    %683 = vdwg.mxu0
    %684 = vmatprep.subr.mxu0 %v232
    %685 = vmatpush1.msra.mxu0 %v231
    %686 = vmatprep.subr.mxu0 %v264
    %687 = vmatpush1.msra.mxu0 %v263
    %688 = vmatprep.subr.mxu0 %v296
    %689 = vmatpush1.msra.mxu0 %v295
    %690 = vmatprep.subr.mxu0 %v328
    %691 = vmatpush1.msra.mxu0 %v327
    %692 = vmatprep.subr.mxu0 0.0
    %693 = vmatpush1.msra.mxu0 0.0
    %694 = vmatprep.subr.mxu0 0.0
    %695 = vmatpush1.msra.mxu0 0.0
    %696 = vmatprep.subr.mxu0 0.0
    %697 = vmatpush1.msra.mxu0 0.0
    %698 = vmatprep.subr.mxu0 0.0
    %699 = vmatpush1.msra.mxu0 0.0
    %700 = vmatprep.subr.mxu0 0.0
    %701 = vmatpush1.msra.mxu0 0.0
    %702 = vmatprep.subr.mxu0 0.0
    %703 = vmatpush1.msra.mxu0 0.0
    %704 = vmatprep.subr.mxu0 0.0
    %705 = vmatpush1.msra.mxu0 0.0
    %706 = vmatprep.subr.mxu0 0.0
    %707 = vmatpush1.msra.mxu0 0.0
    %708 = vmatprep.subr.mxu0 0.0
    %709 = vmatpush1.msra.mxu0 0.0
    %710 = vmatprep.subr.mxu0 0.0
    %711 = vmatpush1.msra.mxu0 0.0
    %712 = vmatprep.subr.mxu0 0.0
    %713 = vmatpush1.msra.mxu0 0.0
    %714 = vmatprep.subr.mxu0 0.0
    %715 = vmatpush1.msra.mxu0 0.0
    %716 = vmatprep.subr.mxu0 0.0
    %717 = vmatpush1.msra.mxu0 0.0
    %718 = vmatprep.subr.mxu0 0.0
    %719 = vmatpush1.msra.mxu0 0.0
    %720 = vmatprep.subr.mxu0 0.0
    %721 = vmatpush1.msra.mxu0 0.0
    %722 = vmatprep.subr.mxu0 0.0
    %723 = vmatpush1.msra.mxu0 0.0
    %724 = vmatprep.subr.mxu0 0.0
    %725 = vmatpush1.msra.mxu0 0.0
    %726 = vmatprep.subr.mxu0 0.0
    %727 = vmatpush1.msra.mxu0 0.0
    %728 = vmatprep.subr.mxu0 0.0
    %729 = vmatpush1.msra.mxu0 0.0
    %730 = vmatprep.subr.mxu0 0.0
    %731 = vmatpush1.msra.mxu0 0.0
    %732 = vmatprep.subr.mxu0 0.0
    %733 = vmatpush1.msra.mxu0 0.0
    %734 = vmatprep.subr.mxu0 0.0
    %735 = vmatpush1.msra.mxu0 0.0
    %736 = vmatprep.subr.mxu0 0.0
    %737 = vmatpush1.msra.mxu0 0.0
    %738 = vmatprep.subr.mxu0 0.0
    %739 = vmatpush1.msra.mxu0 0.0
    %740 = vmatprep.subr.mxu0 0.0
    %741 = vmatpush1.msra.mxu0 0.0
    %742 = vmatprep.subr.mxu0 0.0
    %743 = vmatpush1.msra.mxu0 0.0
    %744 = vmatprep.subr.mxu0 0.0
    %745 = vmatpush1.msra.mxu0 0.0
    %746 = vmatprep.subr.mxu0 0.0
    %747 = vmatpush1.msra.mxu0 0.0
    %748 = vmatprep.mubr.f32.mxu0 0.0
    %749 = vmatmul.mubr.f32.gmra.mrb[0].mxu0 %v525
    %v750 = vpop.f32.mrb[0].mxu0
    %v751 = vadd.f32 %v382, %v750
    %v752 = vpop.f32.mrb[0].mxu0
    %v753 = vadd.f32 %v386, %v752
    %754 = vmatprep.mubr.f32.mxu0 0.0
    %755 = vmatmul.mubr.f32.gmra.mrb[0].mxu0 %v528
    %v756 = vpop.f32.mrb[0].mxu0
    %v757 = vadd.f32 %v382, %v756
    %v758 = vpop.f32.mrb[0].mxu0
    %v759 = vadd.f32 %v386, %v758
    %760 = vdwg.mxu0
    %761 = vmatprep.subr.mxu0 %v234
    %762 = vmatpush1.msra.mxu0 %v233
    %763 = vmatprep.subr.mxu0 %v266
    %764 = vmatpush1.msra.mxu0 %v265
    %765 = vmatprep.subr.mxu0 %v298
    %766 = vmatpush1.msra.mxu0 %v297
    %767 = vmatprep.subr.mxu0 %v330
    %768 = vmatpush1.msra.mxu0 %v329
    %769 = vmatprep.subr.mxu0 0.0
    %770 = vmatpush1.msra.mxu0 0.0
    %771 = vmatprep.subr.mxu0 0.0
    %772 = vmatpush1.msra.mxu0 0.0
    %773 = vmatprep.subr.mxu0 0.0
    %774 = vmatpush1.msra.mxu0 0.0
    %775 = vmatprep.subr.mxu0 0.0
    %776 = vmatpush1.msra.mxu0 0.0
    %777 = vmatprep.subr.mxu0 0.0
    %778 = vmatpush1.msra.mxu0 0.0
    %779 = vmatprep.subr.mxu0 0.0
    %780 = vmatpush1.msra.mxu0 0.0
    %781 = vmatprep.subr.mxu0 0.0
    %782 = vmatpush1.msra.mxu0 0.0
    %783 = vmatprep.subr.mxu0 0.0
    %784 = vmatpush1.msra.mxu0 0.0
    %785 = vmatprep.subr.mxu0 0.0
    %786 = vmatpush1.msra.mxu0 0.0
    %787 = vmatprep.subr.mxu0 0.0
    %788 = vmatpush1.msra.mxu0 0.0
    %789 = vmatprep.subr.mxu0 0.0
    %790 = vmatpush1.msra.mxu0 0.0
    %791 = vmatprep.subr.mxu0 0.0
    %792 = vmatpush1.msra.mxu0 0.0
    %793 = vmatprep.subr.mxu0 0.0
    %794 = vmatpush1.msra.mxu0 0.0
    %795 = vmatprep.subr.mxu0 0.0
    %796 = vmatpush1.msra.mxu0 0.0
    %797 = vmatprep.subr.mxu0 0.0
    %798 = vmatpush1.msra.mxu0 0.0
    %799 = vmatprep.subr.mxu0 0.0
    %800 = vmatpush1.msra.mxu0 0.0
    %801 = vmatprep.subr.mxu0 0.0
    %802 = vmatpush1.msra.mxu0 0.0
    %803 = vmatprep.subr.mxu0 0.0
    %804 = vmatpush1.msra.mxu0 0.0
    %805 = vmatprep.subr.mxu0 0.0
    %806 = vmatpush1.msra.mxu0 0.0
    %807 = vmatprep.subr.mxu0 0.0
    %808 = vmatpush1.msra.mxu0 0.0
    %809 = vmatprep.subr.mxu0 0.0
    %810 = vmatpush1.msra.mxu0 0.0
    %811 = vmatprep.subr.mxu0 0.0
    %812 = vmatpush1.msra.mxu0 0.0
    %813 = vmatprep.subr.mxu0 0.0
    %814 = vmatpush1.msra.mxu0 0.0
    %815 = vmatprep.subr.mxu0 0.0
    %816 = vmatpush1.msra.mxu0 0.0
    %817 = vmatprep.subr.mxu0 0.0
    %818 = vmatpush1.msra.mxu0 0.0
    %819 = vmatprep.subr.mxu0 0.0
    %820 = vmatpush1.msra.mxu0 0.0
    %821 = vmatprep.subr.mxu0 0.0
    %822 = vmatpush1.msra.mxu0 0.0
    %823 = vmatprep.subr.mxu0 0.0
    %824 = vmatpush1.msra.mxu0 0.0
    %825 = vmatprep.mubr.f32.mxu0 0.0
    %826 = vmatmul.mubr.f32.gmra.mrb[0].mxu0 %v525
    %v827 = vpop.f32.mrb[0].mxu0
    %v828 = vadd.f32 %v390, %v827
    %v829 = vpop.f32.mrb[0].mxu0
    %v830 = vadd.f32 %v394, %v829
    %831 = vmatprep.mubr.f32.mxu0 0.0
    %832 = vmatmul.mubr.f32.gmra.mrb[0].mxu0 %v528
    %v833 = vpop.f32.mrb[0].mxu0
    %v834 = vadd.f32 %v390, %v833
    %v835 = vpop.f32.mrb[0].mxu0
    %v836 = vadd.f32 %v394, %v835
    %837 = vdwg.mxu0
    %838 = vmatprep.subr.mxu0 %v236
    %839 = vmatpush1.msra.mxu0 %v235
    %840 = vmatprep.subr.mxu0 %v268
    %841 = vmatpush1.msra.mxu0 %v267
    %842 = vmatprep.subr.mxu0 %v300
    %843 = vmatpush1.msra.mxu0 %v299
    %844 = vmatprep.subr.mxu0 %v332
    %845 = vmatpush1.msra.mxu0 %v331
    %846 = vmatprep.subr.mxu0 0.0
    %847 = vmatpush1.msra.mxu0 0.0
    %848 = vmatprep.subr.mxu0 0.0
    %849 = vmatpush1.msra.mxu0 0.0
    %850 = vmatprep.subr.mxu0 0.0
    %851 = vmatpush1.msra.mxu0 0.0
    %852 = vmatprep.subr.mxu0 0.0
    %853 = vmatpush1.msra.mxu0 0.0
    %854 = vmatprep.subr.mxu0 0.0
    %855 = vmatpush1.msra.mxu0 0.0
    %856 = vmatprep.subr.mxu0 0.0
    %857 = vmatpush1.msra.mxu0 0.0
    %858 = vmatprep.subr.mxu0 0.0
    %859 = vmatpush1.msra.mxu0 0.0
    %860 = vmatprep.subr.mxu0 0.0
    %861 = vmatpush1.msra.mxu0 0.0
    %862 = vmatprep.subr.mxu0 0.0
    %863 = vmatpush1.msra.mxu0 0.0
    %864 = vmatprep.subr.mxu0 0.0
    %865 = vmatpush1.msra.mxu0 0.0
    %866 = vmatprep.subr.mxu0 0.0
    %867 = vmatpush1.msra.mxu0 0.0
    %868 = vmatprep.subr.mxu0 0.0
    %869 = vmatpush1.msra.mxu0 0.0
    %870 = vmatprep.subr.mxu0 0.0
    %871 = vmatpush1.msra.mxu0 0.0
    %872 = vmatprep.subr.mxu0 0.0
    %873 = vmatpush1.msra.mxu0 0.0
    %874 = vmatprep.subr.mxu0 0.0
    %875 = vmatpush1.msra.mxu0 0.0
    %876 = vmatprep.subr.mxu0 0.0
    %877 = vmatpush1.msra.mxu0 0.0
    %878 = vmatprep.subr.mxu0 0.0
    %879 = vmatpush1.msra.mxu0 0.0
    %880 = vmatprep.subr.mxu0 0.0
    %881 = vmatpush1.msra.mxu0 0.0
    %882 = vmatprep.subr.mxu0 0.0
    %883 = vmatpush1.msra.mxu0 0.0
    %884 = vmatprep.subr.mxu0 0.0
    %885 = vmatpush1.msra.mxu0 0.0
    %886 = vmatprep.subr.mxu0 0.0
    %887 = vmatpush1.msra.mxu0 0.0
    %888 = vmatprep.subr.mxu0 0.0
    %889 = vmatpush1.msra.mxu0 0.0
    %890 = vmatprep.subr.mxu0 0.0
    %891 = vmatpush1.msra.mxu0 0.0
    %892 = vmatprep.subr.mxu0 0.0
    %893 = vmatpush1.msra.mxu0 0.0
    %894 = vmatprep.subr.mxu0 0.0
    %895 = vmatpush1.msra.mxu0 0.0
    %896 = vmatprep.subr.mxu0 0.0
    %897 = vmatpush1.msra.mxu0 0.0
    %898 = vmatprep.subr.mxu0 0.0
    %899 = vmatpush1.msra.mxu0 0.0
    %900 = vmatprep.subr.mxu0 0.0
    %901 = vmatpush1.msra.mxu0 0.0
    %902 = vmatprep.mubr.f32.mxu0 0.0
    %903 = vmatmul.mubr.f32.gmra.mrb[0].mxu0 %v525
    %v904 = vpop.f32.mrb[0].mxu0
    %v905 = vadd.f32 %v398, %v904
    %v906 = vpop.f32.mrb[0].mxu0
    %v907 = vadd.f32 %v402, %v906
    %908 = vmatprep.mubr.f32.mxu0 0.0
    %909 = vmatmul.mubr.f32.gmra.mrb[0].mxu0 %v528
    %v910 = vpop.f32.mrb[0].mxu0
    %v911 = vadd.f32 %v398, %v910
    %v912 = vpop.f32.mrb[0].mxu0
    %v913 = vadd.f32 %v402, %v912
    %914 = vdwg.mxu0
    %915 = vmatprep.subr.mxu0 %v238
    %916 = vmatpush1.msra.mxu0 %v237
    %917 = vmatprep.subr.mxu0 %v270
    %918 = vmatpush1.msra.mxu0 %v269
    %919 = vmatprep.subr.mxu0 %v302
    %920 = vmatpush1.msra.mxu0 %v301
    %921 = vmatprep.subr.mxu0 %v334
    %922 = vmatpush1.msra.mxu0 %v333
    %923 = vmatprep.subr.mxu0 0.0
    %924 = vmatpush1.msra.mxu0 0.0
    %925 = vmatprep.subr.mxu0 0.0
    %926 = vmatpush1.msra.mxu0 0.0
    %927 = vmatprep.subr.mxu0 0.0
    %928 = vmatpush1.msra.mxu0 0.0
    %929 = vmatprep.subr.mxu0 0.0
    %930 = vmatpush1.msra.mxu0 0.0
    %931 = vmatprep.subr.mxu0 0.0
    %932 = vmatpush1.msra.mxu0 0.0
    %933 = vmatprep.subr.mxu0 0.0
    %934 = vmatpush1.msra.mxu0 0.0
    %935 = vmatprep.subr.mxu0 0.0
    %936 = vmatpush1.msra.mxu0 0.0
    %937 = vmatprep.subr.mxu0 0.0
    %938 = vmatpush1.msra.mxu0 0.0
    %939 = vmatprep.subr.mxu0 0.0
    %940 = vmatpush1.msra.mxu0 0.0
    %941 = vmatprep.subr.mxu0 0.0
    %942 = vmatpush1.msra.mxu0 0.0
    %943 = vmatprep.subr.mxu0 0.0
    %944 = vmatpush1.msra.mxu0 0.0
    %945 = vmatprep.subr.mxu0 0.0
    %946 = vmatpush1.msra.mxu0 0.0
    %947 = vmatprep.subr.mxu0 0.0
    %948 = vmatpush1.msra.mxu0 0.0
    %949 = vmatprep.subr.mxu0 0.0
    %950 = vmatpush1.msra.mxu0 0.0
    %951 = vmatprep.subr.mxu0 0.0
    %952 = vmatpush1.msra.mxu0 0.0
    %953 = vmatprep.subr.mxu0 0.0
    %954 = vmatpush1.msra.mxu0 0.0
    %955 = vmatprep.subr.mxu0 0.0
    %956 = vmatpush1.msra.mxu0 0.0
    %957 = vmatprep.subr.mxu0 0.0
    %958 = vmatpush1.msra.mxu0 0.0
    %959 = vmatprep.subr.mxu0 0.0
    %960 = vmatpush1.msra.mxu0 0.0
    %961 = vmatprep.subr.mxu0 0.0
    %962 = vmatpush1.msra.mxu0 0.0
    %963 = vmatprep.subr.mxu0 0.0
    %964 = vmatpush1.msra.mxu0 0.0
    %965 = vmatprep.subr.mxu0 0.0
    %966 = vmatpush1.msra.mxu0 0.0
    %967 = vmatprep.subr.mxu0 0.0
    %968 = vmatpush1.msra.mxu0 0.0
    %969 = vmatprep.subr.mxu0 0.0
    %970 = vmatpush1.msra.mxu0 0.0
    %971 = vmatprep.subr.mxu0 0.0
    %972 = vmatpush1.msra.mxu0 0.0
    %973 = vmatprep.subr.mxu0 0.0
    %974 = vmatpush1.msra.mxu0 0.0
    %975 = vmatprep.subr.mxu0 0.0
    %976 = vmatpush1.msra.mxu0 0.0
    %977 = vmatprep.subr.mxu0 0.0
    %978 = vmatpush1.msra.mxu0 0.0
    %979 = vmatprep.mubr.f32.mxu0 0.0
    %980 = vmatmul.mubr.f32.gmra.mrb[0].mxu0 %v525
    %v981 = vpop.f32.mrb[0].mxu0
    %v982 = vadd.f32 %v406, %v981
    %v983 = vpop.f32.mrb[0].mxu0
    %v984 = vadd.f32 %v410, %v983
    %985 = vmatprep.mubr.f32.mxu0 0.0
    %986 = vmatmul.mubr.f32.gmra.mrb[0].mxu0 %v528
    %v987 = vpop.f32.mrb[0].mxu0
    %v988 = vadd.f32 %v406, %v987
    %v989 = vpop.f32.mrb[0].mxu0
    %v990 = vadd.f32 %v410, %v989
    %991 = vdwg.mxu0
    %992 = vmatprep.subr.mxu0 %v240
    %993 = vmatpush1.msra.mxu0 %v239
    %994 = vmatprep.subr.mxu0 %v272
    %995 = vmatpush1.msra.mxu0 %v271
    %996 = vmatprep.subr.mxu0 %v304
    %997 = vmatpush1.msra.mxu0 %v303
    %998 = vmatprep.subr.mxu0 %v336
    %999 = vmatpush1.msra.mxu0 %v335
    %1000 = vmatprep.subr.mxu0 0.0
    %1001 = vmatpush1.msra.mxu0 0.0
    %1002 = vmatprep.subr.mxu0 0.0
    %1003 = vmatpush1.msra.mxu0 0.0
    %1004 = vmatprep.subr.mxu0 0.0
    %1005 = vmatpush1.msra.mxu0 0.0
    %1006 = vmatprep.subr.mxu0 0.0
    %1007 = vmatpush1.msra.mxu0 0.0
    %1008 = vmatprep.subr.mxu0 0.0
    %1009 = vmatpush1.msra.mxu0 0.0
    %1010 = vmatprep.subr.mxu0 0.0
    %1011 = vmatpush1.msra.mxu0 0.0
    %1012 = vmatprep.subr.mxu0 0.0
    %1013 = vmatpush1.msra.mxu0 0.0
    %1014 = vmatprep.subr.mxu0 0.0
    %1015 = vmatpush1.msra.mxu0 0.0
    %1016 = vmatprep.subr.mxu0 0.0
    %1017 = vmatpush1.msra.mxu0 0.0
    %1018 = vmatprep.subr.mxu0 0.0
    %1019 = vmatpush1.msra.mxu0 0.0
    %1020 = vmatprep.subr.mxu0 0.0
    %1021 = vmatpush1.msra.mxu0 0.0
    %1022 = vmatprep.subr.mxu0 0.0
    %1023 = vmatpush1.msra.mxu0 0.0
    %1024 = vmatprep.subr.mxu0 0.0
    %1025 = vmatpush1.msra.mxu0 0.0
    %1026 = vmatprep.subr.mxu0 0.0
    %1027 = vmatpush1.msra.mxu0 0.0
    %1028 = vmatprep.subr.mxu0 0.0
    %1029 = vmatpush1.msra.mxu0 0.0
    %1030 = vmatprep.subr.mxu0 0.0
    %1031 = vmatpush1.msra.mxu0 0.0
    %1032 = vmatprep.subr.mxu0 0.0
    %1033 = vmatpush1.msra.mxu0 0.0
    %1034 = vmatprep.subr.mxu0 0.0
    %1035 = vmatpush1.msra.mxu0 0.0
    %1036 = vmatprep.subr.mxu0 0.0
    %1037 = vmatpush1.msra.mxu0 0.0
    %1038 = vmatprep.subr.mxu0 0.0
    %1039 = vmatpush1.msra.mxu0 0.0
    %1040 = vmatprep.subr.mxu0 0.0
    %1041 = vmatpush1.msra.mxu0 0.0
    %1042 = vmatprep.subr.mxu0 0.0
    %1043 = vmatpush1.msra.mxu0 0.0
    %1044 = vmatprep.subr.mxu0 0.0
    %1045 = vmatpush1.msra.mxu0 0.0
    %1046 = vmatprep.subr.mxu0 0.0
    %1047 = vmatpush1.msra.mxu0 0.0
    %1048 = vmatprep.subr.mxu0 0.0
    %1049 = vmatpush1.msra.mxu0 0.0
    %1050 = vmatprep.subr.mxu0 0.0
    %1051 = vmatpush1.msra.mxu0 0.0
    %1052 = vmatprep.subr.mxu0 0.0
    %1053 = vmatpush1.msra.mxu0 0.0
    %1054 = vmatprep.subr.mxu0 0.0
    %1055 = vmatpush1.msra.mxu0 0.0
    %1056 = vmatprep.mubr.f32.mxu0 0.0
    %1057 = vmatmul.mubr.f32.gmra.mrb[0].mxu0 %v525
    %v1058 = vpop.f32.mrb[0].mxu0
    %v1059 = vadd.f32 %v414, %v1058
    %v1060 = vpop.f32.mrb[0].mxu0
    %v1061 = vadd.f32 %v418, %v1060
    %1062 = vmatprep.mubr.f32.mxu0 0.0
    %1063 = vmatmul.mubr.f32.gmra.mrb[0].mxu0 %v528
    %v1064 = vpop.f32.mrb[0].mxu0
    %v1065 = vadd.f32 %v414, %v1064
    %v1066 = vpop.f32.mrb[0].mxu0
    %v1067 = vadd.f32 %v418, %v1066
    %1068 = vdwg.mxu0
    %1069 = vmatprep.subr.mxu0 %v242
    %1070 = vmatpush1.msra.mxu0 %v241
    %1071 = vmatprep.subr.mxu0 %v274
    %1072 = vmatpush1.msra.mxu0 %v273
    %1073 = vmatprep.subr.mxu0 %v306
    %1074 = vmatpush1.msra.mxu0 %v305
    %1075 = vmatprep.subr.mxu0 %v338
    %1076 = vmatpush1.msra.mxu0 %v337
    %1077 = vmatprep.subr.mxu0 0.0
    %1078 = vmatpush1.msra.mxu0 0.0
    %1079 = vmatprep.subr.mxu0 0.0
    %1080 = vmatpush1.msra.mxu0 0.0
    %1081 = vmatprep.subr.mxu0 0.0
    %1082 = vmatpush1.msra.mxu0 0.0
    %1083 = vmatprep.subr.mxu0 0.0
    %1084 = vmatpush1.msra.mxu0 0.0
    %1085 = vmatprep.subr.mxu0 0.0
    %1086 = vmatpush1.msra.mxu0 0.0
    %1087 = vmatprep.subr.mxu0 0.0
    %1088 = vmatpush1.msra.mxu0 0.0
    %1089 = vmatprep.subr.mxu0 0.0
    %1090 = vmatpush1.msra.mxu0 0.0
    %1091 = vmatprep.subr.mxu0 0.0
    %1092 = vmatpush1.msra.mxu0 0.0
    %1093 = vmatprep.subr.mxu0 0.0
    %1094 = vmatpush1.msra.mxu0 0.0
    %1095 = vmatprep.subr.mxu0 0.0
    %1096 = vmatpush1.msra.mxu0 0.0
    %1097 = vmatprep.subr.mxu0 0.0
    %1098 = vmatpush1.msra.mxu0 0.0
    %1099 = vmatprep.subr.mxu0 0.0
    %1100 = vmatpush1.msra.mxu0 0.0
    %1101 = vmatprep.subr.mxu0 0.0
    %1102 = vmatpush1.msra.mxu0 0.0
    %1103 = vmatprep.subr.mxu0 0.0
    %1104 = vmatpush1.msra.mxu0 0.0
    %1105 = vmatprep.subr.mxu0 0.0
    %1106 = vmatpush1.msra.mxu0 0.0
    %1107 = vmatprep.subr.mxu0 0.0
    %1108 = vmatpush1.msra.mxu0 0.0
    %1109 = vmatprep.subr.mxu0 0.0
    %1110 = vmatpush1.msra.mxu0 0.0
    %1111 = vmatprep.subr.mxu0 0.0
    %1112 = vmatpush1.msra.mxu0 0.0
    %1113 = vmatprep.subr.mxu0 0.0
    %1114 = vmatpush1.msra.mxu0 0.0
    %1115 = vmatprep.subr.mxu0 0.0
    %1116 = vmatpush1.msra.mxu0 0.0
    %1117 = vmatprep.subr.mxu0 0.0
    %1118 = vmatpush1.msra.mxu0 0.0
    %1119 = vmatprep.subr.mxu0 0.0
    %1120 = vmatpush1.msra.mxu0 0.0
    %1121 = vmatprep.subr.mxu0 0.0
    %1122 = vmatpush1.msra.mxu0 0.0
    %1123 = vmatprep.subr.mxu0 0.0
    %1124 = vmatpush1.msra.mxu0 0.0
    %1125 = vmatprep.subr.mxu0 0.0
    %1126 = vmatpush1.msra.mxu0 0.0
    %1127 = vmatprep.subr.mxu0 0.0
    %1128 = vmatpush1.msra.mxu0 0.0
    %1129 = vmatprep.subr.mxu0 0.0
    %1130 = vmatpush1.msra.mxu0 0.0
    %1131 = vmatprep.subr.mxu0 0.0
    %1132 = vmatpush1.msra.mxu0 0.0
    %1133 = vmatprep.mubr.f32.mxu0 0.0
    %1134 = vmatmul.mubr.f32.gmra.mrb[0].mxu0 %v525
    %v1135 = vpop.f32.mrb[0].mxu0
    %v1136 = vadd.f32 %v422, %v1135
    %v1137 = vpop.f32.mrb[0].mxu0
    %v1138 = vadd.f32 %v426, %v1137
    %1139 = vmatprep.mubr.f32.mxu0 0.0
    %1140 = vmatmul.mubr.f32.gmra.mrb[0].mxu0 %v528
    %v1141 = vpop.f32.mrb[0].mxu0
    %v1142 = vadd.f32 %v422, %v1141
    %v1143 = vpop.f32.mrb[0].mxu0
    %v1144 = vadd.f32 %v426, %v1143
    %1145 = vdwg.mxu0
    %1146 = vmatprep.subr.mxu0 %v244
    %1147 = vmatpush1.msra.mxu0 %v243
    %1148 = vmatprep.subr.mxu0 %v276
    %1149 = vmatpush1.msra.mxu0 %v275
    %1150 = vmatprep.subr.mxu0 %v308
    %1151 = vmatpush1.msra.mxu0 %v307
    %1152 = vmatprep.subr.mxu0 %v340
    %1153 = vmatpush1.msra.mxu0 %v339
    %1154 = vmatprep.subr.mxu0 0.0
    %1155 = vmatpush1.msra.mxu0 0.0
    %1156 = vmatprep.subr.mxu0 0.0
    %1157 = vmatpush1.msra.mxu0 0.0
    %1158 = vmatprep.subr.mxu0 0.0
    %1159 = vmatpush1.msra.mxu0 0.0
    %1160 = vmatprep.subr.mxu0 0.0
    %1161 = vmatpush1.msra.mxu0 0.0
    %1162 = vmatprep.subr.mxu0 0.0
    %1163 = vmatpush1.msra.mxu0 0.0
    %1164 = vmatprep.subr.mxu0 0.0
    %1165 = vmatpush1.msra.mxu0 0.0
    %1166 = vmatprep.subr.mxu0 0.0
    %1167 = vmatpush1.msra.mxu0 0.0
    %1168 = vmatprep.subr.mxu0 0.0
    %1169 = vmatpush1.msra.mxu0 0.0
    %1170 = vmatprep.subr.mxu0 0.0
    %1171 = vmatpush1.msra.mxu0 0.0
    %1172 = vmatprep.subr.mxu0 0.0
    %1173 = vmatpush1.msra.mxu0 0.0
    %1174 = vmatprep.subr.mxu0 0.0
    %1175 = vmatpush1.msra.mxu0 0.0
    %1176 = vmatprep.subr.mxu0 0.0
    %1177 = vmatpush1.msra.mxu0 0.0
    %1178 = vmatprep.subr.mxu0 0.0
    %1179 = vmatpush1.msra.mxu0 0.0
    %1180 = vmatprep.subr.mxu0 0.0
    %1181 = vmatpush1.msra.mxu0 0.0
    %1182 = vmatprep.subr.mxu0 0.0
    %1183 = vmatpush1.msra.mxu0 0.0
    %1184 = vmatprep.subr.mxu0 0.0
    %1185 = vmatpush1.msra.mxu0 0.0
    %1186 = vmatprep.subr.mxu0 0.0
    %1187 = vmatpush1.msra.mxu0 0.0
    %1188 = vmatprep.subr.mxu0 0.0
    %1189 = vmatpush1.msra.mxu0 0.0
    %1190 = vmatprep.subr.mxu0 0.0
    %1191 = vmatpush1.msra.mxu0 0.0
    %1192 = vmatprep.subr.mxu0 0.0
    %1193 = vmatpush1.msra.mxu0 0.0
    %1194 = vmatprep.subr.mxu0 0.0
    %1195 = vmatpush1.msra.mxu0 0.0
    %1196 = vmatprep.subr.mxu0 0.0
    %1197 = vmatpush1.msra.mxu0 0.0
    %1198 = vmatprep.subr.mxu0 0.0
    %1199 = vmatpush1.msra.mxu0 0.0
    %1200 = vmatprep.subr.mxu0 0.0
    %1201 = vmatpush1.msra.mxu0 0.0
    %1202 = vmatprep.subr.mxu0 0.0
    %1203 = vmatpush1.msra.mxu0 0.0
    %1204 = vmatprep.subr.mxu0 0.0
    %1205 = vmatpush1.msra.mxu0 0.0
    %1206 = vmatprep.subr.mxu0 0.0
    %1207 = vmatpush1.msra.mxu0 0.0
    %1208 = vmatprep.subr.mxu0 0.0
    %1209 = vmatpush1.msra.mxu0 0.0
    %1210 = vmatprep.mubr.f32.mxu0 0.0
    %1211 = vmatmul.mubr.f32.gmra.mrb[0].mxu0 %v525
    %v1212 = vpop.f32.mrb[0].mxu0
    %v1213 = vadd.f32 %v430, %v1212
    %v1214 = vpop.f32.mrb[0].mxu0
    %v1215 = vadd.f32 %v434, %v1214
    %1216 = vmatprep.mubr.f32.mxu0 0.0
    %1217 = vmatmul.mubr.f32.gmra.mrb[0].mxu0 %v528
    %v1218 = vpop.f32.mrb[0].mxu0
    %v1219 = vadd.f32 %v430, %v1218
    %v1220 = vpop.f32.mrb[0].mxu0
    %v1221 = vadd.f32 %v434, %v1220
    %1222 = vdwg.mxu0
    %1223 = vmatprep.subr.mxu0 %v246
    %1224 = vmatpush1.msra.mxu0 %v245
    %1225 = vmatprep.subr.mxu0 %v278
    %1226 = vmatpush1.msra.mxu0 %v277
    %1227 = vmatprep.subr.mxu0 %v310
    %1228 = vmatpush1.msra.mxu0 %v309
    %1229 = vmatprep.subr.mxu0 %v342
    %1230 = vmatpush1.msra.mxu0 %v341
    %1231 = vmatprep.subr.mxu0 0.0
    %1232 = vmatpush1.msra.mxu0 0.0
    %1233 = vmatprep.subr.mxu0 0.0
    %1234 = vmatpush1.msra.mxu0 0.0
    %1235 = vmatprep.subr.mxu0 0.0
    %1236 = vmatpush1.msra.mxu0 0.0
    %1237 = vmatprep.subr.mxu0 0.0
    %1238 = vmatpush1.msra.mxu0 0.0
    %1239 = vmatprep.subr.mxu0 0.0
    %1240 = vmatpush1.msra.mxu0 0.0
    %1241 = vmatprep.subr.mxu0 0.0
    %1242 = vmatpush1.msra.mxu0 0.0
    %1243 = vmatprep.subr.mxu0 0.0
    %1244 = vmatpush1.msra.mxu0 0.0
    %1245 = vmatprep.subr.mxu0 0.0
    %1246 = vmatpush1.msra.mxu0 0.0
    %1247 = vmatprep.subr.mxu0 0.0
    %1248 = vmatpush1.msra.mxu0 0.0
    %1249 = vmatprep.subr.mxu0 0.0
    %1250 = vmatpush1.msra.mxu0 0.0
    %1251 = vmatprep.subr.mxu0 0.0
    %1252 = vmatpush1.msra.mxu0 0.0
    %1253 = vmatprep.subr.mxu0 0.0
    %1254 = vmatpush1.msra.mxu0 0.0
    %1255 = vmatprep.subr.mxu0 0.0
    %1256 = vmatpush1.msra.mxu0 0.0
    %1257 = vmatprep.subr.mxu0 0.0
    %1258 = vmatpush1.msra.mxu0 0.0
    %1259 = vmatprep.subr.mxu0 0.0
    %1260 = vmatpush1.msra.mxu0 0.0
    %1261 = vmatprep.subr.mxu0 0.0
    %1262 = vmatpush1.msra.mxu0 0.0
    %1263 = vmatprep.subr.mxu0 0.0
    %1264 = vmatpush1.msra.mxu0 0.0
    %1265 = vmatprep.subr.mxu0 0.0
    %1266 = vmatpush1.msra.mxu0 0.0
    %1267 = vmatprep.subr.mxu0 0.0
    %1268 = vmatpush1.msra.mxu0 0.0
    %1269 = vmatprep.subr.mxu0 0.0
    %1270 = vmatpush1.msra.mxu0 0.0
    %1271 = vmatprep.subr.mxu0 0.0
    %1272 = vmatpush1.msra.mxu0 0.0
    %1273 = vmatprep.subr.mxu0 0.0
    %1274 = vmatpush1.msra.mxu0 0.0
    %1275 = vmatprep.subr.mxu0 0.0
    %1276 = vmatpush1.msra.mxu0 0.0
    %1277 = vmatprep.subr.mxu0 0.0
    %1278 = vmatpush1.msra.mxu0 0.0
    %1279 = vmatprep.subr.mxu0 0.0
    %1280 = vmatpush1.msra.mxu0 0.0
    %1281 = vmatprep.subr.mxu0 0.0
    %1282 = vmatpush1.msra.mxu0 0.0
    %1283 = vmatprep.subr.mxu0 0.0
    %1284 = vmatpush1.msra.mxu0 0.0
    %1285 = vmatprep.subr.mxu0 0.0
    %1286 = vmatpush1.msra.mxu0 0.0
    %1287 = vmatprep.mubr.f32.mxu0 0.0
    %1288 = vmatmul.mubr.f32.gmra.mrb[0].mxu0 %v525
    %v1289 = vpop.f32.mrb[0].mxu0
    %v1290 = vadd.f32 %v438, %v1289
    %v1291 = vpop.f32.mrb[0].mxu0
    %v1292 = vadd.f32 %v442, %v1291
    %1293 = vmatprep.mubr.f32.mxu0 0.0
    %1294 = vmatmul.mubr.f32.gmra.mrb[0].mxu0 %v528
    %v1295 = vpop.f32.mrb[0].mxu0
    %v1296 = vadd.f32 %v438, %v1295
    %v1297 = vpop.f32.mrb[0].mxu0
    %v1298 = vadd.f32 %v442, %v1297
    %1299 = vdwg.mxu0
    %1300 = vmatprep.subr.mxu0 %v248
    %1301 = vmatpush1.msra.mxu0 %v247
    %1302 = vmatprep.subr.mxu0 %v280
    %1303 = vmatpush1.msra.mxu0 %v279
    %1304 = vmatprep.subr.mxu0 %v312
    %1305 = vmatpush1.msra.mxu0 %v311
    %1306 = vmatprep.subr.mxu0 %v344
    %1307 = vmatpush1.msra.mxu0 %v343
    %1308 = vmatprep.subr.mxu0 0.0
    %1309 = vmatpush1.msra.mxu0 0.0
    %1310 = vmatprep.subr.mxu0 0.0
    %1311 = vmatpush1.msra.mxu0 0.0
    %1312 = vmatprep.subr.mxu0 0.0
    %1313 = vmatpush1.msra.mxu0 0.0
    %1314 = vmatprep.subr.mxu0 0.0
    %1315 = vmatpush1.msra.mxu0 0.0
    %1316 = vmatprep.subr.mxu0 0.0
    %1317 = vmatpush1.msra.mxu0 0.0
    %1318 = vmatprep.subr.mxu0 0.0
    %1319 = vmatpush1.msra.mxu0 0.0
    %1320 = vmatprep.subr.mxu0 0.0
    %1321 = vmatpush1.msra.mxu0 0.0
    %1322 = vmatprep.subr.mxu0 0.0
    %1323 = vmatpush1.msra.mxu0 0.0
    %1324 = vmatprep.subr.mxu0 0.0
    %1325 = vmatpush1.msra.mxu0 0.0
    %1326 = vmatprep.subr.mxu0 0.0
    %1327 = vmatpush1.msra.mxu0 0.0
    %1328 = vmatprep.subr.mxu0 0.0
    %1329 = vmatpush1.msra.mxu0 0.0
    %1330 = vmatprep.subr.mxu0 0.0
    %1331 = vmatpush1.msra.mxu0 0.0
    %1332 = vmatprep.subr.mxu0 0.0
    %1333 = vmatpush1.msra.mxu0 0.0
    %1334 = vmatprep.subr.mxu0 0.0
    %1335 = vmatpush1.msra.mxu0 0.0
    %1336 = vmatprep.subr.mxu0 0.0
    %1337 = vmatpush1.msra.mxu0 0.0
    %1338 = vmatprep.subr.mxu0 0.0
    %1339 = vmatpush1.msra.mxu0 0.0
    %1340 = vmatprep.subr.mxu0 0.0
    %1341 = vmatpush1.msra.mxu0 0.0
    %1342 = vmatprep.subr.mxu0 0.0
    %1343 = vmatpush1.msra.mxu0 0.0
    %1344 = vmatprep.subr.mxu0 0.0
    %1345 = vmatpush1.msra.mxu0 0.0
    %1346 = vmatprep.subr.mxu0 0.0
    %1347 = vmatpush1.msra.mxu0 0.0
    %1348 = vmatprep.subr.mxu0 0.0
    %1349 = vmatpush1.msra.mxu0 0.0
    %1350 = vmatprep.subr.mxu0 0.0
    %1351 = vmatpush1.msra.mxu0 0.0
    %1352 = vmatprep.subr.mxu0 0.0
    %1353 = vmatpush1.msra.mxu0 0.0
    %1354 = vmatprep.subr.mxu0 0.0
    %1355 = vmatpush1.msra.mxu0 0.0
    %1356 = vmatprep.subr.mxu0 0.0
    %1357 = vmatpush1.msra.mxu0 0.0
    %1358 = vmatprep.subr.mxu0 0.0
    %1359 = vmatpush1.msra.mxu0 0.0
    %1360 = vmatprep.subr.mxu0 0.0
    %1361 = vmatpush1.msra.mxu0 0.0
    %1362 = vmatprep.subr.mxu0 0.0
    %1363 = vmatpush1.msra.mxu0 0.0
    %1364 = vmatprep.mubr.f32.mxu0 0.0
    %1365 = vmatmul.mubr.f32.gmra.mrb[0].mxu0 %v525
    %v1366 = vpop.f32.mrb[0].mxu0
    %v1367 = vadd.f32 %v446, %v1366
    %v1368 = vpop.f32.mrb[0].mxu0
    %v1369 = vadd.f32 %v450, %v1368
    %1370 = vmatprep.mubr.f32.mxu0 0.0
    %1371 = vmatmul.mubr.f32.gmra.mrb[0].mxu0 %v528
    %v1372 = vpop.f32.mrb[0].mxu0
    %v1373 = vadd.f32 %v446, %v1372
    %v1374 = vpop.f32.mrb[0].mxu0
    %v1375 = vadd.f32 %v450, %v1374
    %1376 = vdwg.mxu0
    %1377 = vmatprep.subr.mxu0 %v250
    %1378 = vmatpush1.msra.mxu0 %v249
    %1379 = vmatprep.subr.mxu0 %v282
    %1380 = vmatpush1.msra.mxu0 %v281
    %1381 = vmatprep.subr.mxu0 %v314
    %1382 = vmatpush1.msra.mxu0 %v313
    %1383 = vmatprep.subr.mxu0 %v346
    %1384 = vmatpush1.msra.mxu0 %v345
    %1385 = vmatprep.subr.mxu0 0.0
    %1386 = vmatpush1.msra.mxu0 0.0
    %1387 = vmatprep.subr.mxu0 0.0
    %1388 = vmatpush1.msra.mxu0 0.0
    %1389 = vmatprep.subr.mxu0 0.0
    %1390 = vmatpush1.msra.mxu0 0.0
    %1391 = vmatprep.subr.mxu0 0.0
    %1392 = vmatpush1.msra.mxu0 0.0
    %1393 = vmatprep.subr.mxu0 0.0
    %1394 = vmatpush1.msra.mxu0 0.0
    %1395 = vmatprep.subr.mxu0 0.0
    %1396 = vmatpush1.msra.mxu0 0.0
    %1397 = vmatprep.subr.mxu0 0.0
    %1398 = vmatpush1.msra.mxu0 0.0
    %1399 = vmatprep.subr.mxu0 0.0
    %1400 = vmatpush1.msra.mxu0 0.0
    %1401 = vmatprep.subr.mxu0 0.0
    %1402 = vmatpush1.msra.mxu0 0.0
    %1403 = vmatprep.subr.mxu0 0.0
    %1404 = vmatpush1.msra.mxu0 0.0
    %1405 = vmatprep.subr.mxu0 0.0
    %1406 = vmatpush1.msra.mxu0 0.0
    %1407 = vmatprep.subr.mxu0 0.0
    %1408 = vmatpush1.msra.mxu0 0.0
    %1409 = vmatprep.subr.mxu0 0.0
    %1410 = vmatpush1.msra.mxu0 0.0
    %1411 = vmatprep.subr.mxu0 0.0
    %1412 = vmatpush1.msra.mxu0 0.0
    %1413 = vmatprep.subr.mxu0 0.0
    %1414 = vmatpush1.msra.mxu0 0.0
    %1415 = vmatprep.subr.mxu0 0.0
    %1416 = vmatpush1.msra.mxu0 0.0
    %1417 = vmatprep.subr.mxu0 0.0
    %1418 = vmatpush1.msra.mxu0 0.0
    %1419 = vmatprep.subr.mxu0 0.0
    %1420 = vmatpush1.msra.mxu0 0.0
    %1421 = vmatprep.subr.mxu0 0.0
    %1422 = vmatpush1.msra.mxu0 0.0
    %1423 = vmatprep.subr.mxu0 0.0
    %1424 = vmatpush1.msra.mxu0 0.0
    %1425 = vmatprep.subr.mxu0 0.0
    %1426 = vmatpush1.msra.mxu0 0.0
    %1427 = vmatprep.subr.mxu0 0.0
    %1428 = vmatpush1.msra.mxu0 0.0
    %1429 = vmatprep.subr.mxu0 0.0
    %1430 = vmatpush1.msra.mxu0 0.0
    %1431 = vmatprep.subr.mxu0 0.0
    %1432 = vmatpush1.msra.mxu0 0.0
    %1433 = vmatprep.subr.mxu0 0.0
    %1434 = vmatpush1.msra.mxu0 0.0
    %1435 = vmatprep.subr.mxu0 0.0
    %1436 = vmatpush1.msra.mxu0 0.0
    %1437 = vmatprep.subr.mxu0 0.0
    %1438 = vmatpush1.msra.mxu0 0.0
    %1439 = vmatprep.subr.mxu0 0.0
    %1440 = vmatpush1.msra.mxu0 0.0
    %1441 = vmatprep.mubr.f32.mxu0 0.0
    %1442 = vmatmul.mubr.f32.gmra.mrb[0].mxu0 %v525
    %v1443 = vpop.f32.mrb[0].mxu0
    %v1444 = vadd.f32 %v454, %v1443
    %v1445 = vpop.f32.mrb[0].mxu0
    %v1446 = vadd.f32 %v458, %v1445
    %1447 = vmatprep.mubr.f32.mxu0 0.0
    %1448 = vmatmul.mubr.f32.gmra.mrb[0].mxu0 %v528
    %v1449 = vpop.f32.mrb[0].mxu0
    %v1450 = vadd.f32 %v454, %v1449
    %v1451 = vpop.f32.mrb[0].mxu0
    %v1452 = vadd.f32 %v458, %v1451
    %1453 = vdwg.mxu0
    %1454 = vmatprep.subr.mxu0 %v252
    %1455 = vmatpush1.msra.mxu0 %v251
    %1456 = vmatprep.subr.mxu0 %v284
    %1457 = vmatpush1.msra.mxu0 %v283
    %1458 = vmatprep.subr.mxu0 %v316
    %1459 = vmatpush1.msra.mxu0 %v315
    %1460 = vmatprep.subr.mxu0 %v348
    %1461 = vmatpush1.msra.mxu0 %v347
    %1462 = vmatprep.subr.mxu0 0.0
    %1463 = vmatpush1.msra.mxu0 0.0
    %1464 = vmatprep.subr.mxu0 0.0
    %1465 = vmatpush1.msra.mxu0 0.0
    %1466 = vmatprep.subr.mxu0 0.0
    %1467 = vmatpush1.msra.mxu0 0.0
    %1468 = vmatprep.subr.mxu0 0.0
    %1469 = vmatpush1.msra.mxu0 0.0
    %1470 = vmatprep.subr.mxu0 0.0
    %1471 = vmatpush1.msra.mxu0 0.0
    %1472 = vmatprep.subr.mxu0 0.0
    %1473 = vmatpush1.msra.mxu0 0.0
    %1474 = vmatprep.subr.mxu0 0.0
    %1475 = vmatpush1.msra.mxu0 0.0
    %1476 = vmatprep.subr.mxu0 0.0
    %1477 = vmatpush1.msra.mxu0 0.0
    %1478 = vmatprep.subr.mxu0 0.0
    %1479 = vmatpush1.msra.mxu0 0.0
    %1480 = vmatprep.subr.mxu0 0.0
    %1481 = vmatpush1.msra.mxu0 0.0
    %1482 = vmatprep.subr.mxu0 0.0
    %1483 = vmatpush1.msra.mxu0 0.0
    %1484 = vmatprep.subr.mxu0 0.0
    %1485 = vmatpush1.msra.mxu0 0.0
    %1486 = vmatprep.subr.mxu0 0.0
    %1487 = vmatpush1.msra.mxu0 0.0
    %1488 = vmatprep.subr.mxu0 0.0
    %1489 = vmatpush1.msra.mxu0 0.0
    %1490 = vmatprep.subr.mxu0 0.0
    %1491 = vmatpush1.msra.mxu0 0.0
    %1492 = vmatprep.subr.mxu0 0.0
    %1493 = vmatpush1.msra.mxu0 0.0
    %1494 = vmatprep.subr.mxu0 0.0
    %1495 = vmatpush1.msra.mxu0 0.0
    %1496 = vmatprep.subr.mxu0 0.0
    %1497 = vmatpush1.msra.mxu0 0.0
    %1498 = vmatprep.subr.mxu0 0.0
    %1499 = vmatpush1.msra.mxu0 0.0
    %1500 = vmatprep.subr.mxu0 0.0
    %1501 = vmatpush1.msra.mxu0 0.0
    %1502 = vmatprep.subr.mxu0 0.0
    %1503 = vmatpush1.msra.mxu0 0.0
    %1504 = vmatprep.subr.mxu0 0.0
    %1505 = vmatpush1.msra.mxu0 0.0
    %1506 = vmatprep.subr.mxu0 0.0
    %1507 = vmatpush1.msra.mxu0 0.0
    %1508 = vmatprep.subr.mxu0 0.0
    %1509 = vmatpush1.msra.mxu0 0.0
    %1510 = vmatprep.subr.mxu0 0.0
    %1511 = vmatpush1.msra.mxu0 0.0
    %1512 = vmatprep.subr.mxu0 0.0
    %1513 = vmatpush1.msra.mxu0 0.0
    %1514 = vmatprep.subr.mxu0 0.0
    %1515 = vmatpush1.msra.mxu0 0.0
    %1516 = vmatprep.subr.mxu0 0.0
    %1517 = vmatpush1.msra.mxu0 0.0
    %1518 = vmatprep.mubr.f32.mxu0 0.0
    %1519 = vmatmul.mubr.f32.gmra.mrb[0].mxu0 %v525
    %v1520 = vpop.f32.mrb[0].mxu0
    %v1521 = vadd.f32 %v462, %v1520
    %v1522 = vpop.f32.mrb[0].mxu0
    %v1523 = vadd.f32 %v466, %v1522
    %1524 = vmatprep.mubr.f32.mxu0 0.0
    %1525 = vmatmul.mubr.f32.gmra.mrb[0].mxu0 %v528
    %v1526 = vpop.f32.mrb[0].mxu0
    %v1527 = vadd.f32 %v462, %v1526
    %v1528 = vpop.f32.mrb[0].mxu0
    %v1529 = vadd.f32 %v466, %v1528
    %1530 = vdwg.mxu0
    %1531 = vmatprep.subr.mxu0 %v254
    %1532 = vmatpush1.msra.mxu0 %v253
    %1533 = vmatprep.subr.mxu0 %v286
    %1534 = vmatpush1.msra.mxu0 %v285
    %1535 = vmatprep.subr.mxu0 %v318
    %1536 = vmatpush1.msra.mxu0 %v317
    %1537 = vmatprep.subr.mxu0 %v350
    %1538 = vmatpush1.msra.mxu0 %v349
    %1539 = vmatprep.subr.mxu0 0.0
    %1540 = vmatpush1.msra.mxu0 0.0
    %1541 = vmatprep.subr.mxu0 0.0
    %1542 = vmatpush1.msra.mxu0 0.0
    %1543 = vmatprep.subr.mxu0 0.0
    %1544 = vmatpush1.msra.mxu0 0.0
    %1545 = vmatprep.subr.mxu0 0.0
    %1546 = vmatpush1.msra.mxu0 0.0
    %1547 = vmatprep.subr.mxu0 0.0
    %1548 = vmatpush1.msra.mxu0 0.0
    %1549 = vmatprep.subr.mxu0 0.0
    %1550 = vmatpush1.msra.mxu0 0.0
    %1551 = vmatprep.subr.mxu0 0.0
    %1552 = vmatpush1.msra.mxu0 0.0
    %1553 = vmatprep.subr.mxu0 0.0
    %1554 = vmatpush1.msra.mxu0 0.0
    %1555 = vmatprep.subr.mxu0 0.0
    %1556 = vmatpush1.msra.mxu0 0.0
    %1557 = vmatprep.subr.mxu0 0.0
    %1558 = vmatpush1.msra.mxu0 0.0
    %1559 = vmatprep.subr.mxu0 0.0
    %1560 = vmatpush1.msra.mxu0 0.0
    %1561 = vmatprep.subr.mxu0 0.0
    %1562 = vmatpush1.msra.mxu0 0.0
    %1563 = vmatprep.subr.mxu0 0.0
    %1564 = vmatpush1.msra.mxu0 0.0
    %1565 = vmatprep.subr.mxu0 0.0
    %1566 = vmatpush1.msra.mxu0 0.0
    %1567 = vmatprep.subr.mxu0 0.0
    %1568 = vmatpush1.msra.mxu0 0.0
    %1569 = vmatprep.subr.mxu0 0.0
    %1570 = vmatpush1.msra.mxu0 0.0
    %1571 = vmatprep.subr.mxu0 0.0
    %1572 = vmatpush1.msra.mxu0 0.0
    %1573 = vmatprep.subr.mxu0 0.0
    %1574 = vmatpush1.msra.mxu0 0.0
    %1575 = vmatprep.subr.mxu0 0.0
    %1576 = vmatpush1.msra.mxu0 0.0
    %1577 = vmatprep.subr.mxu0 0.0
    %1578 = vmatpush1.msra.mxu0 0.0
    %1579 = vmatprep.subr.mxu0 0.0
    %1580 = vmatpush1.msra.mxu0 0.0
    %1581 = vmatprep.subr.mxu0 0.0
    %1582 = vmatpush1.msra.mxu0 0.0
    %1583 = vmatprep.subr.mxu0 0.0
    %1584 = vmatpush1.msra.mxu0 0.0
    %1585 = vmatprep.subr.mxu0 0.0
    %1586 = vmatpush1.msra.mxu0 0.0
    %1587 = vmatprep.subr.mxu0 0.0
    %1588 = vmatpush1.msra.mxu0 0.0
    %1589 = vmatprep.subr.mxu0 0.0
    %1590 = vmatpush1.msra.mxu0 0.0
    %1591 = vmatprep.subr.mxu0 0.0
    %1592 = vmatpush1.msra.mxu0 0.0
    %1593 = vmatprep.subr.mxu0 0.0
    %1594 = vmatpush1.msra.mxu0 0.0
    %1595 = vmatprep.mubr.f32.mxu0 0.0
    %1596 = vmatmul.mubr.f32.gmra.mrb[0].mxu0 %v525
    %v1597 = vpop.f32.mrb[0].mxu0
    %v1598 = vadd.f32 %v470, %v1597
    %v1599 = vpop.f32.mrb[0].mxu0
    %v1600 = vadd.f32 %v474, %v1599
    %1601 = vmatprep.mubr.f32.mxu0 0.0
    %1602 = vmatmul.mubr.f32.gmra.mrb[0].mxu0 %v528
    %v1603 = vpop.f32.mrb[0].mxu0
    %v1604 = vadd.f32 %v470, %v1603
    %v1605 = vpop.f32.mrb[0].mxu0
    %v1606 = vadd.f32 %v474, %v1605
    %1607 = vdwg.mxu0
    %1608 = vmatprep.subr.mxu0 %v256
    %1609 = vmatpush1.msra.mxu0 %v255
    %1610 = vmatprep.subr.mxu0 %v288
    %1611 = vmatpush1.msra.mxu0 %v287
    %1612 = vmatprep.subr.mxu0 %v320
    %1613 = vmatpush1.msra.mxu0 %v319
    %1614 = vmatprep.subr.mxu0 %v352
    %1615 = vmatpush1.msra.mxu0 %v351
    %1616 = vmatprep.subr.mxu0 0.0
    %1617 = vmatpush1.msra.mxu0 0.0
    %1618 = vmatprep.subr.mxu0 0.0
    %1619 = vmatpush1.msra.mxu0 0.0
    %1620 = vmatprep.subr.mxu0 0.0
    %1621 = vmatpush1.msra.mxu0 0.0
    %1622 = vmatprep.subr.mxu0 0.0
    %1623 = vmatpush1.msra.mxu0 0.0
    %1624 = vmatprep.subr.mxu0 0.0
    %1625 = vmatpush1.msra.mxu0 0.0
    %1626 = vmatprep.subr.mxu0 0.0
    %1627 = vmatpush1.msra.mxu0 0.0
    %1628 = vmatprep.subr.mxu0 0.0
    %1629 = vmatpush1.msra.mxu0 0.0
    %1630 = vmatprep.subr.mxu0 0.0
    %1631 = vmatpush1.msra.mxu0 0.0
    %1632 = vmatprep.subr.mxu0 0.0
    %1633 = vmatpush1.msra.mxu0 0.0
    %1634 = vmatprep.subr.mxu0 0.0
    %1635 = vmatpush1.msra.mxu0 0.0
    %1636 = vmatprep.subr.mxu0 0.0
    %1637 = vmatpush1.msra.mxu0 0.0
    %1638 = vmatprep.subr.mxu0 0.0
    %1639 = vmatpush1.msra.mxu0 0.0
    %1640 = vmatprep.subr.mxu0 0.0
    %1641 = vmatpush1.msra.mxu0 0.0
    %1642 = vmatprep.subr.mxu0 0.0
    %1643 = vmatpush1.msra.mxu0 0.0
    %1644 = vmatprep.subr.mxu0 0.0
    %1645 = vmatpush1.msra.mxu0 0.0
    %1646 = vmatprep.subr.mxu0 0.0
    %1647 = vmatpush1.msra.mxu0 0.0
    %1648 = vmatprep.subr.mxu0 0.0
    %1649 = vmatpush1.msra.mxu0 0.0
    %1650 = vmatprep.subr.mxu0 0.0
    %1651 = vmatpush1.msra.mxu0 0.0
    %1652 = vmatprep.subr.mxu0 0.0
    %1653 = vmatpush1.msra.mxu0 0.0
    %1654 = vmatprep.subr.mxu0 0.0
    %1655 = vmatpush1.msra.mxu0 0.0
    %1656 = vmatprep.subr.mxu0 0.0
    %1657 = vmatpush1.msra.mxu0 0.0
    %1658 = vmatprep.subr.mxu0 0.0
    %1659 = vmatpush1.msra.mxu0 0.0
    %1660 = vmatprep.subr.mxu0 0.0
    %1661 = vmatpush1.msra.mxu0 0.0
    %1662 = vmatprep.subr.mxu0 0.0
    %1663 = vmatpush1.msra.mxu0 0.0
    %1664 = vmatprep.subr.mxu0 0.0
    %1665 = vmatpush1.msra.mxu0 0.0
    %1666 = vmatprep.subr.mxu0 0.0
    %1667 = vmatpush1.msra.mxu0 0.0
    %1668 = vmatprep.subr.mxu0 0.0
    %1669 = vmatpush1.msra.mxu0 0.0
    %1670 = vmatprep.subr.mxu0 0.0
    %1671 = vmatpush1.msra.mxu0 0.0
    %1672 = vmatprep.mubr.f32.mxu0 0.0
    %1673 = vmatmul.mubr.f32.gmra.mrb[0].mxu0 %v525
    %v1674 = vpop.f32.mrb[0].mxu0
    %v1675 = vadd.f32 %v478, %v1674
    %v1676 = vpop.f32.mrb[0].mxu0
    %v1677 = vadd.f32 %v482, %v1676
    %1678 = vmatprep.mubr.f32.mxu0 0.0
    %1679 = vmatmul.mubr.f32.gmra.mrb[0].mxu0 %v528
    %v1680 = vpop.f32.mrb[0].mxu0
    %v1681 = vadd.f32 %v478, %v1680
    %v1682 = vpop.f32.mrb[0].mxu0
    %v1683 = vadd.f32 %v482, %v1682
    %1684 = vdwg.mxu0
    %1685 = vmatprep.subr.mxu0 %v258
    %1686 = vmatpush1.msra.mxu0 %v257
    %1687 = vmatprep.subr.mxu0 %v290
    %1688 = vmatpush1.msra.mxu0 %v289
    %1689 = vmatprep.subr.mxu0 %v322
    %1690 = vmatpush1.msra.mxu0 %v321
    %1691 = vmatprep.subr.mxu0 %v354
    %1692 = vmatpush1.msra.mxu0 %v353
    %1693 = vmatprep.subr.mxu0 0.0
    %1694 = vmatpush1.msra.mxu0 0.0
    %1695 = vmatprep.subr.mxu0 0.0
    %1696 = vmatpush1.msra.mxu0 0.0
    %1697 = vmatprep.subr.mxu0 0.0
    %1698 = vmatpush1.msra.mxu0 0.0
    %1699 = vmatprep.subr.mxu0 0.0
    %1700 = vmatpush1.msra.mxu0 0.0
    %1701 = vmatprep.subr.mxu0 0.0
    %1702 = vmatpush1.msra.mxu0 0.0
    %1703 = vmatprep.subr.mxu0 0.0
    %1704 = vmatpush1.msra.mxu0 0.0
    %1705 = vmatprep.subr.mxu0 0.0
    %1706 = vmatpush1.msra.mxu0 0.0
    %1707 = vmatprep.subr.mxu0 0.0
    %1708 = vmatpush1.msra.mxu0 0.0
    %1709 = vmatprep.subr.mxu0 0.0
    %1710 = vmatpush1.msra.mxu0 0.0
    %1711 = vmatprep.subr.mxu0 0.0
    %1712 = vmatpush1.msra.mxu0 0.0
    %1713 = vmatprep.subr.mxu0 0.0
    %1714 = vmatpush1.msra.mxu0 0.0
    %1715 = vmatprep.subr.mxu0 0.0
    %1716 = vmatpush1.msra.mxu0 0.0
    %1717 = vmatprep.subr.mxu0 0.0
    %1718 = vmatpush1.msra.mxu0 0.0
    %1719 = vmatprep.subr.mxu0 0.0
    %1720 = vmatpush1.msra.mxu0 0.0
    %1721 = vmatprep.subr.mxu0 0.0
    %1722 = vmatpush1.msra.mxu0 0.0
    %1723 = vmatprep.subr.mxu0 0.0
    %1724 = vmatpush1.msra.mxu0 0.0
    %1725 = vmatprep.subr.mxu0 0.0
    %1726 = vmatpush1.msra.mxu0 0.0
    %1727 = vmatprep.subr.mxu0 0.0
    %1728 = vmatpush1.msra.mxu0 0.0
    %1729 = vmatprep.subr.mxu0 0.0
    %1730 = vmatpush1.msra.mxu0 0.0
    %1731 = vmatprep.subr.mxu0 0.0
    %1732 = vmatpush1.msra.mxu0 0.0
    %1733 = vmatprep.subr.mxu0 0.0
    %1734 = vmatpush1.msra.mxu0 0.0
    %1735 = vmatprep.subr.mxu0 0.0
    %1736 = vmatpush1.msra.mxu0 0.0
    %1737 = vmatprep.subr.mxu0 0.0
    %1738 = vmatpush1.msra.mxu0 0.0
    %1739 = vmatprep.subr.mxu0 0.0
    %1740 = vmatpush1.msra.mxu0 0.0
    %1741 = vmatprep.subr.mxu0 0.0
    %1742 = vmatpush1.msra.mxu0 0.0
    %1743 = vmatprep.subr.mxu0 0.0
    %1744 = vmatpush1.msra.mxu0 0.0
    %1745 = vmatprep.subr.mxu0 0.0
    %1746 = vmatpush1.msra.mxu0 0.0
    %1747 = vmatprep.subr.mxu0 0.0
    %1748 = vmatpush1.msra.mxu0 0.0
    %1749 = vmatprep.mubr.f32.mxu0 0.0
    %1750 = vmatmul.mubr.f32.gmra.mrb[0].mxu0 %v525
    %v1751 = vpop.f32.mrb[0].mxu0
    %v1752 = vadd.f32 %v486, %v1751
    %v1753 = vpop.f32.mrb[0].mxu0
    %v1754 = vadd.f32 %v490, %v1753
    %1755 = vmatprep.mubr.f32.mxu0 0.0
    %1756 = vmatmul.mubr.f32.gmra.mrb[0].mxu0 %v528
    %v1757 = vpop.f32.mrb[0].mxu0
    %v1758 = vadd.f32 %v486, %v1757
    %v1759 = vpop.f32.mrb[0].mxu0
    %v1760 = vadd.f32 %v490, %v1759
    %1761 = vdwg.mxu0
    %v1762 = vld [vmem:[%s0] sm:$0xff]
    %v1763 = vld [vmem:[%s5] sm:$0xff]
    %v1764 = vld [vmem:[%s5 + $0x8] sm:$0xff]
    %v1765 = vld [vmem:[%s5 + $0x10] sm:$0xff]
    %v1766 = vld [vmem:[%s5 + $0x18] sm:$0xff]
    %v1767 = vld [vmem:[%s5 + $0x20] sm:$0xff]
    %v1768 = vld [vmem:[%s5 + $0x28] sm:$0xff]
    %v1769 = vld [vmem:[%s5 + $0x30] sm:$0xff]
    %v1770 = vld [vmem:[%s5 + $0x38] sm:$0xff]
    %v1771 = vld [vmem:[%s5 + $0x40] sm:$0xff]
    %v1772 = vld [vmem:[%s5 + $0x48] sm:$0xff]
    %v1773 = vld [vmem:[%s5 + $0x50] sm:$0xff]
    %v1774 = vld [vmem:[%s5 + $0x58] sm:$0xff]
    %v1775 = vld [vmem:[%s5 + $0x60] sm:$0xff]
    %v1776 = vld [vmem:[%s5 + $0x68] sm:$0xff]
    %v1777 = vld [vmem:[%s5 + $0x70] sm:$0xff]
    %v1778 = vld [vmem:[%s5 + $0x78] sm:$0xff]
    %v1779 = vlaneseq
    %v1780 = vshrl.u32 %v1779, 7
    %v1781 = vsub.s32 0, %v1780
    %v1782 = vrot.slane %v114, %v1781
    %1783 = vmatprep.subr.mxu0 0.0
    %1784 = vmatpush1.msra.mxu0 %v1763
    %1785 = vmatprep.subr.mxu0 0.0
    %1786 = vmatpush1.msra.mxu0 %v1764
    %1787 = vmatprep.subr.mxu0 0.0
    %1788 = vmatpush1.msra.mxu0 %v1765
    %1789 = vmatprep.subr.mxu0 0.0
    %1790 = vmatpush1.msra.mxu0 %v1766
    %1791 = vmatprep.subr.mxu0 0.0
    %1792 = vmatpush1.msra.mxu0 %v1767
    %1793 = vmatprep.subr.mxu0 0.0
    %1794 = vmatpush1.msra.mxu0 %v1768
    %1795 = vmatprep.subr.mxu0 0.0
    %1796 = vmatpush1.msra.mxu0 %v1769
    %1797 = vmatprep.subr.mxu0 0.0
    %1798 = vmatpush1.msra.mxu0 %v1770
    %1799 = vmatprep.subr.mxu0 0.0
    %1800 = vmatpush1.msra.mxu0 %v1771
    %1801 = vmatprep.subr.mxu0 0.0
    %1802 = vmatpush1.msra.mxu0 %v1772
    %1803 = vmatprep.subr.mxu0 0.0
    %1804 = vmatpush1.msra.mxu0 %v1773
    %1805 = vmatprep.subr.mxu0 0.0
    %1806 = vmatpush1.msra.mxu0 %v1774
    %1807 = vmatprep.subr.mxu0 0.0
    %1808 = vmatpush1.msra.mxu0 %v1775
    %1809 = vmatprep.subr.mxu0 0.0
    %1810 = vmatpush1.msra.mxu0 %v1776
    %1811 = vmatprep.subr.mxu0 0.0
    %1812 = vmatpush1.msra.mxu0 %v1777
    %1813 = vmatprep.subr.mxu0 0.0
    %1814 = vmatpush1.msra.mxu0 %v1778
    %1815 = vmatprep.subr.mxu0 0.0
    %1816 = vmatpush1.msra.mxu0 0.0
    %1817 = vmatprep.subr.mxu0 0.0
    %1818 = vmatpush1.msra.mxu0 0.0
    %1819 = vmatprep.subr.mxu0 0.0
    %1820 = vmatpush1.msra.mxu0 0.0
    %1821 = vmatprep.subr.mxu0 0.0
    %1822 = vmatpush1.msra.mxu0 0.0
    %1823 = vmatprep.subr.mxu0 0.0
    %1824 = vmatpush1.msra.mxu0 0.0
    %1825 = vmatprep.subr.mxu0 0.0
    %1826 = vmatpush1.msra.mxu0 0.0
    %1827 = vmatprep.subr.mxu0 0.0
    %1828 = vmatpush1.msra.mxu0 0.0
    %1829 = vmatprep.subr.mxu0 0.0
    %1830 = vmatpush1.msra.mxu0 0.0
    %1831 = vmatprep.subr.mxu0 0.0
    %1832 = vmatpush1.msra.mxu0 0.0
    %1833 = vmatprep.subr.mxu0 0.0
    %1834 = vmatpush1.msra.mxu0 0.0
    %1835 = vmatprep.subr.mxu0 0.0
    %1836 = vmatpush1.msra.mxu0 0.0
    %1837 = vmatprep.subr.mxu0 0.0
    %1838 = vmatpush1.msra.mxu0 0.0
    %1839 = vmatprep.subr.mxu0 0.0
    %1840 = vmatpush1.msra.mxu0 0.0
    %1841 = vmatprep.subr.mxu0 0.0
    %1842 = vmatpush1.msra.mxu0 0.0
    %1843 = vmatprep.subr.mxu0 0.0
    %1844 = vmatpush1.msra.mxu0 0.0
    %1845 = vmatprep.subr.mxu0 0.0
    %1846 = vmatpush1.msra.mxu0 0.0
    %1847 = vmatprep.mubr.f32.mxu0 0.0
    %1848 = vmatmul.mubr.f32.gmra.mrb[0].mxu0 %v1762
    %v1849 = vpop.f32.mrb[0].mxu0
    %v1850 = vadd.f32 %v1782, %v1849
    %v1851 = vpop.f32.mrb[0].mxu0
    %1852 = vdwg.mxu0
    %v1853 = vmax.f32 %v1850, 0.0
    %vm1854 = vcmask 64512
    %v1856 = vsel %vm1854, %v117, 0
    %v1859 = vsel %vm1854, %v118, 0
    %1861 = vmatprep.subr.mxu0 0.0
    %1862 = vmatpush1.msra.mxu0 %v1853
    %1863 = vmatprep.subr.mxu0 0.0
    %1864 = vmatpush1.msra.mxu0 0.0
    %1865 = vmatprep.subr.mxu0 0.0
    %1866 = vmatpush1.msra.mxu0 0.0
    %1867 = vmatprep.subr.mxu0 0.0
    %1868 = vmatpush1.msra.mxu0 0.0
    %1869 = vmatprep.subr.mxu0 0.0
    %1870 = vmatpush1.msra.mxu0 0.0
    %1871 = vmatprep.subr.mxu0 0.0
    %1872 = vmatpush1.msra.mxu0 0.0
    %1873 = vmatprep.subr.mxu0 0.0
    %1874 = vmatpush1.msra.mxu0 0.0
    %1875 = vmatprep.subr.mxu0 0.0
    %1876 = vmatpush1.msra.mxu0 0.0
    %1877 = vmatprep.subr.mxu0 0.0
    %1878 = vmatpush1.msra.mxu0 0.0
    %1879 = vmatprep.subr.mxu0 0.0
    %1880 = vmatpush1.msra.mxu0 0.0
    %1881 = vmatprep.subr.mxu0 0.0
    %1882 = vmatpush1.msra.mxu0 0.0
    %1883 = vmatprep.subr.mxu0 0.0
    %1884 = vmatpush1.msra.mxu0 0.0
    %1885 = vmatprep.subr.mxu0 0.0
    %1886 = vmatpush1.msra.mxu0 0.0
    %1887 = vmatprep.subr.mxu0 0.0
    %1888 = vmatpush1.msra.mxu0 0.0
    %1889 = vmatprep.subr.mxu0 0.0
    %1890 = vmatpush1.msra.mxu0 0.0
    %1891 = vmatprep.subr.mxu0 0.0
    %1892 = vmatpush1.msra.mxu0 0.0
    %1893 = vmatprep.subr.mxu0 0.0
    %1894 = vmatpush1.msra.mxu0 0.0
    %1895 = vmatprep.subr.mxu0 0.0
    %1896 = vmatpush1.msra.mxu0 0.0
    %1897 = vmatprep.subr.mxu0 0.0
    %1898 = vmatpush1.msra.mxu0 0.0
    %1899 = vmatprep.subr.mxu0 0.0
    %1900 = vmatpush1.msra.mxu0 0.0
    %1901 = vmatprep.subr.mxu0 0.0
    %1902 = vmatpush1.msra.mxu0 0.0
    %1903 = vmatprep.subr.mxu0 0.0
    %1904 = vmatpush1.msra.mxu0 0.0
    %1905 = vmatprep.subr.mxu0 0.0
    %1906 = vmatpush1.msra.mxu0 0.0
    %1907 = vmatprep.subr.mxu0 0.0
    %1908 = vmatpush1.msra.mxu0 0.0
    %1909 = vmatprep.subr.mxu0 0.0
    %1910 = vmatpush1.msra.mxu0 0.0
    %1911 = vmatprep.subr.mxu0 0.0
    %1912 = vmatpush1.msra.mxu0 0.0
    %1913 = vmatprep.subr.mxu0 0.0
    %1914 = vmatpush1.msra.mxu0 0.0
    %1915 = vmatprep.subr.mxu0 0.0
    %1916 = vmatpush1.msra.mxu0 0.0
    %1917 = vmatprep.subr.mxu0 0.0
    %1918 = vmatpush1.msra.mxu0 0.0
    %1919 = vmatprep.subr.mxu0 0.0
    %1920 = vmatpush1.msra.mxu0 0.0
    %1921 = vmatprep.subr.mxu0 0.0
    %1922 = vmatpush1.msra.mxu0 0.0
    %1923 = vmatprep.subr.mxu0 0.0
    %1924 = vmatpush1.msra.mxu0 0.0
    %1925 = vmatprep.mubr.f32.mxu0 0.0
    %1926 = vmatmul.mubr.f32.gmra.mrb[0].mxu0 %v1856
    %v1927 = vpop.f32.mrb[0].mxu0
    %v1928 = vadd.f32 0.0, %v1927
    %v1929 = vpop.f32.mrb[0].mxu0
    %1930 = vmatprep.mubr.f32.mxu0 0.0
    %1931 = vmatmul.mubr.f32.gmra.mrb[0].mxu0 %v1859
    %v1932 = vpop.f32.mrb[0].mxu0
    %v1933 = vadd.f32 0.0, %v1932
    %v1934 = vpop.f32.mrb[0].mxu0
    %1935 = vdwg.mxu0
    %1937 = vset.pattern.permute.xlu0 0
    %1938 = vperm.xlu0 %1937, %v1928
    %v1939 = vpop.permute.xlu0 %1938
    %1942 = vset.pattern.permute.xlu0 0
    %1943 = vperm.xlu0 %1942, %v1933
    %v1944 = vpop.permute.xlu0 %1943
    %v1946 = vmul.f32 %v1939, %v597
    %v1947 = vmul.f32 %v1944, %v603
    %1948 = vset.pattern.permute.xlu0 1
    %1949 = vperm.xlu0 %1948, %v1928
    %v1950 = vpop.permute.xlu0 %1949
    %1952 = vset.pattern.permute.xlu0 1
    %1953 = vperm.xlu0 %1952, %v1933
    %v1954 = vpop.permute.xlu0 %1953
    %v1956 = vmul.f32 %v1950, %v599
    %v1957 = vmul.f32 %v1954, %v605
    %v1958 = vadd.f32 %v1946, %v1956
    %v1959 = vadd.f32 %v1947, %v1957
    %1960 = vset.pattern.permute.xlu0 2
    %1961 = vperm.xlu0 %1960, %v1928
    %v1962 = vpop.permute.xlu0 %1961
    %1964 = vset.pattern.permute.xlu0 2
    %1965 = vperm.xlu0 %1964, %v1933
    %v1966 = vpop.permute.xlu0 %1965
    %v1968 = vmul.f32 %v1962, %v674
    %v1969 = vmul.f32 %v1966, %v680
    %v1970 = vadd.f32 %v1958, %v1968
    %v1971 = vadd.f32 %v1959, %v1969
    %1972 = vset.pattern.permute.xlu0 3
    %1973 = vperm.xlu0 %1972, %v1928
    %v1974 = vpop.permute.xlu0 %1973
    %1976 = vset.pattern.permute.xlu0 3
    %1977 = vperm.xlu0 %1976, %v1933
    %v1978 = vpop.permute.xlu0 %1977
    %v1980 = vmul.f32 %v1974, %v676
    %v1981 = vmul.f32 %v1978, %v682
    %v1982 = vadd.f32 %v1970, %v1980
    %v1983 = vadd.f32 %v1971, %v1981
    %1984 = vset.pattern.permute.xlu0 4
    %1985 = vperm.xlu0 %1984, %v1928
    %v1986 = vpop.permute.xlu0 %1985
    %1988 = vset.pattern.permute.xlu0 4
    %1989 = vperm.xlu0 %1988, %v1933
    %v1990 = vpop.permute.xlu0 %1989
    %v1992 = vmul.f32 %v1986, %v751
    %v1993 = vmul.f32 %v1990, %v757
    %v1994 = vadd.f32 %v1982, %v1992
    %v1995 = vadd.f32 %v1983, %v1993
    %1996 = vset.pattern.permute.xlu0 5
    %1997 = vperm.xlu0 %1996, %v1928
    %v1998 = vpop.permute.xlu0 %1997
    %2000 = vset.pattern.permute.xlu0 5
    %2001 = vperm.xlu0 %2000, %v1933
    %v2002 = vpop.permute.xlu0 %2001
    %v2004 = vmul.f32 %v1998, %v753
    %v2005 = vmul.f32 %v2002, %v759
    %v2006 = vadd.f32 %v1994, %v2004
    %v2007 = vadd.f32 %v1995, %v2005
    %2008 = vset.pattern.permute.xlu0 6
    %2009 = vperm.xlu0 %2008, %v1928
    %v2010 = vpop.permute.xlu0 %2009
    %2012 = vset.pattern.permute.xlu0 6
    %2013 = vperm.xlu0 %2012, %v1933
    %v2014 = vpop.permute.xlu0 %2013
    %v2016 = vmul.f32 %v2010, %v828
    %v2017 = vmul.f32 %v2014, %v834
    %v2018 = vadd.f32 %v2006, %v2016
    %v2019 = vadd.f32 %v2007, %v2017
    %2020 = vset.pattern.permute.xlu0 7
    %2021 = vperm.xlu0 %2020, %v1928
    %v2022 = vpop.permute.xlu0 %2021
    %2024 = vset.pattern.permute.xlu0 7
    %2025 = vperm.xlu0 %2024, %v1933
    %v2026 = vpop.permute.xlu0 %2025
    %v2028 = vmul.f32 %v2022, %v830
    %v2029 = vmul.f32 %v2026, %v836
    %v2030 = vadd.f32 %v2018, %v2028
    %v2031 = vadd.f32 %v2019, %v2029
    %2032 = vset.pattern.permute.xlu0 8
    %2033 = vperm.xlu0 %2032, %v1928
    %v2034 = vpop.permute.xlu0 %2033
    %2036 = vset.pattern.permute.xlu0 8
    %2037 = vperm.xlu0 %2036, %v1933
    %v2038 = vpop.permute.xlu0 %2037
    %v2040 = vmul.f32 %v2034, %v905
    %v2041 = vmul.f32 %v2038, %v911
    %v2042 = vadd.f32 %v2030, %v2040
    %v2043 = vadd.f32 %v2031, %v2041
    %2044 = vset.pattern.permute.xlu0 9
    %2045 = vperm.xlu0 %2044, %v1928
    %v2046 = vpop.permute.xlu0 %2045
    %2048 = vset.pattern.permute.xlu0 9
    %2049 = vperm.xlu0 %2048, %v1933
    %v2050 = vpop.permute.xlu0 %2049
    %v2052 = vmul.f32 %v2046, %v907
    %v2053 = vmul.f32 %v2050, %v913
    %v2054 = vadd.f32 %v2042, %v2052
    %v2055 = vadd.f32 %v2043, %v2053
    %2056 = vset.pattern.permute.xlu0 10
    %2057 = vperm.xlu0 %2056, %v1928
    %v2058 = vpop.permute.xlu0 %2057
    %2060 = vset.pattern.permute.xlu0 10
    %2061 = vperm.xlu0 %2060, %v1933
    %v2062 = vpop.permute.xlu0 %2061
    %v2064 = vmul.f32 %v2058, %v982
    %v2065 = vmul.f32 %v2062, %v988
    %v2066 = vadd.f32 %v2054, %v2064
    %v2067 = vadd.f32 %v2055, %v2065
    %2068 = vset.pattern.permute.xlu0 11
    %2069 = vperm.xlu0 %2068, %v1928
    %v2070 = vpop.permute.xlu0 %2069
    %2072 = vset.pattern.permute.xlu0 11
    %2073 = vperm.xlu0 %2072, %v1933
    %v2074 = vpop.permute.xlu0 %2073
    %v2076 = vmul.f32 %v2070, %v984
    %v2077 = vmul.f32 %v2074, %v990
    %v2078 = vadd.f32 %v2066, %v2076
    %v2079 = vadd.f32 %v2067, %v2077
    %2080 = vset.pattern.permute.xlu0 12
    %2081 = vperm.xlu0 %2080, %v1928
    %v2082 = vpop.permute.xlu0 %2081
    %2084 = vset.pattern.permute.xlu0 12
    %2085 = vperm.xlu0 %2084, %v1933
    %v2086 = vpop.permute.xlu0 %2085
    %v2088 = vmul.f32 %v2082, %v1059
    %v2089 = vmul.f32 %v2086, %v1065
    %v2090 = vadd.f32 %v2078, %v2088
    %v2091 = vadd.f32 %v2079, %v2089
    %2092 = vset.pattern.permute.xlu0 13
    %2093 = vperm.xlu0 %2092, %v1928
    %v2094 = vpop.permute.xlu0 %2093
    %2096 = vset.pattern.permute.xlu0 13
    %2097 = vperm.xlu0 %2096, %v1933
    %v2098 = vpop.permute.xlu0 %2097
    %v2100 = vmul.f32 %v2094, %v1061
    %v2101 = vmul.f32 %v2098, %v1067
    %v2102 = vadd.f32 %v2090, %v2100
    %v2103 = vadd.f32 %v2091, %v2101
    %2104 = vset.pattern.permute.xlu0 14
    %2105 = vperm.xlu0 %2104, %v1928
    %v2106 = vpop.permute.xlu0 %2105
    %2108 = vset.pattern.permute.xlu0 14
    %2109 = vperm.xlu0 %2108, %v1933
    %v2110 = vpop.permute.xlu0 %2109
    %v2112 = vmul.f32 %v2106, %v1136
    %v2113 = vmul.f32 %v2110, %v1142
    %v2114 = vadd.f32 %v2102, %v2112
    %v2115 = vadd.f32 %v2103, %v2113
    %2116 = vset.pattern.permute.xlu0 15
    %2117 = vperm.xlu0 %2116, %v1928
    %v2118 = vpop.permute.xlu0 %2117
    %2120 = vset.pattern.permute.xlu0 15
    %2121 = vperm.xlu0 %2120, %v1933
    %v2122 = vpop.permute.xlu0 %2121
    %v2124 = vmul.f32 %v2118, %v1138
    %v2125 = vmul.f32 %v2122, %v1144
    %v2126 = vadd.f32 %v2114, %v2124
    %v2127 = vadd.f32 %v2115, %v2125
    %2128 = vset.pattern.permute.xlu0 16
    %2129 = vperm.xlu0 %2128, %v1928
    %v2130 = vpop.permute.xlu0 %2129
    %2132 = vset.pattern.permute.xlu0 16
    %2133 = vperm.xlu0 %2132, %v1933
    %v2134 = vpop.permute.xlu0 %2133
    %v2136 = vmul.f32 %v2130, %v1213
    %v2137 = vmul.f32 %v2134, %v1219
    %v2138 = vadd.f32 %v2126, %v2136
    %v2139 = vadd.f32 %v2127, %v2137
    %2140 = vset.pattern.permute.xlu0 17
    %2141 = vperm.xlu0 %2140, %v1928
    %v2142 = vpop.permute.xlu0 %2141
    %2144 = vset.pattern.permute.xlu0 17
    %2145 = vperm.xlu0 %2144, %v1933
    %v2146 = vpop.permute.xlu0 %2145
    %v2148 = vmul.f32 %v2142, %v1215
    %v2149 = vmul.f32 %v2146, %v1221
    %v2150 = vadd.f32 %v2138, %v2148
    %v2151 = vadd.f32 %v2139, %v2149
    %2152 = vset.pattern.permute.xlu0 18
    %2153 = vperm.xlu0 %2152, %v1928
    %v2154 = vpop.permute.xlu0 %2153
    %2156 = vset.pattern.permute.xlu0 18
    %2157 = vperm.xlu0 %2156, %v1933
    %v2158 = vpop.permute.xlu0 %2157
    %v2160 = vmul.f32 %v2154, %v1290
    %v2161 = vmul.f32 %v2158, %v1296
    %v2162 = vadd.f32 %v2150, %v2160
    %v2163 = vadd.f32 %v2151, %v2161
    %2164 = vset.pattern.permute.xlu0 19
    %2165 = vperm.xlu0 %2164, %v1928
    %v2166 = vpop.permute.xlu0 %2165
    %2168 = vset.pattern.permute.xlu0 19
    %2169 = vperm.xlu0 %2168, %v1933
    %v2170 = vpop.permute.xlu0 %2169
    %v2172 = vmul.f32 %v2166, %v1292
    %v2173 = vmul.f32 %v2170, %v1298
    %v2174 = vadd.f32 %v2162, %v2172
    %v2175 = vadd.f32 %v2163, %v2173
    %2176 = vset.pattern.permute.xlu0 20
    %2177 = vperm.xlu0 %2176, %v1928
    %v2178 = vpop.permute.xlu0 %2177
    %2180 = vset.pattern.permute.xlu0 20
    %2181 = vperm.xlu0 %2180, %v1933
    %v2182 = vpop.permute.xlu0 %2181
    %v2184 = vmul.f32 %v2178, %v1367
    %v2185 = vmul.f32 %v2182, %v1373
    %v2186 = vadd.f32 %v2174, %v2184
    %v2187 = vadd.f32 %v2175, %v2185
    %2188 = vset.pattern.permute.xlu0 21
    %2189 = vperm.xlu0 %2188, %v1928
    %v2190 = vpop.permute.xlu0 %2189
    %2192 = vset.pattern.permute.xlu0 21
    %2193 = vperm.xlu0 %2192, %v1933
    %v2194 = vpop.permute.xlu0 %2193
    %v2196 = vmul.f32 %v2190, %v1369
    %v2197 = vmul.f32 %v2194, %v1375
    %v2198 = vadd.f32 %v2186, %v2196
    %v2199 = vadd.f32 %v2187, %v2197
    %2200 = vset.pattern.permute.xlu0 22
    %2201 = vperm.xlu0 %2200, %v1928
    %v2202 = vpop.permute.xlu0 %2201
    %2204 = vset.pattern.permute.xlu0 22
    %2205 = vperm.xlu0 %2204, %v1933
    %v2206 = vpop.permute.xlu0 %2205
    %v2208 = vmul.f32 %v2202, %v1444
    %v2209 = vmul.f32 %v2206, %v1450
    %v2210 = vadd.f32 %v2198, %v2208
    %v2211 = vadd.f32 %v2199, %v2209
    %2212 = vset.pattern.permute.xlu0 23
    %2213 = vperm.xlu0 %2212, %v1928
    %v2214 = vpop.permute.xlu0 %2213
    %2216 = vset.pattern.permute.xlu0 23
    %2217 = vperm.xlu0 %2216, %v1933
    %v2218 = vpop.permute.xlu0 %2217
    %v2220 = vmul.f32 %v2214, %v1446
    %v2221 = vmul.f32 %v2218, %v1452
    %v2222 = vadd.f32 %v2210, %v2220
    %v2223 = vadd.f32 %v2211, %v2221
    %2224 = vset.pattern.permute.xlu0 24
    %2225 = vperm.xlu0 %2224, %v1928
    %v2226 = vpop.permute.xlu0 %2225
    %2228 = vset.pattern.permute.xlu0 24
    %2229 = vperm.xlu0 %2228, %v1933
    %v2230 = vpop.permute.xlu0 %2229
    %v2232 = vmul.f32 %v2226, %v1521
    %v2233 = vmul.f32 %v2230, %v1527
    %v2234 = vadd.f32 %v2222, %v2232
    %v2235 = vadd.f32 %v2223, %v2233
    %2236 = vset.pattern.permute.xlu0 25
    %2237 = vperm.xlu0 %2236, %v1928
    %v2238 = vpop.permute.xlu0 %2237
    %2240 = vset.pattern.permute.xlu0 25
    %2241 = vperm.xlu0 %2240, %v1933
    %v2242 = vpop.permute.xlu0 %2241
    %v2244 = vmul.f32 %v2238, %v1523
    %v2245 = vmul.f32 %v2242, %v1529
    %v2246 = vadd.f32 %v2234, %v2244
    %v2247 = vadd.f32 %v2235, %v2245
    %2248 = vset.pattern.permute.xlu0 26
    %2249 = vperm.xlu0 %2248, %v1928
    %v2250 = vpop.permute.xlu0 %2249
    %2252 = vset.pattern.permute.xlu0 26
    %2253 = vperm.xlu0 %2252, %v1933
    %v2254 = vpop.permute.xlu0 %2253
    %v2256 = vmul.f32 %v2250, %v1598
    %v2257 = vmul.f32 %v2254, %v1604
    %v2258 = vadd.f32 %v2246, %v2256
    %v2259 = vadd.f32 %v2247, %v2257
    %2260 = vset.pattern.permute.xlu0 27
    %2261 = vperm.xlu0 %2260, %v1928
    %v2262 = vpop.permute.xlu0 %2261
    %2264 = vset.pattern.permute.xlu0 27
    %2265 = vperm.xlu0 %2264, %v1933
    %v2266 = vpop.permute.xlu0 %2265
    %v2268 = vmul.f32 %v2262, %v1600
    %v2269 = vmul.f32 %v2266, %v1606
    %v2270 = vadd.f32 %v2258, %v2268
    %v2271 = vadd.f32 %v2259, %v2269
    %2272 = vset.pattern.permute.xlu0 28
    %2273 = vperm.xlu0 %2272, %v1928
    %v2274 = vpop.permute.xlu0 %2273
    %2276 = vset.pattern.permute.xlu0 28
    %2277 = vperm.xlu0 %2276, %v1933
    %v2278 = vpop.permute.xlu0 %2277
    %v2280 = vmul.f32 %v2274, %v1675
    %v2281 = vmul.f32 %v2278, %v1681
    %v2282 = vadd.f32 %v2270, %v2280
    %v2283 = vadd.f32 %v2271, %v2281
    %2284 = vset.pattern.permute.xlu0 29
    %2285 = vperm.xlu0 %2284, %v1928
    %v2286 = vpop.permute.xlu0 %2285
    %2288 = vset.pattern.permute.xlu0 29
    %2289 = vperm.xlu0 %2288, %v1933
    %v2290 = vpop.permute.xlu0 %2289
    %v2292 = vmul.f32 %v2286, %v1677
    %v2293 = vmul.f32 %v2290, %v1683
    %v2294 = vadd.f32 %v2282, %v2292
    %v2295 = vadd.f32 %v2283, %v2293
    %2296 = vset.pattern.permute.xlu0 30
    %2297 = vperm.xlu0 %2296, %v1928
    %v2298 = vpop.permute.xlu0 %2297
    %2300 = vset.pattern.permute.xlu0 30
    %2301 = vperm.xlu0 %2300, %v1933
    %v2302 = vpop.permute.xlu0 %2301
    %v2304 = vmul.f32 %v2298, %v1752
    %v2305 = vmul.f32 %v2302, %v1758
    %v2306 = vadd.f32 %v2294, %v2304
    %v2307 = vadd.f32 %v2295, %v2305
    %2308 = vset.pattern.permute.xlu0 31
    %2309 = vperm.xlu0 %2308, %v1928
    %v2310 = vpop.permute.xlu0 %2309
    %2312 = vset.pattern.permute.xlu0 31
    %2313 = vperm.xlu0 %2312, %v1933
    %v2314 = vpop.permute.xlu0 %2313
    %v2316 = vmul.f32 %v2310, %v1754
    %v2317 = vmul.f32 %v2314, %v1760
    %v2318 = vadd.f32 %v2306, %v2316
    %v2319 = vadd.f32 %v2307, %v2317
    %v2320 = vlaneseq
    %v2321 = vshrl.u32 %v2320, 7
    %v2322 = vsub.s32 1, %v2321
    %v2323 = vrot.slane %v114, %v2322
    %vm2324 = vcmask 130048
    %v2326 = vsel %vm2324, %v124, 0
    %2328 = vmatprep.subr.mxu0 0.0
    %2329 = vmatpush1.msra.mxu0 %v2318
    %2330 = vmatprep.subr.mxu0 0.0
    %2331 = vmatpush1.msra.mxu0 %v2319
    %2332 = vmatprep.subr.mxu0 0.0
    %2333 = vmatpush1.msra.mxu0 0.0
    %2334 = vmatprep.subr.mxu0 0.0
    %2335 = vmatpush1.msra.mxu0 0.0
    %2336 = vmatprep.subr.mxu0 0.0
    %2337 = vmatpush1.msra.mxu0 0.0
    %2338 = vmatprep.subr.mxu0 0.0
    %2339 = vmatpush1.msra.mxu0 0.0
    %2340 = vmatprep.subr.mxu0 0.0
    %2341 = vmatpush1.msra.mxu0 0.0
    %2342 = vmatprep.subr.mxu0 0.0
    %2343 = vmatpush1.msra.mxu0 0.0
    %2344 = vmatprep.subr.mxu0 0.0
    %2345 = vmatpush1.msra.mxu0 0.0
    %2346 = vmatprep.subr.mxu0 0.0
    %2347 = vmatpush1.msra.mxu0 0.0
    %2348 = vmatprep.subr.mxu0 0.0
    %2349 = vmatpush1.msra.mxu0 0.0
    %2350 = vmatprep.subr.mxu0 0.0
    %2351 = vmatpush1.msra.mxu0 0.0
    %2352 = vmatprep.subr.mxu0 0.0
    %2353 = vmatpush1.msra.mxu0 0.0
    %2354 = vmatprep.subr.mxu0 0.0
    %2355 = vmatpush1.msra.mxu0 0.0
    %2356 = vmatprep.subr.mxu0 0.0
    %2357 = vmatpush1.msra.mxu0 0.0
    %2358 = vmatprep.subr.mxu0 0.0
    %2359 = vmatpush1.msra.mxu0 0.0
    %2360 = vmatprep.subr.mxu0 0.0
    %2361 = vmatpush1.msra.mxu0 0.0
    %2362 = vmatprep.subr.mxu0 0.0
    %2363 = vmatpush1.msra.mxu0 0.0
    %2364 = vmatprep.subr.mxu0 0.0
    %2365 = vmatpush1.msra.mxu0 0.0
    %2366 = vmatprep.subr.mxu0 0.0
    %2367 = vmatpush1.msra.mxu0 0.0
    %2368 = vmatprep.subr.mxu0 0.0
    %2369 = vmatpush1.msra.mxu0 0.0
    %2370 = vmatprep.subr.mxu0 0.0
    %2371 = vmatpush1.msra.mxu0 0.0
    %2372 = vmatprep.subr.mxu0 0.0
    %2373 = vmatpush1.msra.mxu0 0.0
    %2374 = vmatprep.subr.mxu0 0.0
    %2375 = vmatpush1.msra.mxu0 0.0
    %2376 = vmatprep.subr.mxu0 0.0
    %2377 = vmatpush1.msra.mxu0 0.0
    %2378 = vmatprep.subr.mxu0 0.0
    %2379 = vmatpush1.msra.mxu0 0.0
    %2380 = vmatprep.subr.mxu0 0.0
    %2381 = vmatpush1.msra.mxu0 0.0
    %2382 = vmatprep.subr.mxu0 0.0
    %2383 = vmatpush1.msra.mxu0 0.0
    %2384 = vmatprep.subr.mxu0 0.0
    %2385 = vmatpush1.msra.mxu0 0.0
    %2386 = vmatprep.subr.mxu0 0.0
    %2387 = vmatpush1.msra.mxu0 0.0
    %2388 = vmatprep.subr.mxu0 0.0
    %2389 = vmatpush1.msra.mxu0 0.0
    %2390 = vmatprep.subr.mxu0 0.0
    %2391 = vmatpush1.msra.mxu0 0.0
    %2392 = vmatprep.mubr.f32.mxu0 0.0
    %2393 = vmatmul.mubr.f32.gmra.mrb[0].mxu0 %v2326
    %v2394 = vpop.f32.mrb[0].mxu0
    %v2395 = vadd.f32 %v2323, %v2394
    %v2396 = vpop.f32.mrb[0].mxu0
    %2397 = vdwg.mxu0
    %v2398 = vmax.f32 %v2395, 0.0
    %2399 = vmatprep.subr.mxu0 0.0
    %2400 = vmatpush1.msra.mxu0 %v2398
    %2401 = vmatprep.subr.mxu0 0.0
    %2402 = vmatpush1.msra.mxu0 0.0
    %2403 = vmatprep.subr.mxu0 0.0
    %2404 = vmatpush1.msra.mxu0 0.0
    %2405 = vmatprep.subr.mxu0 0.0
    %2406 = vmatpush1.msra.mxu0 0.0
    %2407 = vmatprep.subr.mxu0 0.0
    %2408 = vmatpush1.msra.mxu0 0.0
    %2409 = vmatprep.subr.mxu0 0.0
    %2410 = vmatpush1.msra.mxu0 0.0
    %2411 = vmatprep.subr.mxu0 0.0
    %2412 = vmatpush1.msra.mxu0 0.0
    %2413 = vmatprep.subr.mxu0 0.0
    %2414 = vmatpush1.msra.mxu0 0.0
    %2415 = vmatprep.subr.mxu0 0.0
    %2416 = vmatpush1.msra.mxu0 0.0
    %2417 = vmatprep.subr.mxu0 0.0
    %2418 = vmatpush1.msra.mxu0 0.0
    %2419 = vmatprep.subr.mxu0 0.0
    %2420 = vmatpush1.msra.mxu0 0.0
    %2421 = vmatprep.subr.mxu0 0.0
    %2422 = vmatpush1.msra.mxu0 0.0
    %2423 = vmatprep.subr.mxu0 0.0
    %2424 = vmatpush1.msra.mxu0 0.0
    %2425 = vmatprep.subr.mxu0 0.0
    %2426 = vmatpush1.msra.mxu0 0.0
    %2427 = vmatprep.subr.mxu0 0.0
    %2428 = vmatpush1.msra.mxu0 0.0
    %2429 = vmatprep.subr.mxu0 0.0
    %2430 = vmatpush1.msra.mxu0 0.0
    %2431 = vmatprep.subr.mxu0 0.0
    %2432 = vmatpush1.msra.mxu0 0.0
    %2433 = vmatprep.subr.mxu0 0.0
    %2434 = vmatpush1.msra.mxu0 0.0
    %2435 = vmatprep.subr.mxu0 0.0
    %2436 = vmatpush1.msra.mxu0 0.0
    %2437 = vmatprep.subr.mxu0 0.0
    %2438 = vmatpush1.msra.mxu0 0.0
    %2439 = vmatprep.subr.mxu0 0.0
    %2440 = vmatpush1.msra.mxu0 0.0
    %2441 = vmatprep.subr.mxu0 0.0
    %2442 = vmatpush1.msra.mxu0 0.0
    %2443 = vmatprep.subr.mxu0 0.0
    %2444 = vmatpush1.msra.mxu0 0.0
    %2445 = vmatprep.subr.mxu0 0.0
    %2446 = vmatpush1.msra.mxu0 0.0
    %2447 = vmatprep.subr.mxu0 0.0
    %2448 = vmatpush1.msra.mxu0 0.0
    %2449 = vmatprep.subr.mxu0 0.0
    %2450 = vmatpush1.msra.mxu0 0.0
    %2451 = vmatprep.subr.mxu0 0.0
    %2452 = vmatpush1.msra.mxu0 0.0
    %2453 = vmatprep.subr.mxu0 0.0
    %2454 = vmatpush1.msra.mxu0 0.0
    %2455 = vmatprep.subr.mxu0 0.0
    %2456 = vmatpush1.msra.mxu0 0.0
    %2457 = vmatprep.subr.mxu0 0.0
    %2458 = vmatpush1.msra.mxu0 0.0
    %2459 = vmatprep.subr.mxu0 0.0
    %2460 = vmatpush1.msra.mxu0 0.0
    %2461 = vmatprep.subr.mxu0 0.0
    %2462 = vmatpush1.msra.mxu0 0.0
    %2463 = vmatprep.mubr.f32.mxu0 0.0
    %2464 = vmatmul.mubr.f32.gmra.mrb[0].mxu0 %v1856
    %v2465 = vpop.f32.mrb[0].mxu0
    %v2466 = vadd.f32 0.0, %v2465
    %v2467 = vpop.f32.mrb[0].mxu0
    %2468 = vmatprep.mubr.f32.mxu0 0.0
    %2469 = vmatmul.mubr.f32.gmra.mrb[0].mxu0 %v1859
    %v2470 = vpop.f32.mrb[0].mxu0
    %v2471 = vadd.f32 0.0, %v2470
    %v2472 = vpop.f32.mrb[0].mxu0
    %2473 = vdwg.mxu0
    %2475 = vset.pattern.permute.xlu0 0
    %2476 = vperm.xlu0 %2475, %v2466
    %v2477 = vpop.permute.xlu0 %2476
    %2480 = vset.pattern.permute.xlu0 0
    %2481 = vperm.xlu0 %2480, %v2471
    %v2482 = vpop.permute.xlu0 %2481
    %v2484 = vmul.f32 %v2477, %v597
    %v2485 = vmul.f32 %v2482, %v603
    %2486 = vset.pattern.permute.xlu0 1
    %2487 = vperm.xlu0 %2486, %v2466
    %v2488 = vpop.permute.xlu0 %2487
    %2490 = vset.pattern.permute.xlu0 1
    %2491 = vperm.xlu0 %2490, %v2471
    %v2492 = vpop.permute.xlu0 %2491
    %v2494 = vmul.f32 %v2488, %v599
    %v2495 = vmul.f32 %v2492, %v605
    %v2496 = vadd.f32 %v2484, %v2494
    %v2497 = vadd.f32 %v2485, %v2495
    %2498 = vset.pattern.permute.xlu0 2
    %2499 = vperm.xlu0 %2498, %v2466
    %v2500 = vpop.permute.xlu0 %2499
    %2502 = vset.pattern.permute.xlu0 2
    %2503 = vperm.xlu0 %2502, %v2471
    %v2504 = vpop.permute.xlu0 %2503
    %v2506 = vmul.f32 %v2500, %v674
    %v2507 = vmul.f32 %v2504, %v680
    %v2508 = vadd.f32 %v2496, %v2506
    %v2509 = vadd.f32 %v2497, %v2507
    %2510 = vset.pattern.permute.xlu0 3
    %2511 = vperm.xlu0 %2510, %v2466
    %v2512 = vpop.permute.xlu0 %2511
    %2514 = vset.pattern.permute.xlu0 3
    %2515 = vperm.xlu0 %2514, %v2471
    %v2516 = vpop.permute.xlu0 %2515
    %v2518 = vmul.f32 %v2512, %v676
    %v2519 = vmul.f32 %v2516, %v682
    %v2520 = vadd.f32 %v2508, %v2518
    %v2521 = vadd.f32 %v2509, %v2519
    %2522 = vset.pattern.permute.xlu0 4
    %2523 = vperm.xlu0 %2522, %v2466
    %v2524 = vpop.permute.xlu0 %2523
    %2526 = vset.pattern.permute.xlu0 4
    %2527 = vperm.xlu0 %2526, %v2471
    %v2528 = vpop.permute.xlu0 %2527
    %v2530 = vmul.f32 %v2524, %v751
    %v2531 = vmul.f32 %v2528, %v757
    %v2532 = vadd.f32 %v2520, %v2530
    %v2533 = vadd.f32 %v2521, %v2531
    %2534 = vset.pattern.permute.xlu0 5
    %2535 = vperm.xlu0 %2534, %v2466
    %v2536 = vpop.permute.xlu0 %2535
    %2538 = vset.pattern.permute.xlu0 5
    %2539 = vperm.xlu0 %2538, %v2471
    %v2540 = vpop.permute.xlu0 %2539
    %v2542 = vmul.f32 %v2536, %v753
    %v2543 = vmul.f32 %v2540, %v759
    %v2544 = vadd.f32 %v2532, %v2542
    %v2545 = vadd.f32 %v2533, %v2543
    %2546 = vset.pattern.permute.xlu0 6
    %2547 = vperm.xlu0 %2546, %v2466
    %v2548 = vpop.permute.xlu0 %2547
    %2550 = vset.pattern.permute.xlu0 6
    %2551 = vperm.xlu0 %2550, %v2471
    %v2552 = vpop.permute.xlu0 %2551
    %v2554 = vmul.f32 %v2548, %v828
    %v2555 = vmul.f32 %v2552, %v834
    %v2556 = vadd.f32 %v2544, %v2554
    %v2557 = vadd.f32 %v2545, %v2555
    %2558 = vset.pattern.permute.xlu0 7
    %2559 = vperm.xlu0 %2558, %v2466
    %v2560 = vpop.permute.xlu0 %2559
    %2562 = vset.pattern.permute.xlu0 7
    %2563 = vperm.xlu0 %2562, %v2471
    %v2564 = vpop.permute.xlu0 %2563
    %v2566 = vmul.f32 %v2560, %v830
    %v2567 = vmul.f32 %v2564, %v836
    %v2568 = vadd.f32 %v2556, %v2566
    %v2569 = vadd.f32 %v2557, %v2567
    %2570 = vset.pattern.permute.xlu0 8
    %2571 = vperm.xlu0 %2570, %v2466
    %v2572 = vpop.permute.xlu0 %2571
    %2574 = vset.pattern.permute.xlu0 8
    %2575 = vperm.xlu0 %2574, %v2471
    %v2576 = vpop.permute.xlu0 %2575
    %v2578 = vmul.f32 %v2572, %v905
    %v2579 = vmul.f32 %v2576, %v911
    %v2580 = vadd.f32 %v2568, %v2578
    %v2581 = vadd.f32 %v2569, %v2579
    %2582 = vset.pattern.permute.xlu0 9
    %2583 = vperm.xlu0 %2582, %v2466
    %v2584 = vpop.permute.xlu0 %2583
    %2586 = vset.pattern.permute.xlu0 9
    %2587 = vperm.xlu0 %2586, %v2471
    %v2588 = vpop.permute.xlu0 %2587
    %v2590 = vmul.f32 %v2584, %v907
    %v2591 = vmul.f32 %v2588, %v913
    %v2592 = vadd.f32 %v2580, %v2590
    %v2593 = vadd.f32 %v2581, %v2591
    %2594 = vset.pattern.permute.xlu0 10
    %2595 = vperm.xlu0 %2594, %v2466
    %v2596 = vpop.permute.xlu0 %2595
    %2598 = vset.pattern.permute.xlu0 10
    %2599 = vperm.xlu0 %2598, %v2471
    %v2600 = vpop.permute.xlu0 %2599
    %v2602 = vmul.f32 %v2596, %v982
    %v2603 = vmul.f32 %v2600, %v988
    %v2604 = vadd.f32 %v2592, %v2602
    %v2605 = vadd.f32 %v2593, %v2603
    %2606 = vset.pattern.permute.xlu0 11
    %2607 = vperm.xlu0 %2606, %v2466
    %v2608 = vpop.permute.xlu0 %2607
    %2610 = vset.pattern.permute.xlu0 11
    %2611 = vperm.xlu0 %2610, %v2471
    %v2612 = vpop.permute.xlu0 %2611
    %v2614 = vmul.f32 %v2608, %v984
    %v2615 = vmul.f32 %v2612, %v990
    %v2616 = vadd.f32 %v2604, %v2614
    %v2617 = vadd.f32 %v2605, %v2615
    %2618 = vset.pattern.permute.xlu0 12
    %2619 = vperm.xlu0 %2618, %v2466
    %v2620 = vpop.permute.xlu0 %2619
    %2622 = vset.pattern.permute.xlu0 12
    %2623 = vperm.xlu0 %2622, %v2471
    %v2624 = vpop.permute.xlu0 %2623
    %v2626 = vmul.f32 %v2620, %v1059
    %v2627 = vmul.f32 %v2624, %v1065
    %v2628 = vadd.f32 %v2616, %v2626
    %v2629 = vadd.f32 %v2617, %v2627
    %2630 = vset.pattern.permute.xlu0 13
    %2631 = vperm.xlu0 %2630, %v2466
    %v2632 = vpop.permute.xlu0 %2631
    %2634 = vset.pattern.permute.xlu0 13
    %2635 = vperm.xlu0 %2634, %v2471
    %v2636 = vpop.permute.xlu0 %2635
    %v2638 = vmul.f32 %v2632, %v1061
    %v2639 = vmul.f32 %v2636, %v1067
    %v2640 = vadd.f32 %v2628, %v2638
    %v2641 = vadd.f32 %v2629, %v2639
    %2642 = vset.pattern.permute.xlu0 14
    %2643 = vperm.xlu0 %2642, %v2466
    %v2644 = vpop.permute.xlu0 %2643
    %2646 = vset.pattern.permute.xlu0 14
    %2647 = vperm.xlu0 %2646, %v2471
    %v2648 = vpop.permute.xlu0 %2647
    %v2650 = vmul.f32 %v2644, %v1136
    %v2651 = vmul.f32 %v2648, %v1142
    %v2652 = vadd.f32 %v2640, %v2650
    %v2653 = vadd.f32 %v2641, %v2651
    %2654 = vset.pattern.permute.xlu0 15
    %2655 = vperm.xlu0 %2654, %v2466
    %v2656 = vpop.permute.xlu0 %2655
    %2658 = vset.pattern.permute.xlu0 15
    %2659 = vperm.xlu0 %2658, %v2471
    %v2660 = vpop.permute.xlu0 %2659
    %v2662 = vmul.f32 %v2656, %v1138
    %v2663 = vmul.f32 %v2660, %v1144
    %v2664 = vadd.f32 %v2652, %v2662
    %v2665 = vadd.f32 %v2653, %v2663
    %2666 = vset.pattern.permute.xlu0 16
    %2667 = vperm.xlu0 %2666, %v2466
    %v2668 = vpop.permute.xlu0 %2667
    %2670 = vset.pattern.permute.xlu0 16
    %2671 = vperm.xlu0 %2670, %v2471
    %v2672 = vpop.permute.xlu0 %2671
    %v2674 = vmul.f32 %v2668, %v1213
    %v2675 = vmul.f32 %v2672, %v1219
    %v2676 = vadd.f32 %v2664, %v2674
    %v2677 = vadd.f32 %v2665, %v2675
    %2678 = vset.pattern.permute.xlu0 17
    %2679 = vperm.xlu0 %2678, %v2466
    %v2680 = vpop.permute.xlu0 %2679
    %2682 = vset.pattern.permute.xlu0 17
    %2683 = vperm.xlu0 %2682, %v2471
    %v2684 = vpop.permute.xlu0 %2683
    %v2686 = vmul.f32 %v2680, %v1215
    %v2687 = vmul.f32 %v2684, %v1221
    %v2688 = vadd.f32 %v2676, %v2686
    %v2689 = vadd.f32 %v2677, %v2687
    %2690 = vset.pattern.permute.xlu0 18
    %2691 = vperm.xlu0 %2690, %v2466
    %v2692 = vpop.permute.xlu0 %2691
    %2694 = vset.pattern.permute.xlu0 18
    %2695 = vperm.xlu0 %2694, %v2471
    %v2696 = vpop.permute.xlu0 %2695
    %v2698 = vmul.f32 %v2692, %v1290
    %v2699 = vmul.f32 %v2696, %v1296
    %v2700 = vadd.f32 %v2688, %v2698
    %v2701 = vadd.f32 %v2689, %v2699
    %2702 = vset.pattern.permute.xlu0 19
    %2703 = vperm.xlu0 %2702, %v2466
    %v2704 = vpop.permute.xlu0 %2703
    %2706 = vset.pattern.permute.xlu0 19
    %2707 = vperm.xlu0 %2706, %v2471
    %v2708 = vpop.permute.xlu0 %2707
    %v2710 = vmul.f32 %v2704, %v1292
    %v2711 = vmul.f32 %v2708, %v1298
    %v2712 = vadd.f32 %v2700, %v2710
    %v2713 = vadd.f32 %v2701, %v2711
    %2714 = vset.pattern.permute.xlu0 20
    %2715 = vperm.xlu0 %2714, %v2466
    %v2716 = vpop.permute.xlu0 %2715
    %2718 = vset.pattern.permute.xlu0 20
    %2719 = vperm.xlu0 %2718, %v2471
    %v2720 = vpop.permute.xlu0 %2719
    %v2722 = vmul.f32 %v2716, %v1367
    %v2723 = vmul.f32 %v2720, %v1373
    %v2724 = vadd.f32 %v2712, %v2722
    %v2725 = vadd.f32 %v2713, %v2723
    %2726 = vset.pattern.permute.xlu0 21
    %2727 = vperm.xlu0 %2726, %v2466
    %v2728 = vpop.permute.xlu0 %2727
    %2730 = vset.pattern.permute.xlu0 21
    %2731 = vperm.xlu0 %2730, %v2471
    %v2732 = vpop.permute.xlu0 %2731
    %v2734 = vmul.f32 %v2728, %v1369
    %v2735 = vmul.f32 %v2732, %v1375
    %v2736 = vadd.f32 %v2724, %v2734
    %v2737 = vadd.f32 %v2725, %v2735
    %2738 = vset.pattern.permute.xlu0 22
    %2739 = vperm.xlu0 %2738, %v2466
    %v2740 = vpop.permute.xlu0 %2739
    %2742 = vset.pattern.permute.xlu0 22
    %2743 = vperm.xlu0 %2742, %v2471
    %v2744 = vpop.permute.xlu0 %2743
    %v2746 = vmul.f32 %v2740, %v1444
    %v2747 = vmul.f32 %v2744, %v1450
    %v2748 = vadd.f32 %v2736, %v2746
    %v2749 = vadd.f32 %v2737, %v2747
    %2750 = vset.pattern.permute.xlu0 23
    %2751 = vperm.xlu0 %2750, %v2466
    %v2752 = vpop.permute.xlu0 %2751
    %2754 = vset.pattern.permute.xlu0 23
    %2755 = vperm.xlu0 %2754, %v2471
    %v2756 = vpop.permute.xlu0 %2755
    %v2758 = vmul.f32 %v2752, %v1446
    %v2759 = vmul.f32 %v2756, %v1452
    %v2760 = vadd.f32 %v2748, %v2758
    %v2761 = vadd.f32 %v2749, %v2759
    %2762 = vset.pattern.permute.xlu0 24
    %2763 = vperm.xlu0 %2762, %v2466
    %v2764 = vpop.permute.xlu0 %2763
    %2766 = vset.pattern.permute.xlu0 24
    %2767 = vperm.xlu0 %2766, %v2471
    %v2768 = vpop.permute.xlu0 %2767
    %v2770 = vmul.f32 %v2764, %v1521
    %v2771 = vmul.f32 %v2768, %v1527
    %v2772 = vadd.f32 %v2760, %v2770
    %v2773 = vadd.f32 %v2761, %v2771
    %2774 = vset.pattern.permute.xlu0 25
    %2775 = vperm.xlu0 %2774, %v2466
    %v2776 = vpop.permute.xlu0 %2775
    %2778 = vset.pattern.permute.xlu0 25
    %2779 = vperm.xlu0 %2778, %v2471
    %v2780 = vpop.permute.xlu0 %2779
    %v2782 = vmul.f32 %v2776, %v1523
    %v2783 = vmul.f32 %v2780, %v1529
    %v2784 = vadd.f32 %v2772, %v2782
    %v2785 = vadd.f32 %v2773, %v2783
    %2786 = vset.pattern.permute.xlu0 26
    %2787 = vperm.xlu0 %2786, %v2466
    %v2788 = vpop.permute.xlu0 %2787
    %2790 = vset.pattern.permute.xlu0 26
    %2791 = vperm.xlu0 %2790, %v2471
    %v2792 = vpop.permute.xlu0 %2791
    %v2794 = vmul.f32 %v2788, %v1598
    %v2795 = vmul.f32 %v2792, %v1604
    %v2796 = vadd.f32 %v2784, %v2794
    %v2797 = vadd.f32 %v2785, %v2795
    %2798 = vset.pattern.permute.xlu0 27
    %2799 = vperm.xlu0 %2798, %v2466
    %v2800 = vpop.permute.xlu0 %2799
    %2802 = vset.pattern.permute.xlu0 27
    %2803 = vperm.xlu0 %2802, %v2471
    %v2804 = vpop.permute.xlu0 %2803
    %v2806 = vmul.f32 %v2800, %v1600
    %v2807 = vmul.f32 %v2804, %v1606
    %v2808 = vadd.f32 %v2796, %v2806
    %v2809 = vadd.f32 %v2797, %v2807
    %2810 = vset.pattern.permute.xlu0 28
    %2811 = vperm.xlu0 %2810, %v2466
    %v2812 = vpop.permute.xlu0 %2811
    %2814 = vset.pattern.permute.xlu0 28
    %2815 = vperm.xlu0 %2814, %v2471
    %v2816 = vpop.permute.xlu0 %2815
    %v2818 = vmul.f32 %v2812, %v1675
    %v2819 = vmul.f32 %v2816, %v1681
    %v2820 = vadd.f32 %v2808, %v2818
    %v2821 = vadd.f32 %v2809, %v2819
    %2822 = vset.pattern.permute.xlu0 29
    %2823 = vperm.xlu0 %2822, %v2466
    %v2824 = vpop.permute.xlu0 %2823
    %2826 = vset.pattern.permute.xlu0 29
    %2827 = vperm.xlu0 %2826, %v2471
    %v2828 = vpop.permute.xlu0 %2827
    %v2830 = vmul.f32 %v2824, %v1677
    %v2831 = vmul.f32 %v2828, %v1683
    %v2832 = vadd.f32 %v2820, %v2830
    %v2833 = vadd.f32 %v2821, %v2831
    %2834 = vset.pattern.permute.xlu0 30
    %2835 = vperm.xlu0 %2834, %v2466
    %v2836 = vpop.permute.xlu0 %2835
    %2838 = vset.pattern.permute.xlu0 30
    %2839 = vperm.xlu0 %2838, %v2471
    %v2840 = vpop.permute.xlu0 %2839
    %v2842 = vmul.f32 %v2836, %v1752
    %v2843 = vmul.f32 %v2840, %v1758
    %v2844 = vadd.f32 %v2832, %v2842
    %v2845 = vadd.f32 %v2833, %v2843
    %2846 = vset.pattern.permute.xlu0 31
    %2847 = vperm.xlu0 %2846, %v2466
    %v2848 = vpop.permute.xlu0 %2847
    %2850 = vset.pattern.permute.xlu0 31
    %2851 = vperm.xlu0 %2850, %v2471
    %v2852 = vpop.permute.xlu0 %2851
    %v2854 = vmul.f32 %v2848, %v1754
    %v2855 = vmul.f32 %v2852, %v1760
    %v2856 = vadd.f32 %v2844, %v2854
    %v2857 = vadd.f32 %v2845, %v2855
    %2858 = vmatprep.subr.mxu0 0.0
    %2859 = vmatpush1.msra.mxu0 %v2856
    %2860 = vmatprep.subr.mxu0 0.0
    %2861 = vmatpush1.msra.mxu0 %v2857
    %2862 = vmatprep.subr.mxu0 0.0
    %2863 = vmatpush1.msra.mxu0 0.0
    %2864 = vmatprep.subr.mxu0 0.0
    %2865 = vmatpush1.msra.mxu0 0.0
    %2866 = vmatprep.subr.mxu0 0.0
    %2867 = vmatpush1.msra.mxu0 0.0
    %2868 = vmatprep.subr.mxu0 0.0
    %2869 = vmatpush1.msra.mxu0 0.0
    %2870 = vmatprep.subr.mxu0 0.0
    %2871 = vmatpush1.msra.mxu0 0.0
    %2872 = vmatprep.subr.mxu0 0.0
    %2873 = vmatpush1.msra.mxu0 0.0
    %2874 = vmatprep.subr.mxu0 0.0
    %2875 = vmatpush1.msra.mxu0 0.0
    %2876 = vmatprep.subr.mxu0 0.0
    %2877 = vmatpush1.msra.mxu0 0.0
    %2878 = vmatprep.subr.mxu0 0.0
    %2879 = vmatpush1.msra.mxu0 0.0
    %2880 = vmatprep.subr.mxu0 0.0
    %2881 = vmatpush1.msra.mxu0 0.0
    %2882 = vmatprep.subr.mxu0 0.0
    %2883 = vmatpush1.msra.mxu0 0.0
    %2884 = vmatprep.subr.mxu0 0.0
    %2885 = vmatpush1.msra.mxu0 0.0
    %2886 = vmatprep.subr.mxu0 0.0
    %2887 = vmatpush1.msra.mxu0 0.0
    %2888 = vmatprep.subr.mxu0 0.0
    %2889 = vmatpush1.msra.mxu0 0.0
    %2890 = vmatprep.subr.mxu0 0.0
    %2891 = vmatpush1.msra.mxu0 0.0
    %2892 = vmatprep.subr.mxu0 0.0
    %2893 = vmatpush1.msra.mxu0 0.0
    %2894 = vmatprep.subr.mxu0 0.0
    %2895 = vmatpush1.msra.mxu0 0.0
    %2896 = vmatprep.subr.mxu0 0.0
    %2897 = vmatpush1.msra.mxu0 0.0
    %2898 = vmatprep.subr.mxu0 0.0
    %2899 = vmatpush1.msra.mxu0 0.0
    %2900 = vmatprep.subr.mxu0 0.0
    %2901 = vmatpush1.msra.mxu0 0.0
    %2902 = vmatprep.subr.mxu0 0.0
    %2903 = vmatpush1.msra.mxu0 0.0
    %2904 = vmatprep.subr.mxu0 0.0
    %2905 = vmatpush1.msra.mxu0 0.0
    %2906 = vmatprep.subr.mxu0 0.0
    %2907 = vmatpush1.msra.mxu0 0.0
    %2908 = vmatprep.subr.mxu0 0.0
    %2909 = vmatpush1.msra.mxu0 0.0
    %2910 = vmatprep.subr.mxu0 0.0
    %2911 = vmatpush1.msra.mxu0 0.0
    %2912 = vmatprep.subr.mxu0 0.0
    %2913 = vmatpush1.msra.mxu0 0.0
    %2914 = vmatprep.subr.mxu0 0.0
    %2915 = vmatpush1.msra.mxu0 0.0
    %2916 = vmatprep.subr.mxu0 0.0
    %2917 = vmatpush1.msra.mxu0 0.0
    %2918 = vmatprep.subr.mxu0 0.0
    %2919 = vmatpush1.msra.mxu0 0.0
    %2920 = vmatprep.subr.mxu0 0.0
    %2921 = vmatpush1.msra.mxu0 0.0
    %2922 = vmatprep.mubr.f32.mxu0 0.0
    %2923 = vmatmul.mubr.f32.gmra.mrb[0].mxu0 %v2326
    %v2924 = vpop.f32.mrb[0].mxu0
    %v2925 = vadd.f32 %v2323, %v2924
    %v2926 = vpop.f32.mrb[0].mxu0
    %2927 = vdwg.mxu0
    %v2928 = vmax.f32 %v2925, 0.0
    %2929 = vmatprep.subr.mxu0 0.0
    %2930 = vmatpush1.msra.mxu0 %v2928
    %2931 = vmatprep.subr.mxu0 0.0
    %2932 = vmatpush1.msra.mxu0 0.0
    %2933 = vmatprep.subr.mxu0 0.0
    %2934 = vmatpush1.msra.mxu0 0.0
    %2935 = vmatprep.subr.mxu0 0.0
    %2936 = vmatpush1.msra.mxu0 0.0
    %2937 = vmatprep.subr.mxu0 0.0
    %2938 = vmatpush1.msra.mxu0 0.0
    %2939 = vmatprep.subr.mxu0 0.0
    %2940 = vmatpush1.msra.mxu0 0.0
    %2941 = vmatprep.subr.mxu0 0.0
    %2942 = vmatpush1.msra.mxu0 0.0
    %2943 = vmatprep.subr.mxu0 0.0
    %2944 = vmatpush1.msra.mxu0 0.0
    %2945 = vmatprep.subr.mxu0 0.0
    %2946 = vmatpush1.msra.mxu0 0.0
    %2947 = vmatprep.subr.mxu0 0.0
    %2948 = vmatpush1.msra.mxu0 0.0
    %2949 = vmatprep.subr.mxu0 0.0
    %2950 = vmatpush1.msra.mxu0 0.0
    %2951 = vmatprep.subr.mxu0 0.0
    %2952 = vmatpush1.msra.mxu0 0.0
    %2953 = vmatprep.subr.mxu0 0.0
    %2954 = vmatpush1.msra.mxu0 0.0
    %2955 = vmatprep.subr.mxu0 0.0
    %2956 = vmatpush1.msra.mxu0 0.0
    %2957 = vmatprep.subr.mxu0 0.0
    %2958 = vmatpush1.msra.mxu0 0.0
    %2959 = vmatprep.subr.mxu0 0.0
    %2960 = vmatpush1.msra.mxu0 0.0
    %2961 = vmatprep.subr.mxu0 0.0
    %2962 = vmatpush1.msra.mxu0 0.0
    %2963 = vmatprep.subr.mxu0 0.0
    %2964 = vmatpush1.msra.mxu0 0.0
    %2965 = vmatprep.subr.mxu0 0.0
    %2966 = vmatpush1.msra.mxu0 0.0
    %2967 = vmatprep.subr.mxu0 0.0
    %2968 = vmatpush1.msra.mxu0 0.0
    %2969 = vmatprep.subr.mxu0 0.0
    %2970 = vmatpush1.msra.mxu0 0.0
    %2971 = vmatprep.subr.mxu0 0.0
    %2972 = vmatpush1.msra.mxu0 0.0
    %2973 = vmatprep.subr.mxu0 0.0
    %2974 = vmatpush1.msra.mxu0 0.0
    %2975 = vmatprep.subr.mxu0 0.0
    %2976 = vmatpush1.msra.mxu0 0.0
    %2977 = vmatprep.subr.mxu0 0.0
    %2978 = vmatpush1.msra.mxu0 0.0
    %2979 = vmatprep.subr.mxu0 0.0
    %2980 = vmatpush1.msra.mxu0 0.0
    %2981 = vmatprep.subr.mxu0 0.0
    %2982 = vmatpush1.msra.mxu0 0.0
    %2983 = vmatprep.subr.mxu0 0.0
    %2984 = vmatpush1.msra.mxu0 0.0
    %2985 = vmatprep.subr.mxu0 0.0
    %2986 = vmatpush1.msra.mxu0 0.0
    %2987 = vmatprep.subr.mxu0 0.0
    %2988 = vmatpush1.msra.mxu0 0.0
    %2989 = vmatprep.subr.mxu0 0.0
    %2990 = vmatpush1.msra.mxu0 0.0
    %2991 = vmatprep.subr.mxu0 0.0
    %2992 = vmatpush1.msra.mxu0 0.0
    %2993 = vmatprep.mubr.f32.mxu0 0.0
    %2994 = vmatmul.mubr.f32.gmra.mrb[0].mxu0 %v1856
    %v2995 = vpop.f32.mrb[0].mxu0
    %v2996 = vadd.f32 0.0, %v2995
    %v2997 = vpop.f32.mrb[0].mxu0
    %2998 = vmatprep.mubr.f32.mxu0 0.0
    %2999 = vmatmul.mubr.f32.gmra.mrb[0].mxu0 %v1859
    %v3000 = vpop.f32.mrb[0].mxu0
    %v3001 = vadd.f32 0.0, %v3000
    %v3002 = vpop.f32.mrb[0].mxu0
    %3003 = vdwg.mxu0
    %3005 = vset.pattern.permute.xlu0 0
    %3006 = vperm.xlu0 %3005, %v2996
    %v3007 = vpop.permute.xlu0 %3006
    %3010 = vset.pattern.permute.xlu0 0
    %3011 = vperm.xlu0 %3010, %v3001
    %v3012 = vpop.permute.xlu0 %3011
    %v3014 = vmul.f32 %v3007, %v597
    %v3015 = vmul.f32 %v3012, %v603
    %3016 = vset.pattern.permute.xlu0 1
    %3017 = vperm.xlu0 %3016, %v2996
    %v3018 = vpop.permute.xlu0 %3017
    %3020 = vset.pattern.permute.xlu0 1
    %3021 = vperm.xlu0 %3020, %v3001
    %v3022 = vpop.permute.xlu0 %3021
    %v3024 = vmul.f32 %v3018, %v599
    %v3025 = vmul.f32 %v3022, %v605
    %v3026 = vadd.f32 %v3014, %v3024
    %v3027 = vadd.f32 %v3015, %v3025
    %3028 = vset.pattern.permute.xlu0 2
    %3029 = vperm.xlu0 %3028, %v2996
    %v3030 = vpop.permute.xlu0 %3029
    %3032 = vset.pattern.permute.xlu0 2
    %3033 = vperm.xlu0 %3032, %v3001
    %v3034 = vpop.permute.xlu0 %3033
    %v3036 = vmul.f32 %v3030, %v674
    %v3037 = vmul.f32 %v3034, %v680
    %v3038 = vadd.f32 %v3026, %v3036
    %v3039 = vadd.f32 %v3027, %v3037
    %3040 = vset.pattern.permute.xlu0 3
    %3041 = vperm.xlu0 %3040, %v2996
    %v3042 = vpop.permute.xlu0 %3041
    %3044 = vset.pattern.permute.xlu0 3
    %3045 = vperm.xlu0 %3044, %v3001
    %v3046 = vpop.permute.xlu0 %3045
    %v3048 = vmul.f32 %v3042, %v676
    %v3049 = vmul.f32 %v3046, %v682
    %v3050 = vadd.f32 %v3038, %v3048
    %v3051 = vadd.f32 %v3039, %v3049
    %3052 = vset.pattern.permute.xlu0 4
    %3053 = vperm.xlu0 %3052, %v2996
    %v3054 = vpop.permute.xlu0 %3053
    %3056 = vset.pattern.permute.xlu0 4
    %3057 = vperm.xlu0 %3056, %v3001
    %v3058 = vpop.permute.xlu0 %3057
    %v3060 = vmul.f32 %v3054, %v751
    %v3061 = vmul.f32 %v3058, %v757
    %v3062 = vadd.f32 %v3050, %v3060
    %v3063 = vadd.f32 %v3051, %v3061
    %3064 = vset.pattern.permute.xlu0 5
    %3065 = vperm.xlu0 %3064, %v2996
    %v3066 = vpop.permute.xlu0 %3065
    %3068 = vset.pattern.permute.xlu0 5
    %3069 = vperm.xlu0 %3068, %v3001
    %v3070 = vpop.permute.xlu0 %3069
    %v3072 = vmul.f32 %v3066, %v753
    %v3073 = vmul.f32 %v3070, %v759
    %v3074 = vadd.f32 %v3062, %v3072
    %v3075 = vadd.f32 %v3063, %v3073
    %3076 = vset.pattern.permute.xlu0 6
    %3077 = vperm.xlu0 %3076, %v2996
    %v3078 = vpop.permute.xlu0 %3077
    %3080 = vset.pattern.permute.xlu0 6
    %3081 = vperm.xlu0 %3080, %v3001
    %v3082 = vpop.permute.xlu0 %3081
    %v3084 = vmul.f32 %v3078, %v828
    %v3085 = vmul.f32 %v3082, %v834
    %v3086 = vadd.f32 %v3074, %v3084
    %v3087 = vadd.f32 %v3075, %v3085
    %3088 = vset.pattern.permute.xlu0 7
    %3089 = vperm.xlu0 %3088, %v2996
    %v3090 = vpop.permute.xlu0 %3089
    %3092 = vset.pattern.permute.xlu0 7
    %3093 = vperm.xlu0 %3092, %v3001
    %v3094 = vpop.permute.xlu0 %3093
    %v3096 = vmul.f32 %v3090, %v830
    %v3097 = vmul.f32 %v3094, %v836
    %v3098 = vadd.f32 %v3086, %v3096
    %v3099 = vadd.f32 %v3087, %v3097
    %3100 = vset.pattern.permute.xlu0 8
    %3101 = vperm.xlu0 %3100, %v2996
    %v3102 = vpop.permute.xlu0 %3101
    %3104 = vset.pattern.permute.xlu0 8
    %3105 = vperm.xlu0 %3104, %v3001
    %v3106 = vpop.permute.xlu0 %3105
    %v3108 = vmul.f32 %v3102, %v905
    %v3109 = vmul.f32 %v3106, %v911
    %v3110 = vadd.f32 %v3098, %v3108
    %v3111 = vadd.f32 %v3099, %v3109
    %3112 = vset.pattern.permute.xlu0 9
    %3113 = vperm.xlu0 %3112, %v2996
    %v3114 = vpop.permute.xlu0 %3113
    %3116 = vset.pattern.permute.xlu0 9
    %3117 = vperm.xlu0 %3116, %v3001
    %v3118 = vpop.permute.xlu0 %3117
    %v3120 = vmul.f32 %v3114, %v907
    %v3121 = vmul.f32 %v3118, %v913
    %v3122 = vadd.f32 %v3110, %v3120
    %v3123 = vadd.f32 %v3111, %v3121
    %3124 = vset.pattern.permute.xlu0 10
    %3125 = vperm.xlu0 %3124, %v2996
    %v3126 = vpop.permute.xlu0 %3125
    %3128 = vset.pattern.permute.xlu0 10
    %3129 = vperm.xlu0 %3128, %v3001
    %v3130 = vpop.permute.xlu0 %3129
    %v3132 = vmul.f32 %v3126, %v982
    %v3133 = vmul.f32 %v3130, %v988
    %v3134 = vadd.f32 %v3122, %v3132
    %v3135 = vadd.f32 %v3123, %v3133
    %3136 = vset.pattern.permute.xlu0 11
    %3137 = vperm.xlu0 %3136, %v2996
    %v3138 = vpop.permute.xlu0 %3137
    %3140 = vset.pattern.permute.xlu0 11
    %3141 = vperm.xlu0 %3140, %v3001
    %v3142 = vpop.permute.xlu0 %3141
    %v3144 = vmul.f32 %v3138, %v984
    %v3145 = vmul.f32 %v3142, %v990
    %v3146 = vadd.f32 %v3134, %v3144
    %v3147 = vadd.f32 %v3135, %v3145
    %3148 = vset.pattern.permute.xlu0 12
    %3149 = vperm.xlu0 %3148, %v2996
    %v3150 = vpop.permute.xlu0 %3149
    %3152 = vset.pattern.permute.xlu0 12
    %3153 = vperm.xlu0 %3152, %v3001
    %v3154 = vpop.permute.xlu0 %3153
    %v3156 = vmul.f32 %v3150, %v1059
    %v3157 = vmul.f32 %v3154, %v1065
    %v3158 = vadd.f32 %v3146, %v3156
    %v3159 = vadd.f32 %v3147, %v3157
    %3160 = vset.pattern.permute.xlu0 13
    %3161 = vperm.xlu0 %3160, %v2996
    %v3162 = vpop.permute.xlu0 %3161
    %3164 = vset.pattern.permute.xlu0 13
    %3165 = vperm.xlu0 %3164, %v3001
    %v3166 = vpop.permute.xlu0 %3165
    %v3168 = vmul.f32 %v3162, %v1061
    %v3169 = vmul.f32 %v3166, %v1067
    %v3170 = vadd.f32 %v3158, %v3168
    %v3171 = vadd.f32 %v3159, %v3169
    %3172 = vset.pattern.permute.xlu0 14
    %3173 = vperm.xlu0 %3172, %v2996
    %v3174 = vpop.permute.xlu0 %3173
    %3176 = vset.pattern.permute.xlu0 14
    %3177 = vperm.xlu0 %3176, %v3001
    %v3178 = vpop.permute.xlu0 %3177
    %v3180 = vmul.f32 %v3174, %v1136
    %v3181 = vmul.f32 %v3178, %v1142
    %v3182 = vadd.f32 %v3170, %v3180
    %v3183 = vadd.f32 %v3171, %v3181
    %3184 = vset.pattern.permute.xlu0 15
    %3185 = vperm.xlu0 %3184, %v2996
    %v3186 = vpop.permute.xlu0 %3185
    %3188 = vset.pattern.permute.xlu0 15
    %3189 = vperm.xlu0 %3188, %v3001
    %v3190 = vpop.permute.xlu0 %3189
    %v3192 = vmul.f32 %v3186, %v1138
    %v3193 = vmul.f32 %v3190, %v1144
    %v3194 = vadd.f32 %v3182, %v3192
    %v3195 = vadd.f32 %v3183, %v3193
    %3196 = vset.pattern.permute.xlu0 16
    %3197 = vperm.xlu0 %3196, %v2996
    %v3198 = vpop.permute.xlu0 %3197
    %3200 = vset.pattern.permute.xlu0 16
    %3201 = vperm.xlu0 %3200, %v3001
    %v3202 = vpop.permute.xlu0 %3201
    %v3204 = vmul.f32 %v3198, %v1213
    %v3205 = vmul.f32 %v3202, %v1219
    %v3206 = vadd.f32 %v3194, %v3204
    %v3207 = vadd.f32 %v3195, %v3205
    %3208 = vset.pattern.permute.xlu0 17
    %3209 = vperm.xlu0 %3208, %v2996
    %v3210 = vpop.permute.xlu0 %3209
    %3212 = vset.pattern.permute.xlu0 17
    %3213 = vperm.xlu0 %3212, %v3001
    %v3214 = vpop.permute.xlu0 %3213
    %v3216 = vmul.f32 %v3210, %v1215
    %v3217 = vmul.f32 %v3214, %v1221
    %v3218 = vadd.f32 %v3206, %v3216
    %v3219 = vadd.f32 %v3207, %v3217
    %3220 = vset.pattern.permute.xlu0 18
    %3221 = vperm.xlu0 %3220, %v2996
    %v3222 = vpop.permute.xlu0 %3221
    %3224 = vset.pattern.permute.xlu0 18
    %3225 = vperm.xlu0 %3224, %v3001
    %v3226 = vpop.permute.xlu0 %3225
    %v3228 = vmul.f32 %v3222, %v1290
    %v3229 = vmul.f32 %v3226, %v1296
    %v3230 = vadd.f32 %v3218, %v3228
    %v3231 = vadd.f32 %v3219, %v3229
    %3232 = vset.pattern.permute.xlu0 19
    %3233 = vperm.xlu0 %3232, %v2996
    %v3234 = vpop.permute.xlu0 %3233
    %3236 = vset.pattern.permute.xlu0 19
    %3237 = vperm.xlu0 %3236, %v3001
    %v3238 = vpop.permute.xlu0 %3237
    %v3240 = vmul.f32 %v3234, %v1292
    %v3241 = vmul.f32 %v3238, %v1298
    %v3242 = vadd.f32 %v3230, %v3240
    %v3243 = vadd.f32 %v3231, %v3241
    %3244 = vset.pattern.permute.xlu0 20
    %3245 = vperm.xlu0 %3244, %v2996
    %v3246 = vpop.permute.xlu0 %3245
    %3248 = vset.pattern.permute.xlu0 20
    %3249 = vperm.xlu0 %3248, %v3001
    %v3250 = vpop.permute.xlu0 %3249
    %v3252 = vmul.f32 %v3246, %v1367
    %v3253 = vmul.f32 %v3250, %v1373
    %v3254 = vadd.f32 %v3242, %v3252
    %v3255 = vadd.f32 %v3243, %v3253
    %3256 = vset.pattern.permute.xlu0 21
    %3257 = vperm.xlu0 %3256, %v2996
    %v3258 = vpop.permute.xlu0 %3257
    %3260 = vset.pattern.permute.xlu0 21
    %3261 = vperm.xlu0 %3260, %v3001
    %v3262 = vpop.permute.xlu0 %3261
    %v3264 = vmul.f32 %v3258, %v1369
    %v3265 = vmul.f32 %v3262, %v1375
    %v3266 = vadd.f32 %v3254, %v3264
    %v3267 = vadd.f32 %v3255, %v3265
    %3268 = vset.pattern.permute.xlu0 22
    %3269 = vperm.xlu0 %3268, %v2996
    %v3270 = vpop.permute.xlu0 %3269
    %3272 = vset.pattern.permute.xlu0 22
    %3273 = vperm.xlu0 %3272, %v3001
    %v3274 = vpop.permute.xlu0 %3273
    %v3276 = vmul.f32 %v3270, %v1444
    %v3277 = vmul.f32 %v3274, %v1450
    %v3278 = vadd.f32 %v3266, %v3276
    %v3279 = vadd.f32 %v3267, %v3277
    %3280 = vset.pattern.permute.xlu0 23
    %3281 = vperm.xlu0 %3280, %v2996
    %v3282 = vpop.permute.xlu0 %3281
    %3284 = vset.pattern.permute.xlu0 23
    %3285 = vperm.xlu0 %3284, %v3001
    %v3286 = vpop.permute.xlu0 %3285
    %v3288 = vmul.f32 %v3282, %v1446
    %v3289 = vmul.f32 %v3286, %v1452
    %v3290 = vadd.f32 %v3278, %v3288
    %v3291 = vadd.f32 %v3279, %v3289
    %3292 = vset.pattern.permute.xlu0 24
    %3293 = vperm.xlu0 %3292, %v2996
    %v3294 = vpop.permute.xlu0 %3293
    %3296 = vset.pattern.permute.xlu0 24
    %3297 = vperm.xlu0 %3296, %v3001
    %v3298 = vpop.permute.xlu0 %3297
    %v3300 = vmul.f32 %v3294, %v1521
    %v3301 = vmul.f32 %v3298, %v1527
    %v3302 = vadd.f32 %v3290, %v3300
    %v3303 = vadd.f32 %v3291, %v3301
    %3304 = vset.pattern.permute.xlu0 25
    %3305 = vperm.xlu0 %3304, %v2996
    %v3306 = vpop.permute.xlu0 %3305
    %3308 = vset.pattern.permute.xlu0 25
    %3309 = vperm.xlu0 %3308, %v3001
    %v3310 = vpop.permute.xlu0 %3309
    %v3312 = vmul.f32 %v3306, %v1523
    %v3313 = vmul.f32 %v3310, %v1529
    %v3314 = vadd.f32 %v3302, %v3312
    %v3315 = vadd.f32 %v3303, %v3313
    %3316 = vset.pattern.permute.xlu0 26
    %3317 = vperm.xlu0 %3316, %v2996
    %v3318 = vpop.permute.xlu0 %3317
    %3320 = vset.pattern.permute.xlu0 26
    %3321 = vperm.xlu0 %3320, %v3001
    %v3322 = vpop.permute.xlu0 %3321
    %v3324 = vmul.f32 %v3318, %v1598
    %v3325 = vmul.f32 %v3322, %v1604
    %v3326 = vadd.f32 %v3314, %v3324
    %v3327 = vadd.f32 %v3315, %v3325
    %3328 = vset.pattern.permute.xlu0 27
    %3329 = vperm.xlu0 %3328, %v2996
    %v3330 = vpop.permute.xlu0 %3329
    %3332 = vset.pattern.permute.xlu0 27
    %3333 = vperm.xlu0 %3332, %v3001
    %v3334 = vpop.permute.xlu0 %3333
    %v3336 = vmul.f32 %v3330, %v1600
    %v3337 = vmul.f32 %v3334, %v1606
    %v3338 = vadd.f32 %v3326, %v3336
    %v3339 = vadd.f32 %v3327, %v3337
    %3340 = vset.pattern.permute.xlu0 28
    %3341 = vperm.xlu0 %3340, %v2996
    %v3342 = vpop.permute.xlu0 %3341
    %3344 = vset.pattern.permute.xlu0 28
    %3345 = vperm.xlu0 %3344, %v3001
    %v3346 = vpop.permute.xlu0 %3345
    %v3348 = vmul.f32 %v3342, %v1675
    %v3349 = vmul.f32 %v3346, %v1681
    %v3350 = vadd.f32 %v3338, %v3348
    %v3351 = vadd.f32 %v3339, %v3349
    %3352 = vset.pattern.permute.xlu0 29
    %3353 = vperm.xlu0 %3352, %v2996
    %v3354 = vpop.permute.xlu0 %3353
    %3356 = vset.pattern.permute.xlu0 29
    %3357 = vperm.xlu0 %3356, %v3001
    %v3358 = vpop.permute.xlu0 %3357
    %v3360 = vmul.f32 %v3354, %v1677
    %v3361 = vmul.f32 %v3358, %v1683
    %v3362 = vadd.f32 %v3350, %v3360
    %v3363 = vadd.f32 %v3351, %v3361
    %3364 = vset.pattern.permute.xlu0 30
    %3365 = vperm.xlu0 %3364, %v2996
    %v3366 = vpop.permute.xlu0 %3365
    %3368 = vset.pattern.permute.xlu0 30
    %3369 = vperm.xlu0 %3368, %v3001
    %v3370 = vpop.permute.xlu0 %3369
    %v3372 = vmul.f32 %v3366, %v1752
    %v3373 = vmul.f32 %v3370, %v1758
    %v3374 = vadd.f32 %v3362, %v3372
    %v3375 = vadd.f32 %v3363, %v3373
    %3376 = vset.pattern.permute.xlu0 31
    %3377 = vperm.xlu0 %3376, %v2996
    %v3378 = vpop.permute.xlu0 %3377
    %3380 = vset.pattern.permute.xlu0 31
    %3381 = vperm.xlu0 %3380, %v3001
    %v3382 = vpop.permute.xlu0 %3381
    %v3384 = vmul.f32 %v3378, %v1754
    %v3385 = vmul.f32 %v3382, %v1760
    %v3386 = vadd.f32 %v3374, %v3384
    %v3387 = vadd.f32 %v3375, %v3385
    %3388 = vmatprep.subr.mxu0 0.0
    %3389 = vmatpush1.msra.mxu0 %v3386
    %3390 = vmatprep.subr.mxu0 0.0
    %3391 = vmatpush1.msra.mxu0 %v3387
    %3392 = vmatprep.subr.mxu0 0.0
    %3393 = vmatpush1.msra.mxu0 0.0
    %3394 = vmatprep.subr.mxu0 0.0
    %3395 = vmatpush1.msra.mxu0 0.0
    %3396 = vmatprep.subr.mxu0 0.0
    %3397 = vmatpush1.msra.mxu0 0.0
    %3398 = vmatprep.subr.mxu0 0.0
    %3399 = vmatpush1.msra.mxu0 0.0
    %3400 = vmatprep.subr.mxu0 0.0
    %3401 = vmatpush1.msra.mxu0 0.0
    %3402 = vmatprep.subr.mxu0 0.0
    %3403 = vmatpush1.msra.mxu0 0.0
    %3404 = vmatprep.subr.mxu0 0.0
    %3405 = vmatpush1.msra.mxu0 0.0
    %3406 = vmatprep.subr.mxu0 0.0
    %3407 = vmatpush1.msra.mxu0 0.0
    %3408 = vmatprep.subr.mxu0 0.0
    %3409 = vmatpush1.msra.mxu0 0.0
    %3410 = vmatprep.subr.mxu0 0.0
    %3411 = vmatpush1.msra.mxu0 0.0
    %3412 = vmatprep.subr.mxu0 0.0
    %3413 = vmatpush1.msra.mxu0 0.0
    %3414 = vmatprep.subr.mxu0 0.0
    %3415 = vmatpush1.msra.mxu0 0.0
    %3416 = vmatprep.subr.mxu0 0.0
    %3417 = vmatpush1.msra.mxu0 0.0
    %3418 = vmatprep.subr.mxu0 0.0
    %3419 = vmatpush1.msra.mxu0 0.0
    %3420 = vmatprep.subr.mxu0 0.0
    %3421 = vmatpush1.msra.mxu0 0.0
    %3422 = vmatprep.subr.mxu0 0.0
    %3423 = vmatpush1.msra.mxu0 0.0
    %3424 = vmatprep.subr.mxu0 0.0
    %3425 = vmatpush1.msra.mxu0 0.0
    %3426 = vmatprep.subr.mxu0 0.0
    %3427 = vmatpush1.msra.mxu0 0.0
    %3428 = vmatprep.subr.mxu0 0.0
    %3429 = vmatpush1.msra.mxu0 0.0
    %3430 = vmatprep.subr.mxu0 0.0
    %3431 = vmatpush1.msra.mxu0 0.0
    %3432 = vmatprep.subr.mxu0 0.0
    %3433 = vmatpush1.msra.mxu0 0.0
    %3434 = vmatprep.subr.mxu0 0.0
    %3435 = vmatpush1.msra.mxu0 0.0
    %3436 = vmatprep.subr.mxu0 0.0
    %3437 = vmatpush1.msra.mxu0 0.0
    %3438 = vmatprep.subr.mxu0 0.0
    %3439 = vmatpush1.msra.mxu0 0.0
    %3440 = vmatprep.subr.mxu0 0.0
    %3441 = vmatpush1.msra.mxu0 0.0
    %3442 = vmatprep.subr.mxu0 0.0
    %3443 = vmatpush1.msra.mxu0 0.0
    %3444 = vmatprep.subr.mxu0 0.0
    %3445 = vmatpush1.msra.mxu0 0.0
    %3446 = vmatprep.subr.mxu0 0.0
    %3447 = vmatpush1.msra.mxu0 0.0
    %3448 = vmatprep.subr.mxu0 0.0
    %3449 = vmatpush1.msra.mxu0 0.0
    %3450 = vmatprep.subr.mxu0 0.0
    %3451 = vmatpush1.msra.mxu0 0.0
    %3452 = vmatprep.mubr.f32.mxu0 0.0
    %3453 = vmatmul.mubr.f32.gmra.mrb[0].mxu0 %v2326
    %v3454 = vpop.f32.mrb[0].mxu0
    %v3455 = vadd.f32 %v2323, %v3454
    %v3456 = vpop.f32.mrb[0].mxu0
    %3457 = vdwg.mxu0
    %v3458 = vmax.f32 %v3455, 0.0
    %v3460 = vsel %vm1854, %v121, 0
    %v3463 = vsel %vm1854, %v122, 0
    %3465 = vmatprep.subr.mxu0 0.0
    %3466 = vmatpush1.msra.mxu0 %v3458
    %3467 = vmatprep.subr.mxu0 0.0
    %3468 = vmatpush1.msra.mxu0 0.0
    %3469 = vmatprep.subr.mxu0 0.0
    %3470 = vmatpush1.msra.mxu0 0.0
    %3471 = vmatprep.subr.mxu0 0.0
    %3472 = vmatpush1.msra.mxu0 0.0
    %3473 = vmatprep.subr.mxu0 0.0
    %3474 = vmatpush1.msra.mxu0 0.0
    %3475 = vmatprep.subr.mxu0 0.0
    %3476 = vmatpush1.msra.mxu0 0.0
    %3477 = vmatprep.subr.mxu0 0.0
    %3478 = vmatpush1.msra.mxu0 0.0
    %3479 = vmatprep.subr.mxu0 0.0
    %3480 = vmatpush1.msra.mxu0 0.0
    %3481 = vmatprep.subr.mxu0 0.0
    %3482 = vmatpush1.msra.mxu0 0.0
    %3483 = vmatprep.subr.mxu0 0.0
    %3484 = vmatpush1.msra.mxu0 0.0
    %3485 = vmatprep.subr.mxu0 0.0
    %3486 = vmatpush1.msra.mxu0 0.0
    %3487 = vmatprep.subr.mxu0 0.0
    %3488 = vmatpush1.msra.mxu0 0.0
    %3489 = vmatprep.subr.mxu0 0.0
    %3490 = vmatpush1.msra.mxu0 0.0
    %3491 = vmatprep.subr.mxu0 0.0
    %3492 = vmatpush1.msra.mxu0 0.0
    %3493 = vmatprep.subr.mxu0 0.0
    %3494 = vmatpush1.msra.mxu0 0.0
    %3495 = vmatprep.subr.mxu0 0.0
    %3496 = vmatpush1.msra.mxu0 0.0
    %3497 = vmatprep.subr.mxu0 0.0
    %3498 = vmatpush1.msra.mxu0 0.0
    %3499 = vmatprep.subr.mxu0 0.0
    %3500 = vmatpush1.msra.mxu0 0.0
    %3501 = vmatprep.subr.mxu0 0.0
    %3502 = vmatpush1.msra.mxu0 0.0
    %3503 = vmatprep.subr.mxu0 0.0
    %3504 = vmatpush1.msra.mxu0 0.0
    %3505 = vmatprep.subr.mxu0 0.0
    %3506 = vmatpush1.msra.mxu0 0.0
    %3507 = vmatprep.subr.mxu0 0.0
    %3508 = vmatpush1.msra.mxu0 0.0
    %3509 = vmatprep.subr.mxu0 0.0
    %3510 = vmatpush1.msra.mxu0 0.0
    %3511 = vmatprep.subr.mxu0 0.0
    %3512 = vmatpush1.msra.mxu0 0.0
    %3513 = vmatprep.subr.mxu0 0.0
    %3514 = vmatpush1.msra.mxu0 0.0
    %3515 = vmatprep.subr.mxu0 0.0
    %3516 = vmatpush1.msra.mxu0 0.0
    %3517 = vmatprep.subr.mxu0 0.0
    %3518 = vmatpush1.msra.mxu0 0.0
    %3519 = vmatprep.subr.mxu0 0.0
    %3520 = vmatpush1.msra.mxu0 0.0
    %3521 = vmatprep.subr.mxu0 0.0
    %3522 = vmatpush1.msra.mxu0 0.0
    %3523 = vmatprep.subr.mxu0 0.0
    %3524 = vmatpush1.msra.mxu0 0.0
    %3525 = vmatprep.subr.mxu0 0.0
    %3526 = vmatpush1.msra.mxu0 0.0
    %3527 = vmatprep.subr.mxu0 0.0
    %3528 = vmatpush1.msra.mxu0 0.0
    %3529 = vmatprep.mubr.f32.mxu0 0.0
    %3530 = vmatmul.mubr.f32.gmra.mrb[0].mxu0 %v3460
    %v3531 = vpop.f32.mrb[0].mxu0
    %v3532 = vadd.f32 0.0, %v3531
    %v3533 = vpop.f32.mrb[0].mxu0
    %3534 = vmatprep.mubr.f32.mxu0 0.0
    %3535 = vmatmul.mubr.f32.gmra.mrb[0].mxu0 %v3463
    %v3536 = vpop.f32.mrb[0].mxu0
    %v3537 = vadd.f32 0.0, %v3536
    %v3538 = vpop.f32.mrb[0].mxu0
    %3539 = vdwg.mxu0
    %3540 = vmatprep.subr.mxu0 0.0
    %3541 = vmatpush1.msra.mxu0 %v3458
    %3542 = vmatprep.subr.mxu0 0.0
    %3543 = vmatpush1.msra.mxu0 0.0
    %3544 = vmatprep.subr.mxu0 0.0
    %3545 = vmatpush1.msra.mxu0 0.0
    %3546 = vmatprep.subr.mxu0 0.0
    %3547 = vmatpush1.msra.mxu0 0.0
    %3548 = vmatprep.subr.mxu0 0.0
    %3549 = vmatpush1.msra.mxu0 0.0
    %3550 = vmatprep.subr.mxu0 0.0
    %3551 = vmatpush1.msra.mxu0 0.0
    %3552 = vmatprep.subr.mxu0 0.0
    %3553 = vmatpush1.msra.mxu0 0.0
    %3554 = vmatprep.subr.mxu0 0.0
    %3555 = vmatpush1.msra.mxu0 0.0
    %3556 = vmatprep.subr.mxu0 0.0
    %3557 = vmatpush1.msra.mxu0 0.0
    %3558 = vmatprep.subr.mxu0 0.0
    %3559 = vmatpush1.msra.mxu0 0.0
    %3560 = vmatprep.subr.mxu0 0.0
    %3561 = vmatpush1.msra.mxu0 0.0
    %3562 = vmatprep.subr.mxu0 0.0
    %3563 = vmatpush1.msra.mxu0 0.0
    %3564 = vmatprep.subr.mxu0 0.0
    %3565 = vmatpush1.msra.mxu0 0.0
    %3566 = vmatprep.subr.mxu0 0.0
    %3567 = vmatpush1.msra.mxu0 0.0
    %3568 = vmatprep.subr.mxu0 0.0
    %3569 = vmatpush1.msra.mxu0 0.0
    %3570 = vmatprep.subr.mxu0 0.0
    %3571 = vmatpush1.msra.mxu0 0.0
    %3572 = vmatprep.subr.mxu0 0.0
    %3573 = vmatpush1.msra.mxu0 0.0
    %3574 = vmatprep.subr.mxu0 0.0
    %3575 = vmatpush1.msra.mxu0 0.0
    %3576 = vmatprep.subr.mxu0 0.0
    %3577 = vmatpush1.msra.mxu0 0.0
    %3578 = vmatprep.subr.mxu0 0.0
    %3579 = vmatpush1.msra.mxu0 0.0
    %3580 = vmatprep.subr.mxu0 0.0
    %3581 = vmatpush1.msra.mxu0 0.0
    %3582 = vmatprep.subr.mxu0 0.0
    %3583 = vmatpush1.msra.mxu0 0.0
    %3584 = vmatprep.subr.mxu0 0.0
    %3585 = vmatpush1.msra.mxu0 0.0
    %3586 = vmatprep.subr.mxu0 0.0
    %3587 = vmatpush1.msra.mxu0 0.0
    %3588 = vmatprep.subr.mxu0 0.0
    %3589 = vmatpush1.msra.mxu0 0.0
    %3590 = vmatprep.subr.mxu0 0.0
    %3591 = vmatpush1.msra.mxu0 0.0
    %3592 = vmatprep.subr.mxu0 0.0
    %3593 = vmatpush1.msra.mxu0 0.0
    %3594 = vmatprep.subr.mxu0 0.0
    %3595 = vmatpush1.msra.mxu0 0.0
    %3596 = vmatprep.subr.mxu0 0.0
    %3597 = vmatpush1.msra.mxu0 0.0
    %3598 = vmatprep.subr.mxu0 0.0
    %3599 = vmatpush1.msra.mxu0 0.0
    %3600 = vmatprep.subr.mxu0 0.0
    %3601 = vmatpush1.msra.mxu0 0.0
    %3602 = vmatprep.subr.mxu0 0.0
    %3603 = vmatpush1.msra.mxu0 0.0
    %3604 = vmatprep.mubr.f32.mxu0 0.0
    %3605 = vmatmul.mubr.f32.gmra.mrb[0].mxu0 %v1856
    %v3606 = vpop.f32.mrb[0].mxu0
    %v3607 = vadd.f32 0.0, %v3606
    %v3608 = vpop.f32.mrb[0].mxu0
    %3609 = vmatprep.mubr.f32.mxu0 0.0
    %3610 = vmatmul.mubr.f32.gmra.mrb[0].mxu0 %v1859
    %v3611 = vpop.f32.mrb[0].mxu0
    %v3612 = vadd.f32 0.0, %v3611
    %v3613 = vpop.f32.mrb[0].mxu0
    %3614 = vdwg.mxu0
    %v3615 = vld [vmem:[#allocation8] sm:$0xff]
    %v3616 = vld [vmem:[#allocation8 + $0x8] sm:$0xff]
    %v3617 = vld [vmem:[#allocation8 + $0x10] sm:$0xff]
    %v3618 = vld [vmem:[#allocation8 + $0x18] sm:$0xff]
    %v3619 = vld [vmem:[#allocation8 + $0x20] sm:$0xff]
    %v3620 = vld [vmem:[#allocation8 + $0x28] sm:$0xff]
    %v3621 = vld [vmem:[#allocation8 + $0x30] sm:$0xff]
    %v3622 = vld [vmem:[#allocation8 + $0x38] sm:$0xff]
    %v3623 = vld [vmem:[#allocation8 + $0x40] sm:$0xff]
    %v3624 = vld [vmem:[#allocation8 + $0x48] sm:$0xff]
    %v3625 = vld [vmem:[#allocation8 + $0x50] sm:$0xff]
    %v3626 = vld [vmem:[#allocation8 + $0x58] sm:$0xff]
    %v3627 = vld [vmem:[#allocation8 + $0x60] sm:$0xff]
    %v3628 = vld [vmem:[#allocation8 + $0x68] sm:$0xff]
    %v3629 = vld [vmem:[#allocation8 + $0x70] sm:$0xff]
    %v3630 = vld [vmem:[#allocation8 + $0x78] sm:$0xff]
    %v3631 = vld [vmem:[#allocation10] sm:$0xff]
    %v3632 = vld [vmem:[#allocation10 + $0x8] sm:$0xff]
    %v3633 = vld [vmem:[#allocation10 + $0x10] sm:$0xff]
    %v3634 = vld [vmem:[#allocation10 + $0x18] sm:$0xff]
    %v3635 = vld [vmem:[#allocation10 + $0x20] sm:$0xff]
    %v3636 = vld [vmem:[#allocation10 + $0x28] sm:$0xff]
    %v3637 = vld [vmem:[#allocation10 + $0x30] sm:$0xff]
    %v3638 = vld [vmem:[#allocation10 + $0x38] sm:$0xff]
    %v3639 = vld [vmem:[#allocation10 + $0x40] sm:$0xff]
    %v3640 = vld [vmem:[#allocation10 + $0x48] sm:$0xff]
    %v3641 = vld [vmem:[#allocation10 + $0x50] sm:$0xff]
    %v3642 = vld [vmem:[#allocation10 + $0x58] sm:$0xff]
    %v3643 = vld [vmem:[#allocation10 + $0x60] sm:$0xff]
    %v3644 = vld [vmem:[#allocation10 + $0x68] sm:$0xff]
    %v3645 = vld [vmem:[#allocation10 + $0x70] sm:$0xff]
    %v3646 = vld [vmem:[#allocation10 + $0x78] sm:$0xff]
    %3647 = vmatprep.subr.mxu0 0.0
    %3648 = vmatpush1.msra.mxu0 %v3631
    %3649 = vmatprep.subr.mxu0 0.0
    %3650 = vmatpush1.msra.mxu0 %v3632
    %3651 = vmatprep.subr.mxu0 0.0
    %3652 = vmatpush1.msra.mxu0 %v3633
    %3653 = vmatprep.subr.mxu0 0.0
    %3654 = vmatpush1.msra.mxu0 %v3634
    %3655 = vmatprep.subr.mxu0 0.0
    %3656 = vmatpush1.msra.mxu0 %v3635
    %3657 = vmatprep.subr.mxu0 0.0
    %3658 = vmatpush1.msra.mxu0 %v3636
    %3659 = vmatprep.subr.mxu0 0.0
    %3660 = vmatpush1.msra.mxu0 %v3637
    %3661 = vmatprep.subr.mxu0 0.0
    %3662 = vmatpush1.msra.mxu0 %v3638
    %3663 = vmatprep.subr.mxu0 0.0
    %3664 = vmatpush1.msra.mxu0 %v3639
    %3665 = vmatprep.subr.mxu0 0.0
    %3666 = vmatpush1.msra.mxu0 %v3640
    %3667 = vmatprep.subr.mxu0 0.0
    %3668 = vmatpush1.msra.mxu0 %v3641
    %3669 = vmatprep.subr.mxu0 0.0
    %3670 = vmatpush1.msra.mxu0 %v3642
    %3671 = vmatprep.subr.mxu0 0.0
    %3672 = vmatpush1.msra.mxu0 %v3643
    %3673 = vmatprep.subr.mxu0 0.0
    %3674 = vmatpush1.msra.mxu0 %v3644
    %3675 = vmatprep.subr.mxu0 0.0
    %3676 = vmatpush1.msra.mxu0 %v3645
    %3677 = vmatprep.subr.mxu0 0.0
    %3678 = vmatpush1.msra.mxu0 %v3646
    %3679 = vmatprep.subr.mxu0 0.0
    %3680 = vmatpush1.msra.mxu0 0.0
    %3681 = vmatprep.subr.mxu0 0.0
    %3682 = vmatpush1.msra.mxu0 0.0
    %3683 = vmatprep.subr.mxu0 0.0
    %3684 = vmatpush1.msra.mxu0 0.0
    %3685 = vmatprep.subr.mxu0 0.0
    %3686 = vmatpush1.msra.mxu0 0.0
    %3687 = vmatprep.subr.mxu0 0.0
    %3688 = vmatpush1.msra.mxu0 0.0
    %3689 = vmatprep.subr.mxu0 0.0
    %3690 = vmatpush1.msra.mxu0 0.0
    %3691 = vmatprep.subr.mxu0 0.0
    %3692 = vmatpush1.msra.mxu0 0.0
    %3693 = vmatprep.subr.mxu0 0.0
    %3694 = vmatpush1.msra.mxu0 0.0
    %3695 = vmatprep.subr.mxu0 0.0
    %3696 = vmatpush1.msra.mxu0 0.0
    %3697 = vmatprep.subr.mxu0 0.0
    %3698 = vmatpush1.msra.mxu0 0.0
    %3699 = vmatprep.subr.mxu0 0.0
    %3700 = vmatpush1.msra.mxu0 0.0
    %3701 = vmatprep.subr.mxu0 0.0
    %3702 = vmatpush1.msra.mxu0 0.0
    %3703 = vmatprep.subr.mxu0 0.0
    %3704 = vmatpush1.msra.mxu0 0.0
    %3705 = vmatprep.subr.mxu0 0.0
    %3706 = vmatpush1.msra.mxu0 0.0
    %3707 = vmatprep.subr.mxu0 0.0
    %3708 = vmatpush1.msra.mxu0 0.0
    %3709 = vmatprep.subr.mxu0 0.0
    %3710 = vmatpush1.msra.mxu0 0.0
    %3711 = vmatprep.mubr.f32.mxu0 0.0
    %3712 = vmatmul.mubr.f32.gmra.mrb[0].mxu0 %v3607
    %v3713 = vpop.f32.mrb[0].mxu0
    %v3714 = vadd.f32 0.0, %v3713
    %v3715 = vpop.f32.mrb[0].mxu0
    %3716 = vmatprep.mubr.f32.mxu0 0.0
    %3717 = vmatmul.mubr.f32.gmra.mrb[0].mxu0 %v3612
    %v3718 = vpop.f32.mrb[0].mxu0
    %v3719 = vadd.f32 0.0, %v3718
    %v3720 = vpop.f32.mrb[0].mxu0
    %3721 = vdwg.mxu0
    %3722 = vmatprep.subr.mxu0 0.0
    %3723 = vmatpush1.msra.mxu0 %v3615
    %3724 = vmatprep.subr.mxu0 0.0
    %3725 = vmatpush1.msra.mxu0 %v3616
    %3726 = vmatprep.subr.mxu0 0.0
    %3727 = vmatpush1.msra.mxu0 %v3617
    %3728 = vmatprep.subr.mxu0 0.0
    %3729 = vmatpush1.msra.mxu0 %v3618
    %3730 = vmatprep.subr.mxu0 0.0
    %3731 = vmatpush1.msra.mxu0 %v3619
    %3732 = vmatprep.subr.mxu0 0.0
    %3733 = vmatpush1.msra.mxu0 %v3620
    %3734 = vmatprep.subr.mxu0 0.0
    %3735 = vmatpush1.msra.mxu0 %v3621
    %3736 = vmatprep.subr.mxu0 0.0
    %3737 = vmatpush1.msra.mxu0 %v3622
    %3738 = vmatprep.subr.mxu0 0.0
    %3739 = vmatpush1.msra.mxu0 %v3623
    %3740 = vmatprep.subr.mxu0 0.0
    %3741 = vmatpush1.msra.mxu0 %v3624
    %3742 = vmatprep.subr.mxu0 0.0
    %3743 = vmatpush1.msra.mxu0 %v3625
    %3744 = vmatprep.subr.mxu0 0.0
    %3745 = vmatpush1.msra.mxu0 %v3626
    %3746 = vmatprep.subr.mxu0 0.0
    %3747 = vmatpush1.msra.mxu0 %v3627
    %3748 = vmatprep.subr.mxu0 0.0
    %3749 = vmatpush1.msra.mxu0 %v3628
    %3750 = vmatprep.subr.mxu0 0.0
    %3751 = vmatpush1.msra.mxu0 %v3629
    %3752 = vmatprep.subr.mxu0 0.0
    %3753 = vmatpush1.msra.mxu0 %v3630
    %3754 = vmatprep.subr.mxu0 0.0
    %3755 = vmatpush1.msra.mxu0 0.0
    %3756 = vmatprep.subr.mxu0 0.0
    %3757 = vmatpush1.msra.mxu0 0.0
    %3758 = vmatprep.subr.mxu0 0.0
    %3759 = vmatpush1.msra.mxu0 0.0
    %3760 = vmatprep.subr.mxu0 0.0
    %3761 = vmatpush1.msra.mxu0 0.0
    %3762 = vmatprep.subr.mxu0 0.0
    %3763 = vmatpush1.msra.mxu0 0.0
    %3764 = vmatprep.subr.mxu0 0.0
    %3765 = vmatpush1.msra.mxu0 0.0
    %3766 = vmatprep.subr.mxu0 0.0
    %3767 = vmatpush1.msra.mxu0 0.0
    %3768 = vmatprep.subr.mxu0 0.0
    %3769 = vmatpush1.msra.mxu0 0.0
    %3770 = vmatprep.subr.mxu0 0.0
    %3771 = vmatpush1.msra.mxu0 0.0
    %3772 = vmatprep.subr.mxu0 0.0
    %3773 = vmatpush1.msra.mxu0 0.0
    %3774 = vmatprep.subr.mxu0 0.0
    %3775 = vmatpush1.msra.mxu0 0.0
    %3776 = vmatprep.subr.mxu0 0.0
    %3777 = vmatpush1.msra.mxu0 0.0
    %3778 = vmatprep.subr.mxu0 0.0
    %3779 = vmatpush1.msra.mxu0 0.0
    %3780 = vmatprep.subr.mxu0 0.0
    %3781 = vmatpush1.msra.mxu0 0.0
    %3782 = vmatprep.subr.mxu0 0.0
    %3783 = vmatpush1.msra.mxu0 0.0
    %3784 = vmatprep.subr.mxu0 0.0
    %3785 = vmatpush1.msra.mxu0 0.0
    %3786 = vmatprep.mubr.f32.mxu0 0.0
    %3787 = vmatmul.mubr.f32.gmra.mrb[0].mxu0 %v3532
    %v3788 = vpop.f32.mrb[0].mxu0
    %v3789 = vadd.f32 %v3714, %v3788
    %v3790 = vpop.f32.mrb[0].mxu0
    %3791 = vmatprep.mubr.f32.mxu0 0.0
    %3792 = vmatmul.mubr.f32.gmra.mrb[0].mxu0 %v3537
    %v3793 = vpop.f32.mrb[0].mxu0
    %v3794 = vadd.f32 %v3719, %v3793
    %v3795 = vpop.f32.mrb[0].mxu0
    %3796 = vdwg.mxu0
    %v3797 = vlaneseq
    %v3798 = vshrl.u32 %v3797, 7
    %v3799 = vsub.s32 2, %v3798
    %v3800 = vrot.slane %v114, %v3799
    %v3801 = vadd.f32 %v3789, %v3800
    %v3802 = vadd.f32 %v3794, %v3800
    %v3803 = vlaneseq
    %v3804 = vand.u32 %v3803, 127
    %vm3805 = vcmp.lt.s32.totalorder %v3804, 32
    %v3806 = vsel %vm3805, 1, 0
    %v3807 = vcvt.s32.f32 %v3806
    %3808 = vadd.xlane.f32.xlu0 %v3458
    %v3809 = vpop.xlane.xlu0 %3808
    %v3810 = vmul.f32 %v3809, 0.03125
    %v3811 = vsub.f32 %v3458, %v3810
    %v3812 = vmul.f32 %v3811, %v3811
    %v3813 = vmul.f32 %v3812, %v3807
    %3814 = vadd.xlane.f32.xlu0 %v3813
    %v3815 = vpop.xlane.xlu0 %3814
    %v3816 = vmul.f32 %v3815, 0.03125
    %v3817 = vadd.f32 %v3816, 1e-05
    %v3818 = vrsqrt.pop %v3817
    %v3819 = vmul.f32 %v3811, %v3818
    %v3820 = vlaneseq
    %v3821 = vshrl.u32 %v3820, 7
    %v3822 = vsub.s32 3, %v3821
    %v3823 = vrot.slane %v114, %v3822
    %v3824 = vmul.f32 %v3819, %v3823
    %v3825 = vlaneseq
    %v3826 = vshrl.u32 %v3825, 7
    %v3827 = vsub.s32 4, %v3826
    %v3828 = vrot.slane %v114, %v3827
    %v3829 = vadd.f32 %v3824, %v3828
    %3830 = vst [vmem:[#allocation11] sm:$0xff] %v3829
    %3831 = vadd.xlane.f32.xlu0 %v3801
    %v3832 = vpop.xlane.xlu0 %3831
    %3833 = vadd.xlane.f32.xlu0 %v3802
    %v3834 = vpop.xlane.xlu0 %3833
    %v3835 = vmul.f32 %v3832, 0.03125
    %v3836 = vmul.f32 %v3834, 0.03125
    %v3837 = vsub.f32 %v3801, %v3835
    %v3838 = vsub.f32 %v3802, %v3836
    %v3839 = vmul.f32 %v3837, %v3837
    %v3840 = vmul.f32 %v3838, %v3838
    %v3841 = vmul.f32 %v3839, %v3807
    %v3842 = vmul.f32 %v3840, %v3807
    %3843 = vadd.xlane.f32.xlu0 %v3841
    %v3844 = vpop.xlane.xlu0 %3843
    %3845 = vadd.xlane.f32.xlu0 %v3842
    %v3846 = vpop.xlane.xlu0 %3845
    %v3847 = vmul.f32 %v3844, 0.03125
    %v3848 = vmul.f32 %v3846, 0.03125
    %v3849 = vadd.f32 %v3847, 1e-05
    %v3850 = vadd.f32 %v3848, 1e-05
    %v3851 = vrsqrt.pop %v3849
    %v3852 = vrsqrt.pop %v3850
    %v3853 = vmul.f32 %v3837, %v3851
    %v3854 = vmul.f32 %v3838, %v3852
    %v3855 = vmul.f32 %v3853, %v3823
    %v3856 = vmul.f32 %v3854, %v3823
    %v3857 = vadd.f32 %v3855, %v3828
    %v3858 = vadd.f32 %v3856, %v3828
    %3859 = vst [vmem:[#allocation12] sm:$0xff] %v3857
    %3860 = vst [vmem:[#allocation12 + $0x8] sm:$0xff] %v3858
    // Predicated region
    $region74: #{tpu_custom_call.1} parent=1 // pred_check
      _
    $region75: #{tpu_custom_call.1} parent=1 // pred_check_branch
      %3862 = sbr.rel (0) target = $region77
    $region76: #{tpu_custom_call.1} parent=1 // pred_region
      %s3864 = ssub.s32 128, 128
      %3865 = vsyncadd [#allocation4], %s3864
      %s3867 = sshll.u32 [#allocation11], 4
      %s3868 = int_to_ptr.vmem [resolvable:$true] %s3867
      %3870 = dma.vmem_to_hbm [thread:$0]  %s3868, 128, %s13, [#allocation4]
    $region77: #{tpu_custom_call.1} parent=1 // pred_fallthru
      _
    // Predicated region
    $region78: #{tpu_custom_call.1} parent=1 // pred_check
      _
    $region79: #{tpu_custom_call.1} parent=1 // pred_check_branch
      %3872 = sbr.rel (0) target = $region81
    $region80: #{tpu_custom_call.1} parent=1 // pred_region
      %s3874 = ssub.s32 256, 256
      %3875 = vsyncadd [#allocation13], %s3874
      %s3876 = sshll.u32 [#allocation12], 4
      %s3877 = int_to_ptr.vmem [resolvable:$true] %s3876
      %3882 = dma.vmem_to_hbm [thread:$0]  %s3877, 256, %s14, [#allocation13], 128, 128, 8
    $region81: #{tpu_custom_call.1} parent=1 // pred_fallthru
      _
    // Predicated region
    $region82: #{tpu_custom_call.1} parent=1 // pred_check
      _
    $region83: #{tpu_custom_call.1} parent=1 // pred_check_branch
      %3884 = sbr.rel (0) target = $region85
    $region84: #{tpu_custom_call.1} parent=1 // pred_region
      %3885 = dma.done [#allocation4], 128
    $region85: #{tpu_custom_call.1} parent=1 // pred_fallthru
      _
    // Predicated region
    $region86: #{tpu_custom_call.1} parent=1 // pred_check
      _
    $region87: #{tpu_custom_call.1} parent=1 // pred_check_branch
      %3887 = sbr.rel (0) target = $region89
    $region88: #{tpu_custom_call.1} parent=1 // pred_region
      %3888 = dma.done [#allocation13], 256
    $region89: #{tpu_custom_call.1} parent=1 // pred_fallthru
      _
    %3889 = vsyncpa [#allocation3], 1
    %3890 = vsyncpa [#allocation6], 1
    %3891 = vsyncpa [#allocation9], 1
    %3892 = vsyncpa [#allocation4], 1
    %3893 = vsyncpa [#allocation13], 1

</llo_original>
